<compile_context>
chip_gen: v7x
topology: tpu7x:2x2x1
jax: 0.10.0
libtpu: 0.0.40
codegen_flags: <defaults>
</compile_context>

<pallas_src>
import functools

import jax
import jax.numpy as jnp
from jax import lax
from jax.experimental import pallas as pl
from jax.experimental.pallas import tpu as pltpu


# ------------------------------- kernel --------------------------------------

def mha_kernel(x_ref, wqkv_ref, wo_ref, bo_ref, out_ref, *,
               batch, seq, num_heads, head_dim):
    """Causal multi-head self-attention, whole batch in one invocation.

    x_ref    : (B*T, C)      bf16  flattened activations
    wqkv_ref : (C, 3*H*D)    bf16  fused Q|K|V projection (1/sqrt(D) folded in Wq)
    wo_ref   : (H*D, C)      bf16  fused output projection
    bo_ref   : (1, C)        f32   output projection bias
    out_ref  : (B*T, C)      bf16
    """
    hd = num_heads * head_dim
    x = x_ref[...]                                              # (B*T, C) bf16

    # --- fused QKV projection: one wide MXU matmul (K=C, N=3*H*D) -----------
    qkv = jnp.dot(x, wqkv_ref[...],
                  preferred_element_type=jnp.float32).astype(jnp.bfloat16)

    # Lane-aligned (multiple-of-128) splits; heads stay fused on the lane axis.
    q = qkv[:, 0 * hd:1 * hd].reshape(batch, seq, hd)           # (B, T, H*D)
    k = qkv[:, 1 * hd:2 * hd].reshape(batch, seq, hd)
    v = qkv[:, 2 * hd:3 * hd].reshape(batch, seq, hd)

    # Additive causal bias built once in-kernel (VPU ops, no HBM fetch).
    row = lax.broadcasted_iota(jnp.int32, (seq, seq), 0)
    col = lax.broadcasted_iota(jnp.int32, (seq, seq), 1)
    causal = jnp.where(row >= col, 0.0, -1e30).astype(jnp.float32)   # (T, T)

    # --- tiny per-head scores / softmax / context (dominant work is above) ---
    # NOTE: attention-weight dropout / output dropout are eval-mode identities.
    ctx_heads = []
    for h in range(num_heads):
        lo = h * head_dim
        hi = lo + head_dim
        qh = q[:, :, lo:hi]                                     # (B, T, D) bf16
        kh = k[:, :, lo:hi]
        vh = v[:, :, lo:hi]

        s = jnp.einsum("btd,bsd->bts", qh, kh,
                       preferred_element_type=jnp.float32)      # (B, T, T) f32
        s = s + causal

        m = jnp.max(s, axis=-1, keepdims=True)
        p = jnp.exp(s - m)
        denom = jnp.sum(p, axis=-1, keepdims=True)
        p = (p * pl.reciprocal(denom, approx=True)).astype(jnp.bfloat16)

        ctx_h = jnp.einsum("bts,bsd->btd", p, vh,
                           preferred_element_type=jnp.float32)  # (B, T, D) f32
        ctx_heads.append(ctx_h.astype(jnp.bfloat16))

    # Heads re-fused on the lane axis -> single K=H*D output projection.
    ctx = jnp.concatenate(ctx_heads, axis=-1)                   # (B, T, H*D)
    ctx = ctx.reshape(batch * seq, hd)

    out = jnp.dot(ctx, wo_ref[...], preferred_element_type=jnp.float32)
    out = out + bo_ref[...]
    out_ref[...] = out.astype(out_ref.dtype)


# ------------------------------- wrapper --------------------------------------

def multi_head_attention(x, params):
    """x: (B, T, C) f32.  params: wq/wk/wv (H,C,D), wo (H,D,C), bo (1,C)."""
    B, T, Cdim = x.shape
    H, _, D = params["wq"].shape
    HD = H * D
    assert (B * T) % 8 == 0 and T % 8 == 0 and Cdim % 128 == 0, "tile alignment"

    scale = 1.0 / D ** 0.5

    # (H, C, D) -> (C, H*D) with heads fused on the lane axis; concat Q|K|V so
    # the projection is a single wide matmul.  Attention scale folded into Wq.
    def fuse(w):
        return jnp.transpose(w, (1, 0, 2)).reshape(Cdim, HD)

    wqkv = jnp.concatenate(
        [fuse(params["wq"] * scale), fuse(params["wk"]), fuse(params["wv"])],
        axis=-1).astype(jnp.bfloat16)                           # (C, 3*H*D)
    wo2 = params["wo"].reshape(HD, Cdim).astype(jnp.bfloat16)   # (H*D, C)
    bo = params["bo"].astype(jnp.float32)                       # (1, C)
    x2 = x.reshape(B * T, Cdim).astype(jnp.bfloat16)            # (B*T, C)

    vmem = pl.BlockSpec(memory_space=pltpu.MemorySpace.VMEM)
    out2 = pl.pallas_call(
        functools.partial(mha_kernel, batch=B, seq=T,
                          num_heads=H, head_dim=D),
        out_shape=jax.ShapeDtypeStruct((B * T, Cdim), jnp.bfloat16),
        in_specs=[vmem, vmem, vmem, vmem],
        out_specs=vmem,
    )(x2, wqkv, wo2, bo)
    return out2.reshape(B, T, Cdim)


# --------------------------- pure-JAX reference --------------------------------

def mha_reference(x, params):
    """Reference on the same bf16-cast operands (f32 math) as the kernel."""
    H, _, D = params["wq"].shape
    T = x.shape[1]
    xf = x.astype(jnp.bfloat16).astype(jnp.float32)
    wq = (params["wq"] * (1.0 / D ** 0.5)).astype(jnp.bfloat16).astype(jnp.float32)
    wk = params["wk"].astype(jnp.bfloat16).astype(jnp.float32)
    wv = params["wv"].astype(jnp.bfloat16).astype(jnp.float32)
    wo = params["wo"].astype(jnp.bfloat16).astype(jnp.float32)
    bo = params["bo"].astype(jnp.float32)
    mask = jnp.where(jnp.tril(jnp.ones((T, T), bool)), 0.0, -1e30)

    q = jnp.einsum("btc,hcd->bhtd", xf, wq)
    k = jnp.einsum("btc,hcd->bhtd", xf, wk)
    v = jnp.einsum("btc,hcd->bhtd", xf, wv)
    s = jnp.einsum("bhtd,bhsd->bhts", q, k) + mask
    p = jax.nn.softmax(s, axis=-1)
    ctx = jnp.einsum("bhts,bhsd->bhtd", p, v)
    return jnp.einsum("bhtd,hdc->btc", ctx, wo) + bo


# --------------------------------- main ----------------------------------------

if __name__ == "__main__":
    # Module constants from the PyTorch spec, small batch/sequence.
    C = 384
    num_heads = 6
    head_size = C // num_heads     # 64
    B, T = 2, 16                   # T <= block_size (256)

    key = jax.random.PRNGKey(0)
    kx, kq, kk, kv, ko, kb = jax.random.split(key, 6)
    w_scale = 0.02
    x = jax.random.normal(kx, (B, T, C), dtype=jnp.float32)
    params = {
        "wq": w_scale * jax.random.normal(kq, (num_heads, C, head_size), dtype=jnp.float32),
        "wk": w_scale * jax.random.normal(kk, (num_heads, C, head_size), dtype=jnp.float32),
        "wv": w_scale * jax.random.normal(kv, (num_heads, C, head_size), dtype=jnp.float32),
        "wo": w_scale * jax.random.normal(ko, (num_heads, head_size, C), dtype=jnp.float32),
        "bo": w_scale * jax.random.normal(kb, (1, C), dtype=jnp.float32),
    }

    out = jax.block_until_ready(multi_head_attention(x, params))

    assert out.shape == (B, T, C), out.shape
    assert bool(jnp.all(jnp.isfinite(out.astype(jnp.float32))))

    ref = mha_reference(x, params)
    max_err = float(jnp.max(jnp.abs(out.astype(jnp.float32) - ref)))
    assert max_err < 5e-2, f"max abs err vs reference: {max_err}"
    print("KERNEL_OK")
</pallas_src>

<mosaic_0001>
module attributes {stable_mosaic.version = 11 : i64} {
  func.func @mha_kernel(%arg0: memref<32x384xbf16, #tpu.memory_space<vmem>>, %arg1: memref<384x1152xbf16, #tpu.memory_space<vmem>>, %arg2: memref<384x384xbf16, #tpu.memory_space<vmem>>, %arg3: memref<1x384xf32, #tpu.memory_space<vmem>>, %arg4: memref<32x384xbf16, #tpu.memory_space<vmem>>) attributes {dimension_semantics = [], scalar_prefetch = 0 : i64, scratch_operands = 0 : i64, tpu.core_type = #tpu.core_type<tc>} {
    %c0 = arith.constant 0 : index
    %c0_0 = arith.constant 0 : index
    %0 = vector.load %arg0[%c0, %c0_0] : memref<32x384xbf16, #tpu.memory_space<vmem>>, vector<32x384xbf16>
    %c0_1 = arith.constant 0 : index
    %c0_2 = arith.constant 0 : index
    %1 = vector.load %arg1[%c0_1, %c0_2] : memref<384x1152xbf16, #tpu.memory_space<vmem>>, vector<384x1152xbf16>
    %cst = arith.constant dense<0.000000e+00> : vector<32x1152xf32>
    %2 = tpu.matmul %0, %1, %cst {dimension_numbers = #tpu.dot_dimension_numbers<[1], [0], [0], [1], [0, 0, 1, 1], [], []>} : vector<32x384xbf16>, vector<384x1152xbf16>, vector<32x1152xf32> -> vector<32x1152xf32>
    %3 = arith.truncf %2 : vector<32x1152xf32> to vector<32x1152xbf16>
    %4 = vector.extract_strided_slice %3 {offsets = [0, 0], sizes = [32, 384], strides = [1, 1]} : vector<32x1152xbf16> to vector<32x384xbf16>
    %5 = vector.shape_cast %4 : vector<32x384xbf16> to vector<2x16x384xbf16>
    %6 = vector.extract_strided_slice %3 {offsets = [0, 384], sizes = [32, 384], strides = [1, 1]} : vector<32x1152xbf16> to vector<32x384xbf16>
    %7 = vector.shape_cast %6 : vector<32x384xbf16> to vector<2x16x384xbf16>
    %8 = vector.extract_strided_slice %3 {offsets = [0, 768], sizes = [32, 384], strides = [1, 1]} : vector<32x1152xbf16> to vector<32x384xbf16>
    %9 = vector.shape_cast %8 : vector<32x384xbf16> to vector<2x16x384xbf16>
    %10 = tpu.iota {dimensions = array<i32: 0>} : vector<16x16xi32>
    %11 = tpu.iota {dimensions = array<i32: 1>} : vector<16x16xi32>
    %12 = arith.cmpi sge, %10, %11 : vector<16x16xi32>
    %cst_3 = arith.constant 0.000000e+00 : f32
    %cst_4 = arith.constant -1.000000e+30 : f32
    %13 = vector.broadcast %cst_3 : f32 to vector<16x16xf32>
    %14 = vector.broadcast %cst_4 : f32 to vector<16x16xf32>
    %15 = arith.select %12, %13, %14 : vector<16x16xi1>, vector<16x16xf32>
    %16 = vector.extract_strided_slice %5 {offsets = [0, 0, 0], sizes = [2, 16, 64], strides = [1, 1, 1]} : vector<2x16x384xbf16> to vector<2x16x64xbf16>
    %17 = vector.extract_strided_slice %7 {offsets = [0, 0, 0], sizes = [2, 16, 64], strides = [1, 1, 1]} : vector<2x16x384xbf16> to vector<2x16x64xbf16>
    %18 = vector.extract_strided_slice %9 {offsets = [0, 0, 0], sizes = [2, 16, 64], strides = [1, 1, 1]} : vector<2x16x384xbf16> to vector<2x16x64xbf16>
    "tpu.trace_start"() <{level = 10 : i32, message = "btd,bsd->bts"}> : () -> ()
    %cst_5 = arith.constant dense<0.000000e+00> : vector<2x16x16xf32>
    %19 = tpu.matmul %16, %17, %cst_5 {dimension_numbers = #tpu.dot_dimension_numbers<[2], [2], [1], [1], [0, 0, 0, 1, 1, 1], [0], [0]>} : vector<2x16x64xbf16>, vector<2x16x64xbf16>, vector<2x16x16xf32> -> vector<2x16x16xf32>
    "tpu.trace_stop"() : () -> ()
    %20 = vector.shape_cast %15 : vector<16x16xf32> to vector<1x16x16xf32>
    %21 = vector.broadcast %20 : vector<1x16x16xf32> to vector<2x16x16xf32>
    %22 = arith.addf %19, %21 : vector<2x16x16xf32>
    %cst_6 = arith.constant dense<0xFF800000> : vector<2x16xf32>
    %23 = vector.multi_reduction <maximumf>, %22, %cst_6 [2] : vector<2x16x16xf32> to vector<2x16xf32>
    %24 = vector.shape_cast %23 : vector<2x16xf32> to vector<2x16x1xf32>
    %25 = vector.broadcast %24 : vector<2x16x1xf32> to vector<2x16x16xf32>
    %26 = arith.subf %22, %25 : vector<2x16x16xf32>
    %27 = math.exp %26 : vector<2x16x16xf32>
    %cst_7 = arith.constant dense<0.000000e+00> : vector<2x16xf32>
    %28 = vector.multi_reduction <add>, %27, %cst_7 [2] : vector<2x16x16xf32> to vector<2x16xf32>
    %29 = vector.shape_cast %28 : vector<2x16xf32> to vector<2x16x1xf32>
    %30 = tpu.reciprocal %29 {approx = true} : vector<2x16x1xf32> -> vector<2x16x1xf32>
    %31 = vector.broadcast %30 : vector<2x16x1xf32> to vector<2x16x16xf32>
    %32 = arith.mulf %27, %31 : vector<2x16x16xf32>
    %33 = arith.truncf %32 : vector<2x16x16xf32> to vector<2x16x16xbf16>
    "tpu.trace_start"() <{level = 10 : i32, message = "bts,bsd->btd"}> : () -> ()
    %cst_8 = arith.constant dense<0.000000e+00> : vector<2x16x64xf32>
    %34 = tpu.matmul %33, %18, %cst_8 {dimension_numbers = #tpu.dot_dimension_numbers<[2], [1], [1], [2], [0, 0, 0, 1, 1, 2], [0], [0]>} : vector<2x16x16xbf16>, vector<2x16x64xbf16>, vector<2x16x64xf32> -> vector<2x16x64xf32>
    "tpu.trace_stop"() : () -> ()
    %35 = arith.truncf %34 : vector<2x16x64xf32> to vector<2x16x64xbf16>
    %36 = vector.extract_strided_slice %5 {offsets = [0, 0, 64], sizes = [2, 16, 64], strides = [1, 1, 1]} : vector<2x16x384xbf16> to vector<2x16x64xbf16>
    %37 = vector.extract_strided_slice %7 {offsets = [0, 0, 64], sizes = [2, 16, 64], strides = [1, 1, 1]} : vector<2x16x384xbf16> to vector<2x16x64xbf16>
    %38 = vector.extract_strided_slice %9 {offsets = [0, 0, 64], sizes = [2, 16, 64], strides = [1, 1, 1]} : vector<2x16x384xbf16> to vector<2x16x64xbf16>
    "tpu.trace_start"() <{level = 10 : i32, message = "btd,bsd->bts"}> : () -> ()
    %cst_9 = arith.constant dense<0.000000e+00> : vector<2x16x16xf32>
    %39 = tpu.matmul %36, %37, %cst_9 {dimension_numbers = #tpu.dot_dimension_numbers<[2], [2], [1], [1], [0, 0, 0, 1, 1, 1], [0], [0]>} : vector<2x16x64xbf16>, vector<2x16x64xbf16>, vector<2x16x16xf32> -> vector<2x16x16xf32>
    "tpu.trace_stop"() : () -> ()
    %40 = vector.shape_cast %15 : vector<16x16xf32> to vector<1x16x16xf32>
    %41 = vector.broadcast %40 : vector<1x16x16xf32> to vector<2x16x16xf32>
    %42 = arith.addf %39, %41 : vector<2x16x16xf32>
    %cst_10 = arith.constant dense<0xFF800000> : vector<2x16xf32>
    %43 = vector.multi_reduction <maximumf>, %42, %cst_10 [2] : vector<2x16x16xf32> to vector<2x16xf32>
    %44 = vector.shape_cast %43 : vector<2x16xf32> to vector<2x16x1xf32>
    %45 = vector.broadcast %44 : vector<2x16x1xf32> to vector<2x16x16xf32>
    %46 = arith.subf %42, %45 : vector<2x16x16xf32>
    %47 = math.exp %46 : vector<2x16x16xf32>
    %cst_11 = arith.constant dense<0.000000e+00> : vector<2x16xf32>
    %48 = vector.multi_reduction <add>, %47, %cst_11 [2] : vector<2x16x16xf32> to vector<2x16xf32>
    %49 = vector.shape_cast %48 : vector<2x16xf32> to vector<2x16x1xf32>
    %50 = tpu.reciprocal %49 {approx = true} : vector<2x16x1xf32> -> vector<2x16x1xf32>
    %51 = vector.broadcast %50 : vector<2x16x1xf32> to vector<2x16x16xf32>
    %52 = arith.mulf %47, %51 : vector<2x16x16xf32>
    %53 = arith.truncf %52 : vector<2x16x16xf32> to vector<2x16x16xbf16>
    "tpu.trace_start"() <{level = 10 : i32, message = "bts,bsd->btd"}> : () -> ()
    %cst_12 = arith.constant dense<0.000000e+00> : vector<2x16x64xf32>
    %54 = tpu.matmul %53, %38, %cst_12 {dimension_numbers = #tpu.dot_dimension_numbers<[2], [1], [1], [2], [0, 0, 0, 1, 1, 2], [0], [0]>} : vector<2x16x16xbf16>, vector<2x16x64xbf16>, vector<2x16x64xf32> -> vector<2x16x64xf32>
    "tpu.trace_stop"() : () -> ()
    %55 = arith.truncf %54 : vector<2x16x64xf32> to vector<2x16x64xbf16>
    %56 = vector.extract_strided_slice %5 {offsets = [0, 0, 128], sizes = [2, 16, 64], strides = [1, 1, 1]} : vector<2x16x384xbf16> to vector<2x16x64xbf16>
    %57 = vector.extract_strided_slice %7 {offsets = [0, 0, 128], sizes = [2, 16, 64], strides = [1, 1, 1]} : vector<2x16x384xbf16> to vector<2x16x64xbf16>
    %58 = vector.extract_strided_slice %9 {offsets = [0, 0, 128], sizes = [2, 16, 64], strides = [1, 1, 1]} : vector<2x16x384xbf16> to vector<2x16x64xbf16>
    "tpu.trace_start"() <{level = 10 : i32, message = "btd,bsd->bts"}> : () -> ()
    %cst_13 = arith.constant dense<0.000000e+00> : vector<2x16x16xf32>
    %59 = tpu.matmul %56, %57, %cst_13 {dimension_numbers = #tpu.dot_dimension_numbers<[2], [2], [1], [1], [0, 0, 0, 1, 1, 1], [0], [0]>} : vector<2x16x64xbf16>, vector<2x16x64xbf16>, vector<2x16x16xf32> -> vector<2x16x16xf32>
    "tpu.trace_stop"() : () -> ()
    %60 = vector.shape_cast %15 : vector<16x16xf32> to vector<1x16x16xf32>
    %61 = vector.broadcast %60 : vector<1x16x16xf32> to vector<2x16x16xf32>
    %62 = arith.addf %59, %61 : vector<2x16x16xf32>
    %cst_14 = arith.constant dense<0xFF800000> : vector<2x16xf32>
    %63 = vector.multi_reduction <maximumf>, %62, %cst_14 [2] : vector<2x16x16xf32> to vector<2x16xf32>
    %64 = vector.shape_cast %63 : vector<2x16xf32> to vector<2x16x1xf32>
    %65 = vector.broadcast %64 : vector<2x16x1xf32> to vector<2x16x16xf32>
    %66 = arith.subf %62, %65 : vector<2x16x16xf32>
    %67 = math.exp %66 : vector<2x16x16xf32>
    %cst_15 = arith.constant dense<0.000000e+00> : vector<2x16xf32>
    %68 = vector.multi_reduction <add>, %67, %cst_15 [2] : vector<2x16x16xf32> to vector<2x16xf32>
    %69 = vector.shape_cast %68 : vector<2x16xf32> to vector<2x16x1xf32>
    %70 = tpu.reciprocal %69 {approx = true} : vector<2x16x1xf32> -> vector<2x16x1xf32>
    %71 = vector.broadcast %70 : vector<2x16x1xf32> to vector<2x16x16xf32>
    %72 = arith.mulf %67, %71 : vector<2x16x16xf32>
    %73 = arith.truncf %72 : vector<2x16x16xf32> to vector<2x16x16xbf16>
    "tpu.trace_start"() <{level = 10 : i32, message = "bts,bsd->btd"}> : () -> ()
    %cst_16 = arith.constant dense<0.000000e+00> : vector<2x16x64xf32>
    %74 = tpu.matmul %73, %58, %cst_16 {dimension_numbers = #tpu.dot_dimension_numbers<[2], [1], [1], [2], [0, 0, 0, 1, 1, 2], [0], [0]>} : vector<2x16x16xbf16>, vector<2x16x64xbf16>, vector<2x16x64xf32> -> vector<2x16x64xf32>
    "tpu.trace_stop"() : () -> ()
    %75 = arith.truncf %74 : vector<2x16x64xf32> to vector<2x16x64xbf16>
    %76 = vector.extract_strided_slice %5 {offsets = [0, 0, 192], sizes = [2, 16, 64], strides = [1, 1, 1]} : vector<2x16x384xbf16> to vector<2x16x64xbf16>
    %77 = vector.extract_strided_slice %7 {offsets = [0, 0, 192], sizes = [2, 16, 64], strides = [1, 1, 1]} : vector<2x16x384xbf16> to vector<2x16x64xbf16>
    %78 = vector.extract_strided_slice %9 {offsets = [0, 0, 192], sizes = [2, 16, 64], strides = [1, 1, 1]} : vector<2x16x384xbf16> to vector<2x16x64xbf16>
    "tpu.trace_start"() <{level = 10 : i32, message = "btd,bsd->bts"}> : () -> ()
    %cst_17 = arith.constant dense<0.000000e+00> : vector<2x16x16xf32>
    %79 = tpu.matmul %76, %77, %cst_17 {dimension_numbers = #tpu.dot_dimension_numbers<[2], [2], [1], [1], [0, 0, 0, 1, 1, 1], [0], [0]>} : vector<2x16x64xbf16>, vector<2x16x64xbf16>, vector<2x16x16xf32> -> vector<2x16x16xf32>
    "tpu.trace_stop"() : () -> ()
    %80 = vector.shape_cast %15 : vector<16x16xf32> to vector<1x16x16xf32>
    %81 = vector.broadcast %80 : vector<1x16x16xf32> to vector<2x16x16xf32>
    %82 = arith.addf %79, %81 : vector<2x16x16xf32>
    %cst_18 = arith.constant dense<0xFF800000> : vector<2x16xf32>
    %83 = vector.multi_reduction <maximumf>, %82, %cst_18 [2] : vector<2x16x16xf32> to vector<2x16xf32>
    %84 = vector.shape_cast %83 : vector<2x16xf32> to vector<2x16x1xf32>
    %85 = vector.broadcast %84 : vector<2x16x1xf32> to vector<2x16x16xf32>
    %86 = arith.subf %82, %85 : vector<2x16x16xf32>
    %87 = math.exp %86 : vector<2x16x16xf32>
    %cst_19 = arith.constant dense<0.000000e+00> : vector<2x16xf32>
    %88 = vector.multi_reduction <add>, %87, %cst_19 [2] : vector<2x16x16xf32> to vector<2x16xf32>
    %89 = vector.shape_cast %88 : vector<2x16xf32> to vector<2x16x1xf32>
    %90 = tpu.reciprocal %89 {approx = true} : vector<2x16x1xf32> -> vector<2x16x1xf32>
    %91 = vector.broadcast %90 : vector<2x16x1xf32> to vector<2x16x16xf32>
    %92 = arith.mulf %87, %91 : vector<2x16x16xf32>
    %93 = arith.truncf %92 : vector<2x16x16xf32> to vector<2x16x16xbf16>
    "tpu.trace_start"() <{level = 10 : i32, message = "bts,bsd->btd"}> : () -> ()
    %cst_20 = arith.constant dense<0.000000e+00> : vector<2x16x64xf32>
    %94 = tpu.matmul %93, %78, %cst_20 {dimension_numbers = #tpu.dot_dimension_numbers<[2], [1], [1], [2], [0, 0, 0, 1, 1, 2], [0], [0]>} : vector<2x16x16xbf16>, vector<2x16x64xbf16>, vector<2x16x64xf32> -> vector<2x16x64xf32>
    "tpu.trace_stop"() : () -> ()
    %95 = arith.truncf %94 : vector<2x16x64xf32> to vector<2x16x64xbf16>
    %96 = vector.extract_strided_slice %5 {offsets = [0, 0, 256], sizes = [2, 16, 64], strides = [1, 1, 1]} : vector<2x16x384xbf16> to vector<2x16x64xbf16>
    %97 = vector.extract_strided_slice %7 {offsets = [0, 0, 256], sizes = [2, 16, 64], strides = [1, 1, 1]} : vector<2x16x384xbf16> to vector<2x16x64xbf16>
    %98 = vector.extract_strided_slice %9 {offsets = [0, 0, 256], sizes = [2, 16, 64], strides = [1, 1, 1]} : vector<2x16x384xbf16> to vector<2x16x64xbf16>
    "tpu.trace_start"() <{level = 10 : i32, message = "btd,bsd->bts"}> : () -> ()
    %cst_21 = arith.constant dense<0.000000e+00> : vector<2x16x16xf32>
    %99 = tpu.matmul %96, %97, %cst_21 {dimension_numbers = #tpu.dot_dimension_numbers<[2], [2], [1], [1], [0, 0, 0, 1, 1, 1], [0], [0]>} : vector<2x16x64xbf16>, vector<2x16x64xbf16>, vector<2x16x16xf32> -> vector<2x16x16xf32>
    "tpu.trace_stop"() : () -> ()
    %100 = vector.shape_cast %15 : vector<16x16xf32> to vector<1x16x16xf32>
    %101 = vector.broadcast %100 : vector<1x16x16xf32> to vector<2x16x16xf32>
    %102 = arith.addf %99, %101 : vector<2x16x16xf32>
    %cst_22 = arith.constant dense<0xFF800000> : vector<2x16xf32>
    %103 = vector.multi_reduction <maximumf>, %102, %cst_22 [2] : vector<2x16x16xf32> to vector<2x16xf32>
    %104 = vector.shape_cast %103 : vector<2x16xf32> to vector<2x16x1xf32>
    %105 = vector.broadcast %104 : vector<2x16x1xf32> to vector<2x16x16xf32>
    %106 = arith.subf %102, %105 : vector<2x16x16xf32>
    %107 = math.exp %106 : vector<2x16x16xf32>
    %cst_23 = arith.constant dense<0.000000e+00> : vector<2x16xf32>
    %108 = vector.multi_reduction <add>, %107, %cst_23 [2] : vector<2x16x16xf32> to vector<2x16xf32>
    %109 = vector.shape_cast %108 : vector<2x16xf32> to vector<2x16x1xf32>
    %110 = tpu.reciprocal %109 {approx = true} : vector<2x16x1xf32> -> vector<2x16x1xf32>
    %111 = vector.broadcast %110 : vector<2x16x1xf32> to vector<2x16x16xf32>
    %112 = arith.mulf %107, %111 : vector<2x16x16xf32>
    %113 = arith.truncf %112 : vector<2x16x16xf32> to vector<2x16x16xbf16>
    "tpu.trace_start"() <{level = 10 : i32, message = "bts,bsd->btd"}> : () -> ()
    %cst_24 = arith.constant dense<0.000000e+00> : vector<2x16x64xf32>
    %114 = tpu.matmul %113, %98, %cst_24 {dimension_numbers = #tpu.dot_dimension_numbers<[2], [1], [1], [2], [0, 0, 0, 1, 1, 2], [0], [0]>} : vector<2x16x16xbf16>, vector<2x16x64xbf16>, vector<2x16x64xf32> -> vector<2x16x64xf32>
    "tpu.trace_stop"() : () -> ()
    %115 = arith.truncf %114 : vector<2x16x64xf32> to vector<2x16x64xbf16>
    %116 = vector.extract_strided_slice %5 {offsets = [0, 0, 320], sizes = [2, 16, 64], strides = [1, 1, 1]} : vector<2x16x384xbf16> to vector<2x16x64xbf16>
    %117 = vector.extract_strided_slice %7 {offsets = [0, 0, 320], sizes = [2, 16, 64], strides = [1, 1, 1]} : vector<2x16x384xbf16> to vector<2x16x64xbf16>
    %118 = vector.extract_strided_slice %9 {offsets = [0, 0, 320], sizes = [2, 16, 64], strides = [1, 1, 1]} : vector<2x16x384xbf16> to vector<2x16x64xbf16>
    "tpu.trace_start"() <{level = 10 : i32, message = "btd,bsd->bts"}> : () -> ()
    %cst_25 = arith.constant dense<0.000000e+00> : vector<2x16x16xf32>
    %119 = tpu.matmul %116, %117, %cst_25 {dimension_numbers = #tpu.dot_dimension_numbers<[2], [2], [1], [1], [0, 0, 0, 1, 1, 1], [0], [0]>} : vector<2x16x64xbf16>, vector<2x16x64xbf16>, vector<2x16x16xf32> -> vector<2x16x16xf32>
    "tpu.trace_stop"() : () -> ()
    %120 = vector.shape_cast %15 : vector<16x16xf32> to vector<1x16x16xf32>
    %121 = vector.broadcast %120 : vector<1x16x16xf32> to vector<2x16x16xf32>
    %122 = arith.addf %119, %121 : vector<2x16x16xf32>
    %cst_26 = arith.constant dense<0xFF800000> : vector<2x16xf32>
    %123 = vector.multi_reduction <maximumf>, %122, %cst_26 [2] : vector<2x16x16xf32> to vector<2x16xf32>
    %124 = vector.shape_cast %123 : vector<2x16xf32> to vector<2x16x1xf32>
    %125 = vector.broadcast %124 : vector<2x16x1xf32> to vector<2x16x16xf32>
    %126 = arith.subf %122, %125 : vector<2x16x16xf32>
    %127 = math.exp %126 : vector<2x16x16xf32>
    %cst_27 = arith.constant dense<0.000000e+00> : vector<2x16xf32>
    %128 = vector.multi_reduction <add>, %127, %cst_27 [2] : vector<2x16x16xf32> to vector<2x16xf32>
    %129 = vector.shape_cast %128 : vector<2x16xf32> to vector<2x16x1xf32>
    %130 = tpu.reciprocal %129 {approx = true} : vector<2x16x1xf32> -> vector<2x16x1xf32>
    %131 = vector.broadcast %130 : vector<2x16x1xf32> to vector<2x16x16xf32>
    %132 = arith.mulf %127, %131 : vector<2x16x16xf32>
    %133 = arith.truncf %132 : vector<2x16x16xf32> to vector<2x16x16xbf16>
    "tpu.trace_start"() <{level = 10 : i32, message = "bts,bsd->btd"}> : () -> ()
    %cst_28 = arith.constant dense<0.000000e+00> : vector<2x16x64xf32>
    %134 = tpu.matmul %133, %118, %cst_28 {dimension_numbers = #tpu.dot_dimension_numbers<[2], [1], [1], [2], [0, 0, 0, 1, 1, 2], [0], [0]>} : vector<2x16x16xbf16>, vector<2x16x64xbf16>, vector<2x16x64xf32> -> vector<2x16x64xf32>
    "tpu.trace_stop"() : () -> ()
    %135 = arith.truncf %134 : vector<2x16x64xf32> to vector<2x16x64xbf16>
    %136 = tpu.concatenate %35, %55, %75, %95, %115, %135 in 2 : vector<2x16x64xbf16>, vector<2x16x64xbf16>, vector<2x16x64xbf16>, vector<2x16x64xbf16>, vector<2x16x64xbf16>, vector<2x16x64xbf16> -> vector<2x16x384xbf16>
    %137 = vector.shape_cast %136 : vector<2x16x384xbf16> to vector<32x384xbf16>
    %c0_29 = arith.constant 0 : index
    %c0_30 = arith.constant 0 : index
    %138 = vector.load %arg2[%c0_29, %c0_30] : memref<384x384xbf16, #tpu.memory_space<vmem>>, vector<384x384xbf16>
    %cst_31 = arith.constant dense<0.000000e+00> : vector<32x384xf32>
    %139 = tpu.matmul %137, %138, %cst_31 {dimension_numbers = #tpu.dot_dimension_numbers<[1], [0], [0], [1], [0, 0, 1, 1], [], []>} : vector<32x384xbf16>, vector<384x384xbf16>, vector<32x384xf32> -> vector<32x384xf32>
    %c0_32 = arith.constant 0 : index
    %c0_33 = arith.constant 0 : index
    %140 = vector.load %arg3[%c0_32, %c0_33] : memref<1x384xf32, #tpu.memory_space<vmem>>, vector<1x384xf32>
    %141 = vector.broadcast %140 : vector<1x384xf32> to vector<32x384xf32>
    %142 = arith.addf %139, %141 : vector<32x384xf32>
    %143 = arith.truncf %142 : vector<32x384xf32> to vector<32x384xbf16>
    %c0_34 = arith.constant 0 : index
    %c0_35 = arith.constant 0 : index
    %144 = vector.load %arg4[%c0_34, %c0_35] : memref<32x384xbf16, #tpu.memory_space<vmem>>, vector<32x384xbf16>
    tpu.vector_store %arg4[%c0_34, %c0_35], %143 {strides = array<i32>} : memref<32x384xbf16, #tpu.memory_space<vmem>>, vector<32x384xbf16>,
    return
  }
}

</mosaic_0001>

<llo_original>
// kernel: tpu_custom_call.1
$region0: #{tpu_custom_call.1}
  #allocation0 [shape = 'u32[]', space=smem, size = 0x4, offset = 0x4, fixed_abs, tag = 'smem constant byte address 0x4 - core index']
  #allocation1 [shape = 'u32[144,128]{1,0:T(1,128)}', space=vmem, size = 0x12000, scoped, tag = 'internal scratch']
  %s0 = inlined_call_operand.hbm [shape: bf16[32,384], index: 0, kind: input, shape index: {}]
  %s1 = inlined_call_operand.hbm [shape: bf16[384,1152], index: 1, kind: input, shape index: {}]
  %s2 = inlined_call_operand.hbm [shape: bf16[384,384], index: 2, kind: input, shape index: {}]
  %s3 = inlined_call_operand.vmem [shape: f32[1,384], index: 3, kind: input, shape index: {}]
  %s4 = inlined_call_operand.hbm [shape: bf16[32,384], index: 4, kind: output, shape index: {}]
  %s5 = sld [smem:[#allocation0]]
  $region38: #{tpu_custom_call.1} parent=0
    _
  %s7 = ssub.s32 1, %s5
  %s8 = scalar_select 0, %s7, %s5
  $region1: #{tpu_custom_call.1} parent=0
    #allocation2 [shape = 'u8[24576]{0}', space=vmem, size = 0x6000, scoped, tag = 'input window, operand 0, single buffered']
    #allocation3 [shape = 's32[1]{0}', space=sflag, size = 0x4, scoped, tag = 'scoped memory for tpu_custom_call.1']
    #allocation4 [shape = 's32[1]{0}', space=sflag, size = 0x4, scoped, tag = 'scoped memory for tpu_custom_call.1']
    #allocation5 [shape = 'u8[884736]{0}', space=vmem, size = 0xd8000, scoped, tag = 'input window, operand 1, single buffered']
    #allocation6 [shape = 's32[1]{0}', space=sflag, size = 0x4, scoped, tag = 'scoped memory for tpu_custom_call.1']
    #allocation7 [shape = 'u8[294912]{0}', space=vmem, size = 0x48000, scoped, tag = 'input window, operand 2, single buffered']
    #allocation8 [shape = 'u8[24576]{0}', space=vmem, size = 0x6000, scoped, tag = 'output window, operand 0, single buffered']
    %9 = vsyncpa [#allocation3], 0
    %10 = vsyncpa [#allocation6], 0
    %11 = vsyncpa [#allocation4], 0
    // Predicated region
    $region2: #{tpu_custom_call.1} parent=1 // pred_check
      _
    $region3: #{tpu_custom_call.1} parent=1 // pred_check_branch
      %13 = sbr.rel (0) target = $region5
    $region4: #{tpu_custom_call.1} parent=1 // pred_region
      %s15 = ssub.s32 768, 768
      %16 = vsyncadd [#allocation3], %s15
      %s17 = sshll.u32 [#allocation2], 4
      %s18 = int_to_ptr.vmem [resolvable:$true] %s17
      %23 = dma.hbm_to_vmem [thread:$0]  %s0, 768, %s18, [#allocation3], 192, 192, 12
    $region5: #{tpu_custom_call.1} parent=1 // pred_fallthru
      _
    // Predicated region
    $region6: #{tpu_custom_call.1} parent=1 // pred_check
      _
    $region7: #{tpu_custom_call.1} parent=1 // pred_check_branch
      %25 = sbr.rel (0) target = $region9
    $region8: #{tpu_custom_call.1} parent=1 // pred_region
      %s27 = ssub.s32 27648, 27648
      %28 = vsyncadd [#allocation6], %s27
      %s29 = sshll.u32 [#allocation5], 4
      %s30 = int_to_ptr.vmem [resolvable:$true] %s29
      %35 = dma.hbm_to_vmem [thread:$0]  %s1, 27648, %s30, [#allocation6], 576, 576, 36
    $region9: #{tpu_custom_call.1} parent=1 // pred_fallthru
      _
    // Predicated region
    $region10: #{tpu_custom_call.1} parent=1 // pred_check
      _
    $region11: #{tpu_custom_call.1} parent=1 // pred_check_branch
      %37 = sbr.rel (0) target = $region13
    $region12: #{tpu_custom_call.1} parent=1 // pred_region
      %s39 = ssub.s32 9216, 9216
      %40 = vsyncadd [#allocation6], %s39
      %s41 = sshll.u32 [#allocation7], 4
      %s42 = int_to_ptr.vmem [resolvable:$true] %s41
      %47 = dma.hbm_to_vmem [thread:$0]  %s2, 9216, %s42, [#allocation6], 192, 192, 12
    $region13: #{tpu_custom_call.1} parent=1 // pred_fallthru
      _
    // Predicated region
    $region14: #{tpu_custom_call.1} parent=1 // pred_check
      _
    $region15: #{tpu_custom_call.1} parent=1 // pred_check_branch
      %49 = sbr.rel (0) target = $region17
    $region16: #{tpu_custom_call.1} parent=1 // pred_region
      _
    $region17: #{tpu_custom_call.1} parent=1 // pred_fallthru
      _
    // Predicated region
    $region18: #{tpu_custom_call.1} parent=1 // pred_check
      _
    $region19: #{tpu_custom_call.1} parent=1 // pred_check_branch
      %51 = sbr.rel (0) target = $region21
    $region20: #{tpu_custom_call.1} parent=1 // pred_region
      %52 = dma.done [#allocation3], 768
    $region21: #{tpu_custom_call.1} parent=1 // pred_fallthru
      _
    // Predicated region
    $region22: #{tpu_custom_call.1} parent=1 // pred_check
      _
    $region23: #{tpu_custom_call.1} parent=1 // pred_check_branch
      %54 = sbr.rel (0) target = $region25
    $region24: #{tpu_custom_call.1} parent=1 // pred_region
      %55 = dma.done [#allocation6], 27648
    $region25: #{tpu_custom_call.1} parent=1 // pred_fallthru
      _
    // Predicated region
    $region26: #{tpu_custom_call.1} parent=1 // pred_check
      _
    $region27: #{tpu_custom_call.1} parent=1 // pred_check_branch
      %57 = sbr.rel (0) target = $region29
    $region28: #{tpu_custom_call.1} parent=1 // pred_region
      %58 = dma.done [#allocation6], 9216
    $region29: #{tpu_custom_call.1} parent=1 // pred_fallthru
      _
    %v60 = vld [vmem:[#allocation2] sm:$0xff]
    %v61 = vld [vmem:[#allocation2 + $0x8] sm:$0xf]
    %v62 = vld [vmem:[#allocation2 + $0xc] sm:$0xff]
    %v63 = vld [vmem:[#allocation2 + $0x14] sm:$0xf]
    %v64 = vld [vmem:[#allocation2 + $0x18] sm:$0xff]
    %v65 = vld [vmem:[#allocation2 + $0x20] sm:$0xf]
    %v66 = vld [vmem:[#allocation2 + $0x24] sm:$0xff]
    %v67 = vld [vmem:[#allocation2 + $0x2c] sm:$0xf]
    %v68 = vld [vmem:[#allocation5] sm:$0xff]
    %v69 = vld [vmem:[#allocation5 + $0x8] sm:$0xff]
    %v70 = vld [vmem:[#allocation5 + $0x10] sm:$0xff]
    %v71 = vld [vmem:[#allocation5 + $0x18] sm:$0xff]
    %v72 = vld [vmem:[#allocation5 + $0x20] sm:$0xf]
    %v73 = vld [vmem:[#allocation5 + $0x24] sm:$0xff]
    %v74 = vld [vmem:[#allocation5 + $0x2c] sm:$0xff]
    %v75 = vld [vmem:[#allocation5 + $0x34] sm:$0xff]
    %v76 = vld [vmem:[#allocation5 + $0x3c] sm:$0xff]
    %v77 = vld [vmem:[#allocation5 + $0x44] sm:$0xf]
    %v78 = vld [vmem:[#allocation5 + $0x48] sm:$0xff]
    %v79 = vld [vmem:[#allocation5 + $0x50] sm:$0xff]
    %v80 = vld [vmem:[#allocation5 + $0x58] sm:$0xff]
    %v81 = vld [vmem:[#allocation5 + $0x60] sm:$0xff]
    %v82 = vld [vmem:[#allocation5 + $0x68] sm:$0xf]
    %v83 = vld [vmem:[#allocation5 + $0x6c] sm:$0xff]
    %v84 = vld [vmem:[#allocation5 + $0x74] sm:$0xff]
    %v85 = vld [vmem:[#allocation5 + $0x7c] sm:$0xff]
    %v86 = vld [vmem:[#allocation5 + $0x84] sm:$0xff]
    %v87 = vld [vmem:[#allocation5 + $0x8c] sm:$0xf]
    %v88 = vld [vmem:[#allocation5 + $0x90] sm:$0xff]
    %v89 = vld [vmem:[#allocation5 + $0x98] sm:$0xff]
    %v90 = vld [vmem:[#allocation5 + $0xa0] sm:$0xff]
    %v91 = vld [vmem:[#allocation5 + $0xa8] sm:$0xff]
    %v92 = vld [vmem:[#allocation5 + $0xb0] sm:$0xf]
    %v93 = vld [vmem:[#allocation5 + $0xb4] sm:$0xff]
    %v94 = vld [vmem:[#allocation5 + $0xbc] sm:$0xff]
    %v95 = vld [vmem:[#allocation5 + $0xc4] sm:$0xff]
    %v96 = vld [vmem:[#allocation5 + $0xcc] sm:$0xff]
    %v97 = vld [vmem:[#allocation5 + $0xd4] sm:$0xf]
    %v98 = vld [vmem:[#allocation5 + $0xd8] sm:$0xff]
    %v99 = vld [vmem:[#allocation5 + $0xe0] sm:$0xff]
    %v100 = vld [vmem:[#allocation5 + $0xe8] sm:$0xff]
    %v101 = vld [vmem:[#allocation5 + $0xf0] sm:$0xff]
    %v102 = vld [vmem:[#allocation5 + $0xf8] sm:$0xf]
    %v103 = vld [vmem:[#allocation5 + $0xfc] sm:$0xff]
    %v104 = vld [vmem:[#allocation5 + $0x104] sm:$0xff]
    %v105 = vld [vmem:[#allocation5 + $0x10c] sm:$0xff]
    %v106 = vld [vmem:[#allocation5 + $0x114] sm:$0xff]
    %v107 = vld [vmem:[#allocation5 + $0x11c] sm:$0xf]
    %v108 = vld [vmem:[#allocation5 + $0x120] sm:$0xff]
    %v109 = vld [vmem:[#allocation5 + $0x128] sm:$0xff]
    %v110 = vld [vmem:[#allocation5 + $0x130] sm:$0xff]
    %v111 = vld [vmem:[#allocation5 + $0x138] sm:$0xff]
    %v112 = vld [vmem:[#allocation5 + $0x140] sm:$0xf]
    %v113 = vld [vmem:[#allocation5 + $0x144] sm:$0xff]
    %v114 = vld [vmem:[#allocation5 + $0x14c] sm:$0xff]
    %v115 = vld [vmem:[#allocation5 + $0x154] sm:$0xff]
    %v116 = vld [vmem:[#allocation5 + $0x15c] sm:$0xff]
    %v117 = vld [vmem:[#allocation5 + $0x164] sm:$0xf]
    %v118 = vld [vmem:[#allocation5 + $0x168] sm:$0xff]
    %v119 = vld [vmem:[#allocation5 + $0x170] sm:$0xff]
    %v120 = vld [vmem:[#allocation5 + $0x178] sm:$0xff]
    %v121 = vld [vmem:[#allocation5 + $0x180] sm:$0xff]
    %v122 = vld [vmem:[#allocation5 + $0x188] sm:$0xf]
    %v123 = vld [vmem:[#allocation5 + $0x18c] sm:$0xff]
    %v124 = vld [vmem:[#allocation5 + $0x194] sm:$0xff]
    %v125 = vld [vmem:[#allocation5 + $0x19c] sm:$0xff]
    %v126 = vld [vmem:[#allocation5 + $0x1a4] sm:$0xff]
    %v127 = vld [vmem:[#allocation5 + $0x1ac] sm:$0xf]
    %v128 = vld [vmem:[#allocation5 + $0x1b0] sm:$0xff]
    %v129 = vld [vmem:[#allocation5 + $0x1b8] sm:$0xff]
    %v130 = vld [vmem:[#allocation5 + $0x1c0] sm:$0xff]
    %v131 = vld [vmem:[#allocation5 + $0x1c8] sm:$0xff]
    %v132 = vld [vmem:[#allocation5 + $0x1d0] sm:$0xf]
    %v133 = vld [vmem:[#allocation5 + $0x1d4] sm:$0xff]
    %v134 = vld [vmem:[#allocation5 + $0x1dc] sm:$0xff]
    %v135 = vld [vmem:[#allocation5 + $0x1e4] sm:$0xff]
    %v136 = vld [vmem:[#allocation5 + $0x1ec] sm:$0xff]
    %v137 = vld [vmem:[#allocation5 + $0x1f4] sm:$0xf]
    %v138 = vld [vmem:[#allocation5 + $0x1f8] sm:$0xff]
    %v139 = vld [vmem:[#allocation5 + $0x200] sm:$0xff]
    %v140 = vld [vmem:[#allocation5 + $0x208] sm:$0xff]
    %v141 = vld [vmem:[#allocation5 + $0x210] sm:$0xff]
    %v142 = vld [vmem:[#allocation5 + $0x218] sm:$0xf]
    %v143 = vld [vmem:[#allocation5 + $0x21c] sm:$0xff]
    %v144 = vld [vmem:[#allocation5 + $0x224] sm:$0xff]
    %v145 = vld [vmem:[#allocation5 + $0x22c] sm:$0xff]
    %v146 = vld [vmem:[#allocation5 + $0x234] sm:$0xff]
    %v147 = vld [vmem:[#allocation5 + $0x23c] sm:$0xf]
    %v148 = vld [vmem:[#allocation5 + $0x240] sm:$0xff]
    %v149 = vld [vmem:[#allocation5 + $0x248] sm:$0xff]
    %v150 = vld [vmem:[#allocation5 + $0x250] sm:$0xff]
    %v151 = vld [vmem:[#allocation5 + $0x258] sm:$0xff]
    %v152 = vld [vmem:[#allocation5 + $0x260] sm:$0xf]
    %v153 = vld [vmem:[#allocation5 + $0x264] sm:$0xff]
    %v154 = vld [vmem:[#allocation5 + $0x26c] sm:$0xff]
    %v155 = vld [vmem:[#allocation5 + $0x274] sm:$0xff]
    %v156 = vld [vmem:[#allocation5 + $0x27c] sm:$0xff]
    %v157 = vld [vmem:[#allocation5 + $0x284] sm:$0xf]
    %v158 = vld [vmem:[#allocation5 + $0x288] sm:$0xff]
    %v159 = vld [vmem:[#allocation5 + $0x290] sm:$0xff]
    %v160 = vld [vmem:[#allocation5 + $0x298] sm:$0xff]
    %v161 = vld [vmem:[#allocation5 + $0x2a0] sm:$0xff]
    %v162 = vld [vmem:[#allocation5 + $0x2a8] sm:$0xf]
    %v163 = vld [vmem:[#allocation5 + $0x2ac] sm:$0xff]
    %v164 = vld [vmem:[#allocation5 + $0x2b4] sm:$0xff]
    %v165 = vld [vmem:[#allocation5 + $0x2bc] sm:$0xff]
    %v166 = vld [vmem:[#allocation5 + $0x2c4] sm:$0xff]
    %v167 = vld [vmem:[#allocation5 + $0x2cc] sm:$0xf]
    %v168 = vld [vmem:[#allocation5 + $0x2d0] sm:$0xff]
    %v169 = vld [vmem:[#allocation5 + $0x2d8] sm:$0xff]
    %v170 = vld [vmem:[#allocation5 + $0x2e0] sm:$0xff]
    %v171 = vld [vmem:[#allocation5 + $0x2e8] sm:$0xff]
    %v172 = vld [vmem:[#allocation5 + $0x2f0] sm:$0xf]
    %v173 = vld [vmem:[#allocation5 + $0x2f4] sm:$0xff]
    %v174 = vld [vmem:[#allocation5 + $0x2fc] sm:$0xff]
    %v175 = vld [vmem:[#allocation5 + $0x304] sm:$0xff]
    %v176 = vld [vmem:[#allocation5 + $0x30c] sm:$0xff]
    %v177 = vld [vmem:[#allocation5 + $0x314] sm:$0xf]
    %v178 = vld [vmem:[#allocation5 + $0x318] sm:$0xff]
    %v179 = vld [vmem:[#allocation5 + $0x320] sm:$0xff]
    %v180 = vld [vmem:[#allocation5 + $0x328] sm:$0xff]
    %v181 = vld [vmem:[#allocation5 + $0x330] sm:$0xff]
    %v182 = vld [vmem:[#allocation5 + $0x338] sm:$0xf]
    %v183 = vld [vmem:[#allocation5 + $0x33c] sm:$0xff]
    %v184 = vld [vmem:[#allocation5 + $0x344] sm:$0xff]
    %v185 = vld [vmem:[#allocation5 + $0x34c] sm:$0xff]
    %v186 = vld [vmem:[#allocation5 + $0x354] sm:$0xff]
    %v187 = vld [vmem:[#allocation5 + $0x35c] sm:$0xf]
    %v188 = vld [vmem:[#allocation5 + $0x360] sm:$0xff]
    %v189 = vld [vmem:[#allocation5 + $0x368] sm:$0xff]
    %v190 = vld [vmem:[#allocation5 + $0x370] sm:$0xff]
    %v191 = vld [vmem:[#allocation5 + $0x378] sm:$0xff]
    %v192 = vld [vmem:[#allocation5 + $0x380] sm:$0xf]
    %v193 = vld [vmem:[#allocation5 + $0x384] sm:$0xff]
    %v194 = vld [vmem:[#allocation5 + $0x38c] sm:$0xff]
    %v195 = vld [vmem:[#allocation5 + $0x394] sm:$0xff]
    %v196 = vld [vmem:[#allocation5 + $0x39c] sm:$0xff]
    %v197 = vld [vmem:[#allocation5 + $0x3a4] sm:$0xf]
    %v198 = vld [vmem:[#allocation5 + $0x3a8] sm:$0xff]
    %v199 = vld [vmem:[#allocation5 + $0x3b0] sm:$0xff]
    %v200 = vld [vmem:[#allocation5 + $0x3b8] sm:$0xff]
    %v201 = vld [vmem:[#allocation5 + $0x3c0] sm:$0xff]
    %v202 = vld [vmem:[#allocation5 + $0x3c8] sm:$0xf]
    %v203 = vld [vmem:[#allocation5 + $0x3cc] sm:$0xff]
    %v204 = vld [vmem:[#allocation5 + $0x3d4] sm:$0xff]
    %v205 = vld [vmem:[#allocation5 + $0x3dc] sm:$0xff]
    %v206 = vld [vmem:[#allocation5 + $0x3e4] sm:$0xff]
    %v207 = vld [vmem:[#allocation5 + $0x3ec] sm:$0xf]
    %v208 = vld [vmem:[#allocation5 + $0x3f0] sm:$0xff]
    %v209 = vld [vmem:[#allocation5 + $0x3f8] sm:$0xff]
    %v210 = vld [vmem:[#allocation5 + $0x400] sm:$0xff]
    %v211 = vld [vmem:[#allocation5 + $0x408] sm:$0xff]
    %v212 = vld [vmem:[#allocation5 + $0x410] sm:$0xf]
    %v213 = vld [vmem:[#allocation5 + $0x414] sm:$0xff]
    %v214 = vld [vmem:[#allocation5 + $0x41c] sm:$0xff]
    %v215 = vld [vmem:[#allocation5 + $0x424] sm:$0xff]
    %v216 = vld [vmem:[#allocation5 + $0x42c] sm:$0xff]
    %v217 = vld [vmem:[#allocation5 + $0x434] sm:$0xf]
    %v218 = vld [vmem:[#allocation5 + $0x438] sm:$0xff]
    %v219 = vld [vmem:[#allocation5 + $0x440] sm:$0xff]
    %v220 = vld [vmem:[#allocation5 + $0x448] sm:$0xff]
    %v221 = vld [vmem:[#allocation5 + $0x450] sm:$0xff]
    %v222 = vld [vmem:[#allocation5 + $0x458] sm:$0xf]
    %v223 = vld [vmem:[#allocation5 + $0x45c] sm:$0xff]
    %v224 = vld [vmem:[#allocation5 + $0x464] sm:$0xff]
    %v225 = vld [vmem:[#allocation5 + $0x46c] sm:$0xff]
    %v226 = vld [vmem:[#allocation5 + $0x474] sm:$0xff]
    %v227 = vld [vmem:[#allocation5 + $0x47c] sm:$0xf]
    %v228 = vld [vmem:[#allocation5 + $0x480] sm:$0xff]
    %v229 = vld [vmem:[#allocation5 + $0x488] sm:$0xff]
    %v230 = vld [vmem:[#allocation5 + $0x490] sm:$0xff]
    %v231 = vld [vmem:[#allocation5 + $0x498] sm:$0xff]
    %v232 = vld [vmem:[#allocation5 + $0x4a0] sm:$0xf]
    %v233 = vld [vmem:[#allocation5 + $0x4a4] sm:$0xff]
    %v234 = vld [vmem:[#allocation5 + $0x4ac] sm:$0xff]
    %v235 = vld [vmem:[#allocation5 + $0x4b4] sm:$0xff]
    %v236 = vld [vmem:[#allocation5 + $0x4bc] sm:$0xff]
    %v237 = vld [vmem:[#allocation5 + $0x4c4] sm:$0xf]
    %v238 = vld [vmem:[#allocation5 + $0x4c8] sm:$0xff]
    %v239 = vld [vmem:[#allocation5 + $0x4d0] sm:$0xff]
    %v240 = vld [vmem:[#allocation5 + $0x4d8] sm:$0xff]
    %v241 = vld [vmem:[#allocation5 + $0x4e0] sm:$0xff]
    %v242 = vld [vmem:[#allocation5 + $0x4e8] sm:$0xf]
    %v243 = vld [vmem:[#allocation5 + $0x4ec] sm:$0xff]
    %v244 = vld [vmem:[#allocation5 + $0x4f4] sm:$0xff]
    %v245 = vld [vmem:[#allocation5 + $0x4fc] sm:$0xff]
    %v246 = vld [vmem:[#allocation5 + $0x504] sm:$0xff]
    %v247 = vld [vmem:[#allocation5 + $0x50c] sm:$0xf]
    %v248 = vld [vmem:[#allocation5 + $0x510] sm:$0xff]
    %v249 = vld [vmem:[#allocation5 + $0x518] sm:$0xff]
    %v250 = vld [vmem:[#allocation5 + $0x520] sm:$0xff]
    %v251 = vld [vmem:[#allocation5 + $0x528] sm:$0xff]
    %v252 = vld [vmem:[#allocation5 + $0x530] sm:$0xf]
    %v253 = vld [vmem:[#allocation5 + $0x534] sm:$0xff]
    %v254 = vld [vmem:[#allocation5 + $0x53c] sm:$0xff]
    %v255 = vld [vmem:[#allocation5 + $0x544] sm:$0xff]
    %v256 = vld [vmem:[#allocation5 + $0x54c] sm:$0xff]
    %v257 = vld [vmem:[#allocation5 + $0x554] sm:$0xf]
    %v258 = vld [vmem:[#allocation5 + $0x558] sm:$0xff]
    %v259 = vld [vmem:[#allocation5 + $0x560] sm:$0xff]
    %v260 = vld [vmem:[#allocation5 + $0x568] sm:$0xff]
    %v261 = vld [vmem:[#allocation5 + $0x570] sm:$0xff]
    %v262 = vld [vmem:[#allocation5 + $0x578] sm:$0xf]
    %v263 = vld [vmem:[#allocation5 + $0x57c] sm:$0xff]
    %v264 = vld [vmem:[#allocation5 + $0x584] sm:$0xff]
    %v265 = vld [vmem:[#allocation5 + $0x58c] sm:$0xff]
    %v266 = vld [vmem:[#allocation5 + $0x594] sm:$0xff]
    %v267 = vld [vmem:[#allocation5 + $0x59c] sm:$0xf]
    %v268 = vld [vmem:[#allocation5 + $0x5a0] sm:$0xff]
    %v269 = vld [vmem:[#allocation5 + $0x5a8] sm:$0xff]
    %v270 = vld [vmem:[#allocation5 + $0x5b0] sm:$0xff]
    %v271 = vld [vmem:[#allocation5 + $0x5b8] sm:$0xff]
    %v272 = vld [vmem:[#allocation5 + $0x5c0] sm:$0xf]
    %v273 = vld [vmem:[#allocation5 + $0x5c4] sm:$0xff]
    %v274 = vld [vmem:[#allocation5 + $0x5cc] sm:$0xff]
    %v275 = vld [vmem:[#allocation5 + $0x5d4] sm:$0xff]
    %v276 = vld [vmem:[#allocation5 + $0x5dc] sm:$0xff]
    %v277 = vld [vmem:[#allocation5 + $0x5e4] sm:$0xf]
    %v278 = vld [vmem:[#allocation5 + $0x5e8] sm:$0xff]
    %v279 = vld [vmem:[#allocation5 + $0x5f0] sm:$0xff]
    %v280 = vld [vmem:[#allocation5 + $0x5f8] sm:$0xff]
    %v281 = vld [vmem:[#allocation5 + $0x600] sm:$0xff]
    %v282 = vld [vmem:[#allocation5 + $0x608] sm:$0xf]
    %v283 = vld [vmem:[#allocation5 + $0x60c] sm:$0xff]
    %v284 = vld [vmem:[#allocation5 + $0x614] sm:$0xff]
    %v285 = vld [vmem:[#allocation5 + $0x61c] sm:$0xff]
    %v286 = vld [vmem:[#allocation5 + $0x624] sm:$0xff]
    %v287 = vld [vmem:[#allocation5 + $0x62c] sm:$0xf]
    %v288 = vld [vmem:[#allocation5 + $0x630] sm:$0xff]
    %v289 = vld [vmem:[#allocation5 + $0x638] sm:$0xff]
    %v290 = vld [vmem:[#allocation5 + $0x640] sm:$0xff]
    %v291 = vld [vmem:[#allocation5 + $0x648] sm:$0xff]
    %v292 = vld [vmem:[#allocation5 + $0x650] sm:$0xf]
    %v293 = vld [vmem:[#allocation5 + $0x654] sm:$0xff]
    %v294 = vld [vmem:[#allocation5 + $0x65c] sm:$0xff]
    %v295 = vld [vmem:[#allocation5 + $0x664] sm:$0xff]
    %v296 = vld [vmem:[#allocation5 + $0x66c] sm:$0xff]
    %v297 = vld [vmem:[#allocation5 + $0x674] sm:$0xf]
    %v298 = vld [vmem:[#allocation5 + $0x678] sm:$0xff]
    %v299 = vld [vmem:[#allocation5 + $0x680] sm:$0xff]
    %v300 = vld [vmem:[#allocation5 + $0x688] sm:$0xff]
    %v301 = vld [vmem:[#allocation5 + $0x690] sm:$0xff]
    %v302 = vld [vmem:[#allocation5 + $0x698] sm:$0xf]
    %v303 = vld [vmem:[#allocation5 + $0x69c] sm:$0xff]
    %v304 = vld [vmem:[#allocation5 + $0x6a4] sm:$0xff]
    %v305 = vld [vmem:[#allocation5 + $0x6ac] sm:$0xff]
    %v306 = vld [vmem:[#allocation5 + $0x6b4] sm:$0xff]
    %v307 = vld [vmem:[#allocation5 + $0x6bc] sm:$0xf]
    %v316 = vunpack.c.l.b16 %v60
    %v317 = vunpack.c.h.b16 %v60
    %v318 = vunpack.c.l.b16 %v61
    %v319 = vunpack.c.l.b16 %v62
    %v320 = vunpack.c.h.b16 %v62
    %v321 = vunpack.c.l.b16 %v63
    %v322 = vunpack.c.l.b16 %v64
    %v323 = vunpack.c.h.b16 %v64
    %v324 = vunpack.c.l.b16 %v65
    %v325 = vunpack.c.l.b16 %v66
    %v326 = vunpack.c.h.b16 %v66
    %v327 = vunpack.c.l.b16 %v67
    %v328 = vpack.c.b16 %v319, %v316
    %v329 = vpack.c.b16 %v320, %v317
    %v330 = vpack.c.b16 %v321, %v318
    %v331 = vpack.c.b16 %v325, %v322
    %v332 = vpack.c.b16 %v326, %v323
    %v333 = vpack.c.b16 %v327, %v324
    %v580 = vunpack.c.l.b16 %v68
    %v581 = vunpack.c.h.b16 %v68
    %v582 = vunpack.c.l.b16 %v69
    %v583 = vunpack.c.h.b16 %v69
    %v584 = vunpack.c.l.b16 %v70
    %v585 = vunpack.c.h.b16 %v70
    %v586 = vunpack.c.l.b16 %v71
    %v587 = vunpack.c.h.b16 %v71
    %v588 = vunpack.c.l.b16 %v72
    %v589 = vunpack.c.l.b16 %v73
    %v590 = vunpack.c.h.b16 %v73
    %v591 = vunpack.c.l.b16 %v74
    %v592 = vunpack.c.h.b16 %v74
    %v593 = vunpack.c.l.b16 %v75
    %v594 = vunpack.c.h.b16 %v75
    %v595 = vunpack.c.l.b16 %v76
    %v596 = vunpack.c.h.b16 %v76
    %v597 = vunpack.c.l.b16 %v77
    %v598 = vunpack.c.l.b16 %v78
    %v599 = vunpack.c.h.b16 %v78
    %v600 = vunpack.c.l.b16 %v79
    %v601 = vunpack.c.h.b16 %v79
    %v602 = vunpack.c.l.b16 %v80
    %v603 = vunpack.c.h.b16 %v80
    %v604 = vunpack.c.l.b16 %v81
    %v605 = vunpack.c.h.b16 %v81
    %v606 = vunpack.c.l.b16 %v82
    %v607 = vunpack.c.l.b16 %v83
    %v608 = vunpack.c.h.b16 %v83
    %v609 = vunpack.c.l.b16 %v84
    %v610 = vunpack.c.h.b16 %v84
    %v611 = vunpack.c.l.b16 %v85
    %v612 = vunpack.c.h.b16 %v85
    %v613 = vunpack.c.l.b16 %v86
    %v614 = vunpack.c.h.b16 %v86
    %v615 = vunpack.c.l.b16 %v87
    %v616 = vunpack.c.l.b16 %v88
    %v617 = vunpack.c.h.b16 %v88
    %v618 = vunpack.c.l.b16 %v89
    %v619 = vunpack.c.h.b16 %v89
    %v620 = vunpack.c.l.b16 %v90
    %v621 = vunpack.c.h.b16 %v90
    %v622 = vunpack.c.l.b16 %v91
    %v623 = vunpack.c.h.b16 %v91
    %v624 = vunpack.c.l.b16 %v92
    %v625 = vunpack.c.l.b16 %v93
    %v626 = vunpack.c.h.b16 %v93
    %v627 = vunpack.c.l.b16 %v94
    %v628 = vunpack.c.h.b16 %v94
    %v629 = vunpack.c.l.b16 %v95
    %v630 = vunpack.c.h.b16 %v95
    %v631 = vunpack.c.l.b16 %v96
    %v632 = vunpack.c.h.b16 %v96
    %v633 = vunpack.c.l.b16 %v97
    %v634 = vunpack.c.l.b16 %v98
    %v635 = vunpack.c.h.b16 %v98
    %v636 = vunpack.c.l.b16 %v99
    %v637 = vunpack.c.h.b16 %v99
    %v638 = vunpack.c.l.b16 %v100
    %v639 = vunpack.c.h.b16 %v100
    %v640 = vunpack.c.l.b16 %v101
    %v641 = vunpack.c.h.b16 %v101
    %v642 = vunpack.c.l.b16 %v102
    %v643 = vunpack.c.l.b16 %v103
    %v644 = vunpack.c.h.b16 %v103
    %v645 = vunpack.c.l.b16 %v104
    %v646 = vunpack.c.h.b16 %v104
    %v647 = vunpack.c.l.b16 %v105
    %v648 = vunpack.c.h.b16 %v105
    %v649 = vunpack.c.l.b16 %v106
    %v650 = vunpack.c.h.b16 %v106
    %v651 = vunpack.c.l.b16 %v107
    %v652 = vunpack.c.l.b16 %v108
    %v653 = vunpack.c.h.b16 %v108
    %v654 = vunpack.c.l.b16 %v109
    %v655 = vunpack.c.h.b16 %v109
    %v656 = vunpack.c.l.b16 %v110
    %v657 = vunpack.c.h.b16 %v110
    %v658 = vunpack.c.l.b16 %v111
    %v659 = vunpack.c.h.b16 %v111
    %v660 = vunpack.c.l.b16 %v112
    %v661 = vunpack.c.l.b16 %v113
    %v662 = vunpack.c.h.b16 %v113
    %v663 = vunpack.c.l.b16 %v114
    %v664 = vunpack.c.h.b16 %v114
    %v665 = vunpack.c.l.b16 %v115
    %v666 = vunpack.c.h.b16 %v115
    %v667 = vunpack.c.l.b16 %v116
    %v668 = vunpack.c.h.b16 %v116
    %v669 = vunpack.c.l.b16 %v117
    %v670 = vunpack.c.l.b16 %v118
    %v671 = vunpack.c.h.b16 %v118
    %v672 = vunpack.c.l.b16 %v119
    %v673 = vunpack.c.h.b16 %v119
    %v674 = vunpack.c.l.b16 %v120
    %v675 = vunpack.c.h.b16 %v120
    %v676 = vunpack.c.l.b16 %v121
    %v677 = vunpack.c.h.b16 %v121
    %v678 = vunpack.c.l.b16 %v122
    %v679 = vunpack.c.l.b16 %v123
    %v680 = vunpack.c.h.b16 %v123
    %v681 = vunpack.c.l.b16 %v124
    %v682 = vunpack.c.h.b16 %v124
    %v683 = vunpack.c.l.b16 %v125
    %v684 = vunpack.c.h.b16 %v125
    %v685 = vunpack.c.l.b16 %v126
    %v686 = vunpack.c.h.b16 %v126
    %v687 = vunpack.c.l.b16 %v127
    %v688 = vunpack.c.l.b16 %v128
    %v689 = vunpack.c.h.b16 %v128
    %v690 = vunpack.c.l.b16 %v129
    %v691 = vunpack.c.h.b16 %v129
    %v692 = vunpack.c.l.b16 %v130
    %v693 = vunpack.c.h.b16 %v130
    %v694 = vunpack.c.l.b16 %v131
    %v695 = vunpack.c.h.b16 %v131
    %v696 = vunpack.c.l.b16 %v132
    %v697 = vunpack.c.l.b16 %v133
    %v698 = vunpack.c.h.b16 %v133
    %v699 = vunpack.c.l.b16 %v134
    %v700 = vunpack.c.h.b16 %v134
    %v701 = vunpack.c.l.b16 %v135
    %v702 = vunpack.c.h.b16 %v135
    %v703 = vunpack.c.l.b16 %v136
    %v704 = vunpack.c.h.b16 %v136
    %v705 = vunpack.c.l.b16 %v137
    %v706 = vunpack.c.l.b16 %v138
    %v707 = vunpack.c.h.b16 %v138
    %v708 = vunpack.c.l.b16 %v139
    %v709 = vunpack.c.h.b16 %v139
    %v710 = vunpack.c.l.b16 %v140
    %v711 = vunpack.c.h.b16 %v140
    %v712 = vunpack.c.l.b16 %v141
    %v713 = vunpack.c.h.b16 %v141
    %v714 = vunpack.c.l.b16 %v142
    %v715 = vunpack.c.l.b16 %v143
    %v716 = vunpack.c.h.b16 %v143
    %v717 = vunpack.c.l.b16 %v144
    %v718 = vunpack.c.h.b16 %v144
    %v719 = vunpack.c.l.b16 %v145
    %v720 = vunpack.c.h.b16 %v145
    %v721 = vunpack.c.l.b16 %v146
    %v722 = vunpack.c.h.b16 %v146
    %v723 = vunpack.c.l.b16 %v147
    %v724 = vunpack.c.l.b16 %v148
    %v725 = vunpack.c.h.b16 %v148
    %v726 = vunpack.c.l.b16 %v149
    %v727 = vunpack.c.h.b16 %v149
    %v728 = vunpack.c.l.b16 %v150
    %v729 = vunpack.c.h.b16 %v150
    %v730 = vunpack.c.l.b16 %v151
    %v731 = vunpack.c.h.b16 %v151
    %v732 = vunpack.c.l.b16 %v152
    %v733 = vunpack.c.l.b16 %v153
    %v734 = vunpack.c.h.b16 %v153
    %v735 = vunpack.c.l.b16 %v154
    %v736 = vunpack.c.h.b16 %v154
    %v737 = vunpack.c.l.b16 %v155
    %v738 = vunpack.c.h.b16 %v155
    %v739 = vunpack.c.l.b16 %v156
    %v740 = vunpack.c.h.b16 %v156
    %v741 = vunpack.c.l.b16 %v157
    %v742 = vunpack.c.l.b16 %v158
    %v743 = vunpack.c.h.b16 %v158
    %v744 = vunpack.c.l.b16 %v159
    %v745 = vunpack.c.h.b16 %v159
    %v746 = vunpack.c.l.b16 %v160
    %v747 = vunpack.c.h.b16 %v160
    %v748 = vunpack.c.l.b16 %v161
    %v749 = vunpack.c.h.b16 %v161
    %v750 = vunpack.c.l.b16 %v162
    %v751 = vunpack.c.l.b16 %v163
    %v752 = vunpack.c.h.b16 %v163
    %v753 = vunpack.c.l.b16 %v164
    %v754 = vunpack.c.h.b16 %v164
    %v755 = vunpack.c.l.b16 %v165
    %v756 = vunpack.c.h.b16 %v165
    %v757 = vunpack.c.l.b16 %v166
    %v758 = vunpack.c.h.b16 %v166
    %v759 = vunpack.c.l.b16 %v167
    %v760 = vunpack.c.l.b16 %v168
    %v761 = vunpack.c.h.b16 %v168
    %v762 = vunpack.c.l.b16 %v169
    %v763 = vunpack.c.h.b16 %v169
    %v764 = vunpack.c.l.b16 %v170
    %v765 = vunpack.c.h.b16 %v170
    %v766 = vunpack.c.l.b16 %v171
    %v767 = vunpack.c.h.b16 %v171
    %v768 = vunpack.c.l.b16 %v172
    %v769 = vunpack.c.l.b16 %v173
    %v770 = vunpack.c.h.b16 %v173
    %v771 = vunpack.c.l.b16 %v174
    %v772 = vunpack.c.h.b16 %v174
    %v773 = vunpack.c.l.b16 %v175
    %v774 = vunpack.c.h.b16 %v175
    %v775 = vunpack.c.l.b16 %v176
    %v776 = vunpack.c.h.b16 %v176
    %v777 = vunpack.c.l.b16 %v177
    %v778 = vunpack.c.l.b16 %v178
    %v779 = vunpack.c.h.b16 %v178
    %v780 = vunpack.c.l.b16 %v179
    %v781 = vunpack.c.h.b16 %v179
    %v782 = vunpack.c.l.b16 %v180
    %v783 = vunpack.c.h.b16 %v180
    %v784 = vunpack.c.l.b16 %v181
    %v785 = vunpack.c.h.b16 %v181
    %v786 = vunpack.c.l.b16 %v182
    %v787 = vunpack.c.l.b16 %v183
    %v788 = vunpack.c.h.b16 %v183
    %v789 = vunpack.c.l.b16 %v184
    %v790 = vunpack.c.h.b16 %v184
    %v791 = vunpack.c.l.b16 %v185
    %v792 = vunpack.c.h.b16 %v185
    %v793 = vunpack.c.l.b16 %v186
    %v794 = vunpack.c.h.b16 %v186
    %v795 = vunpack.c.l.b16 %v187
    %v796 = vunpack.c.l.b16 %v188
    %v797 = vunpack.c.h.b16 %v188
    %v798 = vunpack.c.l.b16 %v189
    %v799 = vunpack.c.h.b16 %v189
    %v800 = vunpack.c.l.b16 %v190
    %v801 = vunpack.c.h.b16 %v190
    %v802 = vunpack.c.l.b16 %v191
    %v803 = vunpack.c.h.b16 %v191
    %v804 = vunpack.c.l.b16 %v192
    %v805 = vunpack.c.l.b16 %v193
    %v806 = vunpack.c.h.b16 %v193
    %v807 = vunpack.c.l.b16 %v194
    %v808 = vunpack.c.h.b16 %v194
    %v809 = vunpack.c.l.b16 %v195
    %v810 = vunpack.c.h.b16 %v195
    %v811 = vunpack.c.l.b16 %v196
    %v812 = vunpack.c.h.b16 %v196
    %v813 = vunpack.c.l.b16 %v197
    %v814 = vunpack.c.l.b16 %v198
    %v815 = vunpack.c.h.b16 %v198
    %v816 = vunpack.c.l.b16 %v199
    %v817 = vunpack.c.h.b16 %v199
    %v818 = vunpack.c.l.b16 %v200
    %v819 = vunpack.c.h.b16 %v200
    %v820 = vunpack.c.l.b16 %v201
    %v821 = vunpack.c.h.b16 %v201
    %v822 = vunpack.c.l.b16 %v202
    %v823 = vunpack.c.l.b16 %v203
    %v824 = vunpack.c.h.b16 %v203
    %v825 = vunpack.c.l.b16 %v204
    %v826 = vunpack.c.h.b16 %v204
    %v827 = vunpack.c.l.b16 %v205
    %v828 = vunpack.c.h.b16 %v205
    %v829 = vunpack.c.l.b16 %v206
    %v830 = vunpack.c.h.b16 %v206
    %v831 = vunpack.c.l.b16 %v207
    %v832 = vunpack.c.l.b16 %v208
    %v833 = vunpack.c.h.b16 %v208
    %v834 = vunpack.c.l.b16 %v209
    %v835 = vunpack.c.h.b16 %v209
    %v836 = vunpack.c.l.b16 %v210
    %v837 = vunpack.c.h.b16 %v210
    %v838 = vunpack.c.l.b16 %v211
    %v839 = vunpack.c.h.b16 %v211
    %v840 = vunpack.c.l.b16 %v212
    %v841 = vunpack.c.l.b16 %v213
    %v842 = vunpack.c.h.b16 %v213
    %v843 = vunpack.c.l.b16 %v214
    %v844 = vunpack.c.h.b16 %v214
    %v845 = vunpack.c.l.b16 %v215
    %v846 = vunpack.c.h.b16 %v215
    %v847 = vunpack.c.l.b16 %v216
    %v848 = vunpack.c.h.b16 %v216
    %v849 = vunpack.c.l.b16 %v217
    %v850 = vunpack.c.l.b16 %v218
    %v851 = vunpack.c.h.b16 %v218
    %v852 = vunpack.c.l.b16 %v219
    %v853 = vunpack.c.h.b16 %v219
    %v854 = vunpack.c.l.b16 %v220
    %v855 = vunpack.c.h.b16 %v220
    %v856 = vunpack.c.l.b16 %v221
    %v857 = vunpack.c.h.b16 %v221
    %v858 = vunpack.c.l.b16 %v222
    %v859 = vunpack.c.l.b16 %v223
    %v860 = vunpack.c.h.b16 %v223
    %v861 = vunpack.c.l.b16 %v224
    %v862 = vunpack.c.h.b16 %v224
    %v863 = vunpack.c.l.b16 %v225
    %v864 = vunpack.c.h.b16 %v225
    %v865 = vunpack.c.l.b16 %v226
    %v866 = vunpack.c.h.b16 %v226
    %v867 = vunpack.c.l.b16 %v227
    %v868 = vunpack.c.l.b16 %v228
    %v869 = vunpack.c.h.b16 %v228
    %v870 = vunpack.c.l.b16 %v229
    %v871 = vunpack.c.h.b16 %v229
    %v872 = vunpack.c.l.b16 %v230
    %v873 = vunpack.c.h.b16 %v230
    %v874 = vunpack.c.l.b16 %v231
    %v875 = vunpack.c.h.b16 %v231
    %v876 = vunpack.c.l.b16 %v232
    %v877 = vunpack.c.l.b16 %v233
    %v878 = vunpack.c.h.b16 %v233
    %v879 = vunpack.c.l.b16 %v234
    %v880 = vunpack.c.h.b16 %v234
    %v881 = vunpack.c.l.b16 %v235
    %v882 = vunpack.c.h.b16 %v235
    %v883 = vunpack.c.l.b16 %v236
    %v884 = vunpack.c.h.b16 %v236
    %v885 = vunpack.c.l.b16 %v237
    %v886 = vunpack.c.l.b16 %v238
    %v887 = vunpack.c.h.b16 %v238
    %v888 = vunpack.c.l.b16 %v239
    %v889 = vunpack.c.h.b16 %v239
    %v890 = vunpack.c.l.b16 %v240
    %v891 = vunpack.c.h.b16 %v240
    %v892 = vunpack.c.l.b16 %v241
    %v893 = vunpack.c.h.b16 %v241
    %v894 = vunpack.c.l.b16 %v242
    %v895 = vunpack.c.l.b16 %v243
    %v896 = vunpack.c.h.b16 %v243
    %v897 = vunpack.c.l.b16 %v244
    %v898 = vunpack.c.h.b16 %v244
    %v899 = vunpack.c.l.b16 %v245
    %v900 = vunpack.c.h.b16 %v245
    %v901 = vunpack.c.l.b16 %v246
    %v902 = vunpack.c.h.b16 %v246
    %v903 = vunpack.c.l.b16 %v247
    %v904 = vunpack.c.l.b16 %v248
    %v905 = vunpack.c.h.b16 %v248
    %v906 = vunpack.c.l.b16 %v249
    %v907 = vunpack.c.h.b16 %v249
    %v908 = vunpack.c.l.b16 %v250
    %v909 = vunpack.c.h.b16 %v250
    %v910 = vunpack.c.l.b16 %v251
    %v911 = vunpack.c.h.b16 %v251
    %v912 = vunpack.c.l.b16 %v252
    %v913 = vunpack.c.l.b16 %v253
    %v914 = vunpack.c.h.b16 %v253
    %v915 = vunpack.c.l.b16 %v254
    %v916 = vunpack.c.h.b16 %v254
    %v917 = vunpack.c.l.b16 %v255
    %v918 = vunpack.c.h.b16 %v255
    %v919 = vunpack.c.l.b16 %v256
    %v920 = vunpack.c.h.b16 %v256
    %v921 = vunpack.c.l.b16 %v257
    %v922 = vunpack.c.l.b16 %v258
    %v923 = vunpack.c.h.b16 %v258
    %v924 = vunpack.c.l.b16 %v259
    %v925 = vunpack.c.h.b16 %v259
    %v926 = vunpack.c.l.b16 %v260
    %v927 = vunpack.c.h.b16 %v260
    %v928 = vunpack.c.l.b16 %v261
    %v929 = vunpack.c.h.b16 %v261
    %v930 = vunpack.c.l.b16 %v262
    %v931 = vunpack.c.l.b16 %v263
    %v932 = vunpack.c.h.b16 %v263
    %v933 = vunpack.c.l.b16 %v264
    %v934 = vunpack.c.h.b16 %v264
    %v935 = vunpack.c.l.b16 %v265
    %v936 = vunpack.c.h.b16 %v265
    %v937 = vunpack.c.l.b16 %v266
    %v938 = vunpack.c.h.b16 %v266
    %v939 = vunpack.c.l.b16 %v267
    %v940 = vunpack.c.l.b16 %v268
    %v941 = vunpack.c.h.b16 %v268
    %v942 = vunpack.c.l.b16 %v269
    %v943 = vunpack.c.h.b16 %v269
    %v944 = vunpack.c.l.b16 %v270
    %v945 = vunpack.c.h.b16 %v270
    %v946 = vunpack.c.l.b16 %v271
    %v947 = vunpack.c.h.b16 %v271
    %v948 = vunpack.c.l.b16 %v272
    %v949 = vunpack.c.l.b16 %v273
    %v950 = vunpack.c.h.b16 %v273
    %v951 = vunpack.c.l.b16 %v274
    %v952 = vunpack.c.h.b16 %v274
    %v953 = vunpack.c.l.b16 %v275
    %v954 = vunpack.c.h.b16 %v275
    %v955 = vunpack.c.l.b16 %v276
    %v956 = vunpack.c.h.b16 %v276
    %v957 = vunpack.c.l.b16 %v277
    %v958 = vunpack.c.l.b16 %v278
    %v959 = vunpack.c.h.b16 %v278
    %v960 = vunpack.c.l.b16 %v279
    %v961 = vunpack.c.h.b16 %v279
    %v962 = vunpack.c.l.b16 %v280
    %v963 = vunpack.c.h.b16 %v280
    %v964 = vunpack.c.l.b16 %v281
    %v965 = vunpack.c.h.b16 %v281
    %v966 = vunpack.c.l.b16 %v282
    %v967 = vunpack.c.l.b16 %v283
    %v968 = vunpack.c.h.b16 %v283
    %v969 = vunpack.c.l.b16 %v284
    %v970 = vunpack.c.h.b16 %v284
    %v971 = vunpack.c.l.b16 %v285
    %v972 = vunpack.c.h.b16 %v285
    %v973 = vunpack.c.l.b16 %v286
    %v974 = vunpack.c.h.b16 %v286
    %v975 = vunpack.c.l.b16 %v287
    %v976 = vunpack.c.l.b16 %v288
    %v977 = vunpack.c.h.b16 %v288
    %v978 = vunpack.c.l.b16 %v289
    %v979 = vunpack.c.h.b16 %v289
    %v980 = vunpack.c.l.b16 %v290
    %v981 = vunpack.c.h.b16 %v290
    %v982 = vunpack.c.l.b16 %v291
    %v983 = vunpack.c.h.b16 %v291
    %v984 = vunpack.c.l.b16 %v292
    %v985 = vunpack.c.l.b16 %v293
    %v986 = vunpack.c.h.b16 %v293
    %v987 = vunpack.c.l.b16 %v294
    %v988 = vunpack.c.h.b16 %v294
    %v989 = vunpack.c.l.b16 %v295
    %v990 = vunpack.c.h.b16 %v295
    %v991 = vunpack.c.l.b16 %v296
    %v992 = vunpack.c.h.b16 %v296
    %v993 = vunpack.c.l.b16 %v297
    %v994 = vunpack.c.l.b16 %v298
    %v995 = vunpack.c.h.b16 %v298
    %v996 = vunpack.c.l.b16 %v299
    %v997 = vunpack.c.h.b16 %v299
    %v998 = vunpack.c.l.b16 %v300
    %v999 = vunpack.c.h.b16 %v300
    %v1000 = vunpack.c.l.b16 %v301
    %v1001 = vunpack.c.h.b16 %v301
    %v1002 = vunpack.c.l.b16 %v302
    %v1003 = vunpack.c.l.b16 %v303
    %v1004 = vunpack.c.h.b16 %v303
    %v1005 = vunpack.c.l.b16 %v304
    %v1006 = vunpack.c.h.b16 %v304
    %v1007 = vunpack.c.l.b16 %v305
    %v1008 = vunpack.c.h.b16 %v305
    %v1009 = vunpack.c.l.b16 %v306
    %v1010 = vunpack.c.h.b16 %v306
    %v1011 = vunpack.c.l.b16 %v307
    %v1012 = vpack.c.b16 %v589, %v580
    %v1013 = vpack.c.b16 %v590, %v581
    %v1014 = vpack.c.b16 %v591, %v582
    %v1015 = vpack.c.b16 %v592, %v583
    %v1016 = vpack.c.b16 %v593, %v584
    %v1017 = vpack.c.b16 %v594, %v585
    %v1018 = vpack.c.b16 %v595, %v586
    %v1019 = vpack.c.b16 %v596, %v587
    %v1020 = vpack.c.b16 %v597, %v588
    %v1021 = vpack.c.b16 %v607, %v598
    %v1022 = vpack.c.b16 %v608, %v599
    %v1023 = vpack.c.b16 %v609, %v600
    %v1024 = vpack.c.b16 %v610, %v601
    %v1025 = vpack.c.b16 %v611, %v602
    %v1026 = vpack.c.b16 %v612, %v603
    %v1027 = vpack.c.b16 %v613, %v604
    %v1028 = vpack.c.b16 %v614, %v605
    %v1029 = vpack.c.b16 %v615, %v606
    %v1030 = vpack.c.b16 %v625, %v616
    %v1031 = vpack.c.b16 %v626, %v617
    %v1032 = vpack.c.b16 %v627, %v618
    %v1033 = vpack.c.b16 %v628, %v619
    %v1034 = vpack.c.b16 %v629, %v620
    %v1035 = vpack.c.b16 %v630, %v621
    %v1036 = vpack.c.b16 %v631, %v622
    %v1037 = vpack.c.b16 %v632, %v623
    %v1038 = vpack.c.b16 %v633, %v624
    %v1039 = vpack.c.b16 %v643, %v634
    %v1040 = vpack.c.b16 %v644, %v635
    %v1041 = vpack.c.b16 %v645, %v636
    %v1042 = vpack.c.b16 %v646, %v637
    %v1043 = vpack.c.b16 %v647, %v638
    %v1044 = vpack.c.b16 %v648, %v639
    %v1045 = vpack.c.b16 %v649, %v640
    %v1046 = vpack.c.b16 %v650, %v641
    %v1047 = vpack.c.b16 %v651, %v642
    %v1048 = vpack.c.b16 %v661, %v652
    %v1049 = vpack.c.b16 %v662, %v653
    %v1050 = vpack.c.b16 %v663, %v654
    %v1051 = vpack.c.b16 %v664, %v655
    %v1052 = vpack.c.b16 %v665, %v656
    %v1053 = vpack.c.b16 %v666, %v657
    %v1054 = vpack.c.b16 %v667, %v658
    %v1055 = vpack.c.b16 %v668, %v659
    %v1056 = vpack.c.b16 %v669, %v660
    %v1057 = vpack.c.b16 %v679, %v670
    %v1058 = vpack.c.b16 %v680, %v671
    %v1059 = vpack.c.b16 %v681, %v672
    %v1060 = vpack.c.b16 %v682, %v673
    %v1061 = vpack.c.b16 %v683, %v674
    %v1062 = vpack.c.b16 %v684, %v675
    %v1063 = vpack.c.b16 %v685, %v676
    %v1064 = vpack.c.b16 %v686, %v677
    %v1065 = vpack.c.b16 %v687, %v678
    %v1066 = vpack.c.b16 %v697, %v688
    %v1067 = vpack.c.b16 %v698, %v689
    %v1068 = vpack.c.b16 %v699, %v690
    %v1069 = vpack.c.b16 %v700, %v691
    %v1070 = vpack.c.b16 %v701, %v692
    %v1071 = vpack.c.b16 %v702, %v693
    %v1072 = vpack.c.b16 %v703, %v694
    %v1073 = vpack.c.b16 %v704, %v695
    %v1074 = vpack.c.b16 %v705, %v696
    %v1075 = vpack.c.b16 %v715, %v706
    %v1076 = vpack.c.b16 %v716, %v707
    %v1077 = vpack.c.b16 %v717, %v708
    %v1078 = vpack.c.b16 %v718, %v709
    %v1079 = vpack.c.b16 %v719, %v710
    %v1080 = vpack.c.b16 %v720, %v711
    %v1081 = vpack.c.b16 %v721, %v712
    %v1082 = vpack.c.b16 %v722, %v713
    %v1083 = vpack.c.b16 %v723, %v714
    %v1084 = vpack.c.b16 %v733, %v724
    %v1085 = vpack.c.b16 %v734, %v725
    %v1086 = vpack.c.b16 %v735, %v726
    %v1087 = vpack.c.b16 %v736, %v727
    %v1088 = vpack.c.b16 %v737, %v728
    %v1089 = vpack.c.b16 %v738, %v729
    %v1090 = vpack.c.b16 %v739, %v730
    %v1091 = vpack.c.b16 %v740, %v731
    %v1092 = vpack.c.b16 %v741, %v732
    %v1093 = vpack.c.b16 %v751, %v742
    %v1094 = vpack.c.b16 %v752, %v743
    %v1095 = vpack.c.b16 %v753, %v744
    %v1096 = vpack.c.b16 %v754, %v745
    %v1097 = vpack.c.b16 %v755, %v746
    %v1098 = vpack.c.b16 %v756, %v747
    %v1099 = vpack.c.b16 %v757, %v748
    %v1100 = vpack.c.b16 %v758, %v749
    %v1101 = vpack.c.b16 %v759, %v750
    %v1102 = vpack.c.b16 %v769, %v760
    %v1103 = vpack.c.b16 %v770, %v761
    %v1104 = vpack.c.b16 %v771, %v762
    %v1105 = vpack.c.b16 %v772, %v763
    %v1106 = vpack.c.b16 %v773, %v764
    %v1107 = vpack.c.b16 %v774, %v765
    %v1108 = vpack.c.b16 %v775, %v766
    %v1109 = vpack.c.b16 %v776, %v767
    %v1110 = vpack.c.b16 %v777, %v768
    %v1111 = vpack.c.b16 %v787, %v778
    %v1112 = vpack.c.b16 %v788, %v779
    %v1113 = vpack.c.b16 %v789, %v780
    %v1114 = vpack.c.b16 %v790, %v781
    %v1115 = vpack.c.b16 %v791, %v782
    %v1116 = vpack.c.b16 %v792, %v783
    %v1117 = vpack.c.b16 %v793, %v784
    %v1118 = vpack.c.b16 %v794, %v785
    %v1119 = vpack.c.b16 %v795, %v786
    %v1120 = vpack.c.b16 %v805, %v796
    %v1121 = vpack.c.b16 %v806, %v797
    %v1122 = vpack.c.b16 %v807, %v798
    %v1123 = vpack.c.b16 %v808, %v799
    %v1124 = vpack.c.b16 %v809, %v800
    %v1125 = vpack.c.b16 %v810, %v801
    %v1126 = vpack.c.b16 %v811, %v802
    %v1127 = vpack.c.b16 %v812, %v803
    %v1128 = vpack.c.b16 %v813, %v804
    %v1129 = vpack.c.b16 %v823, %v814
    %v1130 = vpack.c.b16 %v824, %v815
    %v1131 = vpack.c.b16 %v825, %v816
    %v1132 = vpack.c.b16 %v826, %v817
    %v1133 = vpack.c.b16 %v827, %v818
    %v1134 = vpack.c.b16 %v828, %v819
    %v1135 = vpack.c.b16 %v829, %v820
    %v1136 = vpack.c.b16 %v830, %v821
    %v1137 = vpack.c.b16 %v831, %v822
    %v1138 = vpack.c.b16 %v841, %v832
    %v1139 = vpack.c.b16 %v842, %v833
    %v1140 = vpack.c.b16 %v843, %v834
    %v1141 = vpack.c.b16 %v844, %v835
    %v1142 = vpack.c.b16 %v845, %v836
    %v1143 = vpack.c.b16 %v846, %v837
    %v1144 = vpack.c.b16 %v847, %v838
    %v1145 = vpack.c.b16 %v848, %v839
    %v1146 = vpack.c.b16 %v849, %v840
    %v1147 = vpack.c.b16 %v859, %v850
    %v1148 = vpack.c.b16 %v860, %v851
    %v1149 = vpack.c.b16 %v861, %v852
    %v1150 = vpack.c.b16 %v862, %v853
    %v1151 = vpack.c.b16 %v863, %v854
    %v1152 = vpack.c.b16 %v864, %v855
    %v1153 = vpack.c.b16 %v865, %v856
    %v1154 = vpack.c.b16 %v866, %v857
    %v1155 = vpack.c.b16 %v867, %v858
    %v1156 = vpack.c.b16 %v877, %v868
    %v1157 = vpack.c.b16 %v878, %v869
    %v1158 = vpack.c.b16 %v879, %v870
    %v1159 = vpack.c.b16 %v880, %v871
    %v1160 = vpack.c.b16 %v881, %v872
    %v1161 = vpack.c.b16 %v882, %v873
    %v1162 = vpack.c.b16 %v883, %v874
    %v1163 = vpack.c.b16 %v884, %v875
    %v1164 = vpack.c.b16 %v885, %v876
    %v1165 = vpack.c.b16 %v895, %v886
    %v1166 = vpack.c.b16 %v896, %v887
    %v1167 = vpack.c.b16 %v897, %v888
    %v1168 = vpack.c.b16 %v898, %v889
    %v1169 = vpack.c.b16 %v899, %v890
    %v1170 = vpack.c.b16 %v900, %v891
    %v1171 = vpack.c.b16 %v901, %v892
    %v1172 = vpack.c.b16 %v902, %v893
    %v1173 = vpack.c.b16 %v903, %v894
    %v1174 = vpack.c.b16 %v913, %v904
    %v1175 = vpack.c.b16 %v914, %v905
    %v1176 = vpack.c.b16 %v915, %v906
    %v1177 = vpack.c.b16 %v916, %v907
    %v1178 = vpack.c.b16 %v917, %v908
    %v1179 = vpack.c.b16 %v918, %v909
    %v1180 = vpack.c.b16 %v919, %v910
    %v1181 = vpack.c.b16 %v920, %v911
    %v1182 = vpack.c.b16 %v921, %v912
    %v1183 = vpack.c.b16 %v931, %v922
    %v1184 = vpack.c.b16 %v932, %v923
    %v1185 = vpack.c.b16 %v933, %v924
    %v1186 = vpack.c.b16 %v934, %v925
    %v1187 = vpack.c.b16 %v935, %v926
    %v1188 = vpack.c.b16 %v936, %v927
    %v1189 = vpack.c.b16 %v937, %v928
    %v1190 = vpack.c.b16 %v938, %v929
    %v1191 = vpack.c.b16 %v939, %v930
    %v1192 = vpack.c.b16 %v949, %v940
    %v1193 = vpack.c.b16 %v950, %v941
    %v1194 = vpack.c.b16 %v951, %v942
    %v1195 = vpack.c.b16 %v952, %v943
    %v1196 = vpack.c.b16 %v953, %v944
    %v1197 = vpack.c.b16 %v954, %v945
    %v1198 = vpack.c.b16 %v955, %v946
    %v1199 = vpack.c.b16 %v956, %v947
    %v1200 = vpack.c.b16 %v957, %v948
    %v1201 = vpack.c.b16 %v967, %v958
    %v1202 = vpack.c.b16 %v968, %v959
    %v1203 = vpack.c.b16 %v969, %v960
    %v1204 = vpack.c.b16 %v970, %v961
    %v1205 = vpack.c.b16 %v971, %v962
    %v1206 = vpack.c.b16 %v972, %v963
    %v1207 = vpack.c.b16 %v973, %v964
    %v1208 = vpack.c.b16 %v974, %v965
    %v1209 = vpack.c.b16 %v975, %v966
    %v1210 = vpack.c.b16 %v985, %v976
    %v1211 = vpack.c.b16 %v986, %v977
    %v1212 = vpack.c.b16 %v987, %v978
    %v1213 = vpack.c.b16 %v988, %v979
    %v1214 = vpack.c.b16 %v989, %v980
    %v1215 = vpack.c.b16 %v990, %v981
    %v1216 = vpack.c.b16 %v991, %v982
    %v1217 = vpack.c.b16 %v992, %v983
    %v1218 = vpack.c.b16 %v993, %v984
    %v1219 = vpack.c.b16 %v1003, %v994
    %v1220 = vpack.c.b16 %v1004, %v995
    %v1221 = vpack.c.b16 %v1005, %v996
    %v1222 = vpack.c.b16 %v1006, %v997
    %v1223 = vpack.c.b16 %v1007, %v998
    %v1224 = vpack.c.b16 %v1008, %v999
    %v1225 = vpack.c.b16 %v1009, %v1000
    %v1226 = vpack.c.b16 %v1010, %v1001
    %v1227 = vpack.c.b16 %v1011, %v1002
    %1444 = vmatprep.subr.bf16.mxu0 %v1013
    %1445 = vmatpush1.bf16.msra.mxu0 %v1012
    %1446 = vmatprep.subr.bf16.mxu0 %v1022
    %1447 = vmatpush1.bf16.msra.mxu0 %v1021
    %1448 = vmatprep.subr.bf16.mxu0 %v1031
    %1449 = vmatpush1.bf16.msra.mxu0 %v1030
    %1450 = vmatprep.subr.bf16.mxu0 %v1040
    %1451 = vmatpush1.bf16.msra.mxu0 %v1039
    %1452 = vmatprep.subr.bf16.mxu0 %v1049
    %1453 = vmatpush1.bf16.msra.mxu0 %v1048
    %1454 = vmatprep.subr.bf16.mxu0 %v1058
    %1455 = vmatpush1.bf16.msra.mxu0 %v1057
    %1456 = vmatprep.subr.bf16.mxu0 %v1067
    %1457 = vmatpush1.bf16.msra.mxu0 %v1066
    %1458 = vmatprep.subr.bf16.mxu0 %v1076
    %1459 = vmatpush1.bf16.msra.mxu0 %v1075
    %1460 = vmatprep.subr.bf16.mxu0 %v1085
    %1461 = vmatpush1.bf16.msra.mxu0 %v1084
    %1462 = vmatprep.subr.bf16.mxu0 %v1094
    %1463 = vmatpush1.bf16.msra.mxu0 %v1093
    %1464 = vmatprep.subr.bf16.mxu0 %v1103
    %1465 = vmatpush1.bf16.msra.mxu0 %v1102
    %1466 = vmatprep.subr.bf16.mxu0 %v1112
    %1467 = vmatpush1.bf16.msra.mxu0 %v1111
    %1468 = vmatprep.subr.bf16.mxu0 %v1121
    %1469 = vmatpush1.bf16.msra.mxu0 %v1120
    %1470 = vmatprep.subr.bf16.mxu0 %v1130
    %1471 = vmatpush1.bf16.msra.mxu0 %v1129
    %1472 = vmatprep.subr.bf16.mxu0 %v1139
    %1473 = vmatpush1.bf16.msra.mxu0 %v1138
    %1474 = vmatprep.subr.bf16.mxu0 %v1148
    %1475 = vmatpush1.bf16.msra.mxu0 %v1147
    %1476 = vmatprep.mubr.bf16.mxu0 %v329
    %1477 = vmatmul.mubr.bf16.gmra.mrb[0].mxu0 %v328
    %v1478 = vpop.f32.mrb[0].mxu0
    %v1479 = vadd.f32 0.0, %v1478
    %v1480 = vpop.f32.mrb[0].mxu0
    %v1481 = vadd.f32 0.0, %v1480
    %v1482 = vpop.f32.mrb[0].mxu0
    %v1483 = vadd.f32 0.0, %v1482
    %v1484 = vpop.f32.mrb[0].mxu0
    %v1485 = vadd.f32 0.0, %v1484
    %1486 = vmatprep.mubr.bf16.mxu0 %v332
    %1487 = vmatmul.mubr.bf16.gmra.mrb[0].mxu0 %v331
    %v1488 = vpop.f32.mrb[0].mxu0
    %v1489 = vadd.f32 0.0, %v1488
    %v1490 = vpop.f32.mrb[0].mxu0
    %v1491 = vadd.f32 0.0, %v1490
    %v1492 = vpop.f32.mrb[0].mxu0
    %v1493 = vadd.f32 0.0, %v1492
    %v1494 = vpop.f32.mrb[0].mxu0
    %v1495 = vadd.f32 0.0, %v1494
    %1496 = vdwg.mxu0
    %1497 = vmatprep.subr.bf16.mxu0 %v1157
    %1498 = vmatpush1.bf16.msra.mxu0 %v1156
    %1499 = vmatprep.subr.bf16.mxu0 %v1166
    %1500 = vmatpush1.bf16.msra.mxu0 %v1165
    %1501 = vmatprep.subr.bf16.mxu0 %v1175
    %1502 = vmatpush1.bf16.msra.mxu0 %v1174
    %1503 = vmatprep.subr.bf16.mxu0 %v1184
    %1504 = vmatpush1.bf16.msra.mxu0 %v1183
    %1505 = vmatprep.subr.bf16.mxu0 %v1193
    %1506 = vmatpush1.bf16.msra.mxu0 %v1192
    %1507 = vmatprep.subr.bf16.mxu0 %v1202
    %1508 = vmatpush1.bf16.msra.mxu0 %v1201
    %1509 = vmatprep.subr.bf16.mxu0 %v1211
    %1510 = vmatpush1.bf16.msra.mxu0 %v1210
    %1511 = vmatprep.subr.bf16.mxu0 %v1220
    %1512 = vmatpush1.bf16.msra.mxu0 %v1219
    %1513 = vmatprep.subr.bf16.mxu0 0
    %1514 = vmatpush1.bf16.msra.mxu0 0
    %1515 = vmatprep.subr.bf16.mxu0 0
    %1516 = vmatpush1.bf16.msra.mxu0 0
    %1517 = vmatprep.subr.bf16.mxu0 0
    %1518 = vmatpush1.bf16.msra.mxu0 0
    %1519 = vmatprep.subr.bf16.mxu0 0
    %1520 = vmatpush1.bf16.msra.mxu0 0
    %1521 = vmatprep.subr.bf16.mxu0 0
    %1522 = vmatpush1.bf16.msra.mxu0 0
    %1523 = vmatprep.subr.bf16.mxu0 0
    %1524 = vmatpush1.bf16.msra.mxu0 0
    %1525 = vmatprep.subr.bf16.mxu0 0
    %1526 = vmatpush1.bf16.msra.mxu0 0
    %1527 = vmatprep.subr.bf16.mxu0 0
    %1528 = vmatpush1.bf16.msra.mxu0 0
    %1529 = vmatprep.mubr.bf16.mxu0 0
    %1530 = vmatmul.mubr.bf16.gmra.mrb[0].mxu0 %v330
    %v1531 = vpop.f32.mrb[0].mxu0
    %v1532 = vadd.f32 %v1479, %v1531
    %v1533 = vpop.f32.mrb[0].mxu0
    %v1534 = vadd.f32 %v1481, %v1533
    %v1535 = vpop.f32.mrb[0].mxu0
    %v1536 = vadd.f32 %v1483, %v1535
    %v1537 = vpop.f32.mrb[0].mxu0
    %v1538 = vadd.f32 %v1485, %v1537
    %1539 = vmatprep.mubr.bf16.mxu0 0
    %1540 = vmatmul.mubr.bf16.gmra.mrb[0].mxu0 %v333
    %v1541 = vpop.f32.mrb[0].mxu0
    %v1542 = vadd.f32 %v1489, %v1541
    %v1543 = vpop.f32.mrb[0].mxu0
    %v1544 = vadd.f32 %v1491, %v1543
    %v1545 = vpop.f32.mrb[0].mxu0
    %v1546 = vadd.f32 %v1493, %v1545
    %v1547 = vpop.f32.mrb[0].mxu0
    %v1548 = vadd.f32 %v1495, %v1547
    %1549 = vdwg.mxu0
    %1550 = vmatprep.subr.bf16.mxu0 %v1015
    %1551 = vmatpush1.bf16.msra.mxu0 %v1014
    %1552 = vmatprep.subr.bf16.mxu0 %v1024
    %1553 = vmatpush1.bf16.msra.mxu0 %v1023
    %1554 = vmatprep.subr.bf16.mxu0 %v1033
    %1555 = vmatpush1.bf16.msra.mxu0 %v1032
    %1556 = vmatprep.subr.bf16.mxu0 %v1042
    %1557 = vmatpush1.bf16.msra.mxu0 %v1041
    %1558 = vmatprep.subr.bf16.mxu0 %v1051
    %1559 = vmatpush1.bf16.msra.mxu0 %v1050
    %1560 = vmatprep.subr.bf16.mxu0 %v1060
    %1561 = vmatpush1.bf16.msra.mxu0 %v1059
    %1562 = vmatprep.subr.bf16.mxu0 %v1069
    %1563 = vmatpush1.bf16.msra.mxu0 %v1068
    %1564 = vmatprep.subr.bf16.mxu0 %v1078
    %1565 = vmatpush1.bf16.msra.mxu0 %v1077
    %1566 = vmatprep.subr.bf16.mxu0 %v1087
    %1567 = vmatpush1.bf16.msra.mxu0 %v1086
    %1568 = vmatprep.subr.bf16.mxu0 %v1096
    %1569 = vmatpush1.bf16.msra.mxu0 %v1095
    %1570 = vmatprep.subr.bf16.mxu0 %v1105
    %1571 = vmatpush1.bf16.msra.mxu0 %v1104
    %1572 = vmatprep.subr.bf16.mxu0 %v1114
    %1573 = vmatpush1.bf16.msra.mxu0 %v1113
    %1574 = vmatprep.subr.bf16.mxu0 %v1123
    %1575 = vmatpush1.bf16.msra.mxu0 %v1122
    %1576 = vmatprep.subr.bf16.mxu0 %v1132
    %1577 = vmatpush1.bf16.msra.mxu0 %v1131
    %1578 = vmatprep.subr.bf16.mxu0 %v1141
    %1579 = vmatpush1.bf16.msra.mxu0 %v1140
    %1580 = vmatprep.subr.bf16.mxu0 %v1150
    %1581 = vmatpush1.bf16.msra.mxu0 %v1149
    %1582 = vmatprep.mubr.bf16.mxu0 %v329
    %1583 = vmatmul.mubr.bf16.gmra.mrb[0].mxu0 %v328
    %v1584 = vpop.f32.mrb[0].mxu0
    %v1585 = vadd.f32 0.0, %v1584
    %v1586 = vpop.f32.mrb[0].mxu0
    %v1587 = vadd.f32 0.0, %v1586
    %v1588 = vpop.f32.mrb[0].mxu0
    %v1589 = vadd.f32 0.0, %v1588
    %v1590 = vpop.f32.mrb[0].mxu0
    %v1591 = vadd.f32 0.0, %v1590
    %1592 = vmatprep.mubr.bf16.mxu0 %v332
    %1593 = vmatmul.mubr.bf16.gmra.mrb[0].mxu0 %v331
    %v1594 = vpop.f32.mrb[0].mxu0
    %v1595 = vadd.f32 0.0, %v1594
    %v1596 = vpop.f32.mrb[0].mxu0
    %v1597 = vadd.f32 0.0, %v1596
    %v1598 = vpop.f32.mrb[0].mxu0
    %v1599 = vadd.f32 0.0, %v1598
    %v1600 = vpop.f32.mrb[0].mxu0
    %v1601 = vadd.f32 0.0, %v1600
    %1602 = vdwg.mxu0
    %1603 = vmatprep.subr.bf16.mxu0 %v1159
    %1604 = vmatpush1.bf16.msra.mxu0 %v1158
    %1605 = vmatprep.subr.bf16.mxu0 %v1168
    %1606 = vmatpush1.bf16.msra.mxu0 %v1167
    %1607 = vmatprep.subr.bf16.mxu0 %v1177
    %1608 = vmatpush1.bf16.msra.mxu0 %v1176
    %1609 = vmatprep.subr.bf16.mxu0 %v1186
    %1610 = vmatpush1.bf16.msra.mxu0 %v1185
    %1611 = vmatprep.subr.bf16.mxu0 %v1195
    %1612 = vmatpush1.bf16.msra.mxu0 %v1194
    %1613 = vmatprep.subr.bf16.mxu0 %v1204
    %1614 = vmatpush1.bf16.msra.mxu0 %v1203
    %1615 = vmatprep.subr.bf16.mxu0 %v1213
    %1616 = vmatpush1.bf16.msra.mxu0 %v1212
    %1617 = vmatprep.subr.bf16.mxu0 %v1222
    %1618 = vmatpush1.bf16.msra.mxu0 %v1221
    %1619 = vmatprep.subr.bf16.mxu0 0
    %1620 = vmatpush1.bf16.msra.mxu0 0
    %1621 = vmatprep.subr.bf16.mxu0 0
    %1622 = vmatpush1.bf16.msra.mxu0 0
    %1623 = vmatprep.subr.bf16.mxu0 0
    %1624 = vmatpush1.bf16.msra.mxu0 0
    %1625 = vmatprep.subr.bf16.mxu0 0
    %1626 = vmatpush1.bf16.msra.mxu0 0
    %1627 = vmatprep.subr.bf16.mxu0 0
    %1628 = vmatpush1.bf16.msra.mxu0 0
    %1629 = vmatprep.subr.bf16.mxu0 0
    %1630 = vmatpush1.bf16.msra.mxu0 0
    %1631 = vmatprep.subr.bf16.mxu0 0
    %1632 = vmatpush1.bf16.msra.mxu0 0
    %1633 = vmatprep.subr.bf16.mxu0 0
    %1634 = vmatpush1.bf16.msra.mxu0 0
    %1635 = vmatprep.mubr.bf16.mxu0 0
    %1636 = vmatmul.mubr.bf16.gmra.mrb[0].mxu0 %v330
    %v1637 = vpop.f32.mrb[0].mxu0
    %v1638 = vadd.f32 %v1585, %v1637
    %v1639 = vpop.f32.mrb[0].mxu0
    %v1640 = vadd.f32 %v1587, %v1639
    %v1641 = vpop.f32.mrb[0].mxu0
    %v1642 = vadd.f32 %v1589, %v1641
    %v1643 = vpop.f32.mrb[0].mxu0
    %v1644 = vadd.f32 %v1591, %v1643
    %1645 = vmatprep.mubr.bf16.mxu0 0
    %1646 = vmatmul.mubr.bf16.gmra.mrb[0].mxu0 %v333
    %v1647 = vpop.f32.mrb[0].mxu0
    %v1648 = vadd.f32 %v1595, %v1647
    %v1649 = vpop.f32.mrb[0].mxu0
    %v1650 = vadd.f32 %v1597, %v1649
    %v1651 = vpop.f32.mrb[0].mxu0
    %v1652 = vadd.f32 %v1599, %v1651
    %v1653 = vpop.f32.mrb[0].mxu0
    %v1654 = vadd.f32 %v1601, %v1653
    %1655 = vdwg.mxu0
    %1656 = vmatprep.subr.bf16.mxu0 %v1017
    %1657 = vmatpush1.bf16.msra.mxu0 %v1016
    %1658 = vmatprep.subr.bf16.mxu0 %v1026
    %1659 = vmatpush1.bf16.msra.mxu0 %v1025
    %1660 = vmatprep.subr.bf16.mxu0 %v1035
    %1661 = vmatpush1.bf16.msra.mxu0 %v1034
    %1662 = vmatprep.subr.bf16.mxu0 %v1044
    %1663 = vmatpush1.bf16.msra.mxu0 %v1043
    %1664 = vmatprep.subr.bf16.mxu0 %v1053
    %1665 = vmatpush1.bf16.msra.mxu0 %v1052
    %1666 = vmatprep.subr.bf16.mxu0 %v1062
    %1667 = vmatpush1.bf16.msra.mxu0 %v1061
    %1668 = vmatprep.subr.bf16.mxu0 %v1071
    %1669 = vmatpush1.bf16.msra.mxu0 %v1070
    %1670 = vmatprep.subr.bf16.mxu0 %v1080
    %1671 = vmatpush1.bf16.msra.mxu0 %v1079
    %1672 = vmatprep.subr.bf16.mxu0 %v1089
    %1673 = vmatpush1.bf16.msra.mxu0 %v1088
    %1674 = vmatprep.subr.bf16.mxu0 %v1098
    %1675 = vmatpush1.bf16.msra.mxu0 %v1097
    %1676 = vmatprep.subr.bf16.mxu0 %v1107
    %1677 = vmatpush1.bf16.msra.mxu0 %v1106
    %1678 = vmatprep.subr.bf16.mxu0 %v1116
    %1679 = vmatpush1.bf16.msra.mxu0 %v1115
    %1680 = vmatprep.subr.bf16.mxu0 %v1125
    %1681 = vmatpush1.bf16.msra.mxu0 %v1124
    %1682 = vmatprep.subr.bf16.mxu0 %v1134
    %1683 = vmatpush1.bf16.msra.mxu0 %v1133
    %1684 = vmatprep.subr.bf16.mxu0 %v1143
    %1685 = vmatpush1.bf16.msra.mxu0 %v1142
    %1686 = vmatprep.subr.bf16.mxu0 %v1152
    %1687 = vmatpush1.bf16.msra.mxu0 %v1151
    %1688 = vmatprep.mubr.bf16.mxu0 %v329
    %1689 = vmatmul.mubr.bf16.gmra.mrb[0].mxu0 %v328
    %v1690 = vpop.f32.mrb[0].mxu0
    %v1691 = vadd.f32 0.0, %v1690
    %v1692 = vpop.f32.mrb[0].mxu0
    %v1693 = vadd.f32 0.0, %v1692
    %v1694 = vpop.f32.mrb[0].mxu0
    %v1695 = vadd.f32 0.0, %v1694
    %v1696 = vpop.f32.mrb[0].mxu0
    %v1697 = vadd.f32 0.0, %v1696
    %1698 = vmatprep.mubr.bf16.mxu0 %v332
    %1699 = vmatmul.mubr.bf16.gmra.mrb[0].mxu0 %v331
    %v1700 = vpop.f32.mrb[0].mxu0
    %v1701 = vadd.f32 0.0, %v1700
    %v1702 = vpop.f32.mrb[0].mxu0
    %v1703 = vadd.f32 0.0, %v1702
    %v1704 = vpop.f32.mrb[0].mxu0
    %v1705 = vadd.f32 0.0, %v1704
    %v1706 = vpop.f32.mrb[0].mxu0
    %v1707 = vadd.f32 0.0, %v1706
    %1708 = vdwg.mxu0
    %1709 = vmatprep.subr.bf16.mxu0 %v1161
    %1710 = vmatpush1.bf16.msra.mxu0 %v1160
    %1711 = vmatprep.subr.bf16.mxu0 %v1170
    %1712 = vmatpush1.bf16.msra.mxu0 %v1169
    %1713 = vmatprep.subr.bf16.mxu0 %v1179
    %1714 = vmatpush1.bf16.msra.mxu0 %v1178
    %1715 = vmatprep.subr.bf16.mxu0 %v1188
    %1716 = vmatpush1.bf16.msra.mxu0 %v1187
    %1717 = vmatprep.subr.bf16.mxu0 %v1197
    %1718 = vmatpush1.bf16.msra.mxu0 %v1196
    %1719 = vmatprep.subr.bf16.mxu0 %v1206
    %1720 = vmatpush1.bf16.msra.mxu0 %v1205
    %1721 = vmatprep.subr.bf16.mxu0 %v1215
    %1722 = vmatpush1.bf16.msra.mxu0 %v1214
    %1723 = vmatprep.subr.bf16.mxu0 %v1224
    %1724 = vmatpush1.bf16.msra.mxu0 %v1223
    %1725 = vmatprep.subr.bf16.mxu0 0
    %1726 = vmatpush1.bf16.msra.mxu0 0
    %1727 = vmatprep.subr.bf16.mxu0 0
    %1728 = vmatpush1.bf16.msra.mxu0 0
    %1729 = vmatprep.subr.bf16.mxu0 0
    %1730 = vmatpush1.bf16.msra.mxu0 0
    %1731 = vmatprep.subr.bf16.mxu0 0
    %1732 = vmatpush1.bf16.msra.mxu0 0
    %1733 = vmatprep.subr.bf16.mxu0 0
    %1734 = vmatpush1.bf16.msra.mxu0 0
    %1735 = vmatprep.subr.bf16.mxu0 0
    %1736 = vmatpush1.bf16.msra.mxu0 0
    %1737 = vmatprep.subr.bf16.mxu0 0
    %1738 = vmatpush1.bf16.msra.mxu0 0
    %1739 = vmatprep.subr.bf16.mxu0 0
    %1740 = vmatpush1.bf16.msra.mxu0 0
    %1741 = vmatprep.mubr.bf16.mxu0 0
    %1742 = vmatmul.mubr.bf16.gmra.mrb[0].mxu0 %v330
    %v1743 = vpop.f32.mrb[0].mxu0
    %v1744 = vadd.f32 %v1691, %v1743
    %v1745 = vpop.f32.mrb[0].mxu0
    %v1746 = vadd.f32 %v1693, %v1745
    %v1747 = vpop.f32.mrb[0].mxu0
    %v1748 = vadd.f32 %v1695, %v1747
    %v1749 = vpop.f32.mrb[0].mxu0
    %v1750 = vadd.f32 %v1697, %v1749
    %1751 = vmatprep.mubr.bf16.mxu0 0
    %1752 = vmatmul.mubr.bf16.gmra.mrb[0].mxu0 %v333
    %v1753 = vpop.f32.mrb[0].mxu0
    %v1754 = vadd.f32 %v1701, %v1753
    %v1755 = vpop.f32.mrb[0].mxu0
    %v1756 = vadd.f32 %v1703, %v1755
    %v1757 = vpop.f32.mrb[0].mxu0
    %v1758 = vadd.f32 %v1705, %v1757
    %v1759 = vpop.f32.mrb[0].mxu0
    %v1760 = vadd.f32 %v1707, %v1759
    %1761 = vdwg.mxu0
    %1762 = vmatprep.subr.bf16.mxu0 %v1019
    %1763 = vmatpush1.bf16.msra.mxu0 %v1018
    %1764 = vmatprep.subr.bf16.mxu0 %v1028
    %1765 = vmatpush1.bf16.msra.mxu0 %v1027
    %1766 = vmatprep.subr.bf16.mxu0 %v1037
    %1767 = vmatpush1.bf16.msra.mxu0 %v1036
    %1768 = vmatprep.subr.bf16.mxu0 %v1046
    %1769 = vmatpush1.bf16.msra.mxu0 %v1045
    %1770 = vmatprep.subr.bf16.mxu0 %v1055
    %1771 = vmatpush1.bf16.msra.mxu0 %v1054
    %1772 = vmatprep.subr.bf16.mxu0 %v1064
    %1773 = vmatpush1.bf16.msra.mxu0 %v1063
    %1774 = vmatprep.subr.bf16.mxu0 %v1073
    %1775 = vmatpush1.bf16.msra.mxu0 %v1072
    %1776 = vmatprep.subr.bf16.mxu0 %v1082
    %1777 = vmatpush1.bf16.msra.mxu0 %v1081
    %1778 = vmatprep.subr.bf16.mxu0 %v1091
    %1779 = vmatpush1.bf16.msra.mxu0 %v1090
    %1780 = vmatprep.subr.bf16.mxu0 %v1100
    %1781 = vmatpush1.bf16.msra.mxu0 %v1099
    %1782 = vmatprep.subr.bf16.mxu0 %v1109
    %1783 = vmatpush1.bf16.msra.mxu0 %v1108
    %1784 = vmatprep.subr.bf16.mxu0 %v1118
    %1785 = vmatpush1.bf16.msra.mxu0 %v1117
    %1786 = vmatprep.subr.bf16.mxu0 %v1127
    %1787 = vmatpush1.bf16.msra.mxu0 %v1126
    %1788 = vmatprep.subr.bf16.mxu0 %v1136
    %1789 = vmatpush1.bf16.msra.mxu0 %v1135
    %1790 = vmatprep.subr.bf16.mxu0 %v1145
    %1791 = vmatpush1.bf16.msra.mxu0 %v1144
    %1792 = vmatprep.subr.bf16.mxu0 %v1154
    %1793 = vmatpush1.bf16.msra.mxu0 %v1153
    %1794 = vmatprep.mubr.bf16.mxu0 %v329
    %1795 = vmatmul.mubr.bf16.gmra.mrb[0].mxu0 %v328
    %v1796 = vpop.f32.mrb[0].mxu0
    %v1797 = vadd.f32 0.0, %v1796
    %v1798 = vpop.f32.mrb[0].mxu0
    %v1799 = vadd.f32 0.0, %v1798
    %v1800 = vpop.f32.mrb[0].mxu0
    %v1801 = vadd.f32 0.0, %v1800
    %v1802 = vpop.f32.mrb[0].mxu0
    %v1803 = vadd.f32 0.0, %v1802
    %1804 = vmatprep.mubr.bf16.mxu0 %v332
    %1805 = vmatmul.mubr.bf16.gmra.mrb[0].mxu0 %v331
    %v1806 = vpop.f32.mrb[0].mxu0
    %v1807 = vadd.f32 0.0, %v1806
    %v1808 = vpop.f32.mrb[0].mxu0
    %v1809 = vadd.f32 0.0, %v1808
    %v1810 = vpop.f32.mrb[0].mxu0
    %v1811 = vadd.f32 0.0, %v1810
    %v1812 = vpop.f32.mrb[0].mxu0
    %v1813 = vadd.f32 0.0, %v1812
    %1814 = vdwg.mxu0
    %1815 = vmatprep.subr.bf16.mxu0 %v1163
    %1816 = vmatpush1.bf16.msra.mxu0 %v1162
    %1817 = vmatprep.subr.bf16.mxu0 %v1172
    %1818 = vmatpush1.bf16.msra.mxu0 %v1171
    %1819 = vmatprep.subr.bf16.mxu0 %v1181
    %1820 = vmatpush1.bf16.msra.mxu0 %v1180
    %1821 = vmatprep.subr.bf16.mxu0 %v1190
    %1822 = vmatpush1.bf16.msra.mxu0 %v1189
    %1823 = vmatprep.subr.bf16.mxu0 %v1199
    %1824 = vmatpush1.bf16.msra.mxu0 %v1198
    %1825 = vmatprep.subr.bf16.mxu0 %v1208
    %1826 = vmatpush1.bf16.msra.mxu0 %v1207
    %1827 = vmatprep.subr.bf16.mxu0 %v1217
    %1828 = vmatpush1.bf16.msra.mxu0 %v1216
    %1829 = vmatprep.subr.bf16.mxu0 %v1226
    %1830 = vmatpush1.bf16.msra.mxu0 %v1225
    %1831 = vmatprep.subr.bf16.mxu0 0
    %1832 = vmatpush1.bf16.msra.mxu0 0
    %1833 = vmatprep.subr.bf16.mxu0 0
    %1834 = vmatpush1.bf16.msra.mxu0 0
    %1835 = vmatprep.subr.bf16.mxu0 0
    %1836 = vmatpush1.bf16.msra.mxu0 0
    %1837 = vmatprep.subr.bf16.mxu0 0
    %1838 = vmatpush1.bf16.msra.mxu0 0
    %1839 = vmatprep.subr.bf16.mxu0 0
    %1840 = vmatpush1.bf16.msra.mxu0 0
    %1841 = vmatprep.subr.bf16.mxu0 0
    %1842 = vmatpush1.bf16.msra.mxu0 0
    %1843 = vmatprep.subr.bf16.mxu0 0
    %1844 = vmatpush1.bf16.msra.mxu0 0
    %1845 = vmatprep.subr.bf16.mxu0 0
    %1846 = vmatpush1.bf16.msra.mxu0 0
    %1847 = vmatprep.mubr.bf16.mxu0 0
    %1848 = vmatmul.mubr.bf16.gmra.mrb[0].mxu0 %v330
    %v1849 = vpop.f32.mrb[0].mxu0
    %v1850 = vadd.f32 %v1797, %v1849
    %v1851 = vpop.f32.mrb[0].mxu0
    %v1852 = vadd.f32 %v1799, %v1851
    %v1853 = vpop.f32.mrb[0].mxu0
    %v1854 = vadd.f32 %v1801, %v1853
    %v1855 = vpop.f32.mrb[0].mxu0
    %v1856 = vadd.f32 %v1803, %v1855
    %1857 = vmatprep.mubr.bf16.mxu0 0
    %1858 = vmatmul.mubr.bf16.gmra.mrb[0].mxu0 %v333
    %v1859 = vpop.f32.mrb[0].mxu0
    %v1860 = vadd.f32 %v1807, %v1859
    %v1861 = vpop.f32.mrb[0].mxu0
    %v1862 = vadd.f32 %v1809, %v1861
    %v1863 = vpop.f32.mrb[0].mxu0
    %v1864 = vadd.f32 %v1811, %v1863
    %v1865 = vpop.f32.mrb[0].mxu0
    %v1866 = vadd.f32 %v1813, %v1865
    %1867 = vdwg.mxu0
    %1868 = vmatprep.subr.bf16.mxu0 0
    %1869 = vmatpush1.bf16.msra.mxu0 %v1020
    %1870 = vmatprep.subr.bf16.mxu0 0
    %1871 = vmatpush1.bf16.msra.mxu0 %v1029
    %1872 = vmatprep.subr.bf16.mxu0 0
    %1873 = vmatpush1.bf16.msra.mxu0 %v1038
    %1874 = vmatprep.subr.bf16.mxu0 0
    %1875 = vmatpush1.bf16.msra.mxu0 %v1047
    %1876 = vmatprep.subr.bf16.mxu0 0
    %1877 = vmatpush1.bf16.msra.mxu0 %v1056
    %1878 = vmatprep.subr.bf16.mxu0 0
    %1879 = vmatpush1.bf16.msra.mxu0 %v1065
    %1880 = vmatprep.subr.bf16.mxu0 0
    %1881 = vmatpush1.bf16.msra.mxu0 %v1074
    %1882 = vmatprep.subr.bf16.mxu0 0
    %1883 = vmatpush1.bf16.msra.mxu0 %v1083
    %1884 = vmatprep.subr.bf16.mxu0 0
    %1885 = vmatpush1.bf16.msra.mxu0 %v1092
    %1886 = vmatprep.subr.bf16.mxu0 0
    %1887 = vmatpush1.bf16.msra.mxu0 %v1101
    %1888 = vmatprep.subr.bf16.mxu0 0
    %1889 = vmatpush1.bf16.msra.mxu0 %v1110
    %1890 = vmatprep.subr.bf16.mxu0 0
    %1891 = vmatpush1.bf16.msra.mxu0 %v1119
    %1892 = vmatprep.subr.bf16.mxu0 0
    %1893 = vmatpush1.bf16.msra.mxu0 %v1128
    %1894 = vmatprep.subr.bf16.mxu0 0
    %1895 = vmatpush1.bf16.msra.mxu0 %v1137
    %1896 = vmatprep.subr.bf16.mxu0 0
    %1897 = vmatpush1.bf16.msra.mxu0 %v1146
    %1898 = vmatprep.subr.bf16.mxu0 0
    %1899 = vmatpush1.bf16.msra.mxu0 %v1155
    %1900 = vmatprep.mubr.bf16.mxu0 %v329
    %1901 = vmatmul.mubr.bf16.gmra.mrb[0].mxu0 %v328
    %v1902 = vpop.f32.mrb[0].mxu0
    %v1903 = vadd.f32 0.0, %v1902
    %v1904 = vpop.f32.mrb[0].mxu0
    %v1905 = vpop.f32.mrb[0].mxu0
    %v1906 = vadd.f32 0.0, %v1905
    %v1907 = vpop.f32.mrb[0].mxu0
    %1908 = vmatprep.mubr.bf16.mxu0 %v332
    %1909 = vmatmul.mubr.bf16.gmra.mrb[0].mxu0 %v331
    %v1910 = vpop.f32.mrb[0].mxu0
    %v1911 = vadd.f32 0.0, %v1910
    %v1912 = vpop.f32.mrb[0].mxu0
    %v1913 = vpop.f32.mrb[0].mxu0
    %v1914 = vadd.f32 0.0, %v1913
    %v1915 = vpop.f32.mrb[0].mxu0
    %1916 = vdwg.mxu0
    %1917 = vmatprep.subr.bf16.mxu0 0
    %1918 = vmatpush1.bf16.msra.mxu0 %v1164
    %1919 = vmatprep.subr.bf16.mxu0 0
    %1920 = vmatpush1.bf16.msra.mxu0 %v1173
    %1921 = vmatprep.subr.bf16.mxu0 0
    %1922 = vmatpush1.bf16.msra.mxu0 %v1182
    %1923 = vmatprep.subr.bf16.mxu0 0
    %1924 = vmatpush1.bf16.msra.mxu0 %v1191
    %1925 = vmatprep.subr.bf16.mxu0 0
    %1926 = vmatpush1.bf16.msra.mxu0 %v1200
    %1927 = vmatprep.subr.bf16.mxu0 0
    %1928 = vmatpush1.bf16.msra.mxu0 %v1209
    %1929 = vmatprep.subr.bf16.mxu0 0
    %1930 = vmatpush1.bf16.msra.mxu0 %v1218
    %1931 = vmatprep.subr.bf16.mxu0 0
    %1932 = vmatpush1.bf16.msra.mxu0 %v1227
    %1933 = vmatprep.subr.bf16.mxu0 0
    %1934 = vmatpush1.bf16.msra.mxu0 0
    %1935 = vmatprep.subr.bf16.mxu0 0
    %1936 = vmatpush1.bf16.msra.mxu0 0
    %1937 = vmatprep.subr.bf16.mxu0 0
    %1938 = vmatpush1.bf16.msra.mxu0 0
    %1939 = vmatprep.subr.bf16.mxu0 0
    %1940 = vmatpush1.bf16.msra.mxu0 0
    %1941 = vmatprep.subr.bf16.mxu0 0
    %1942 = vmatpush1.bf16.msra.mxu0 0
    %1943 = vmatprep.subr.bf16.mxu0 0
    %1944 = vmatpush1.bf16.msra.mxu0 0
    %1945 = vmatprep.subr.bf16.mxu0 0
    %1946 = vmatpush1.bf16.msra.mxu0 0
    %1947 = vmatprep.subr.bf16.mxu0 0
    %1948 = vmatpush1.bf16.msra.mxu0 0
    %1949 = vmatprep.mubr.bf16.mxu0 0
    %1950 = vmatmul.mubr.bf16.gmra.mrb[0].mxu0 %v330
    %v1951 = vpop.f32.mrb[0].mxu0
    %v1952 = vadd.f32 %v1903, %v1951
    %v1953 = vpop.f32.mrb[0].mxu0
    %v1954 = vpop.f32.mrb[0].mxu0
    %v1955 = vadd.f32 %v1906, %v1954
    %v1956 = vpop.f32.mrb[0].mxu0
    %1957 = vmatprep.mubr.bf16.mxu0 0
    %1958 = vmatmul.mubr.bf16.gmra.mrb[0].mxu0 %v333
    %v1959 = vpop.f32.mrb[0].mxu0
    %v1960 = vadd.f32 %v1911, %v1959
    %v1961 = vpop.f32.mrb[0].mxu0
    %v1962 = vpop.f32.mrb[0].mxu0
    %v1963 = vadd.f32 %v1914, %v1962
    %v1964 = vpop.f32.mrb[0].mxu0
    %1965 = vdwg.mxu0
    %v1966 = vpack.c.bf16 %v1536, %v1532
    %v1967 = vpack.c.bf16 %v1538, %v1534
    %v1968 = vpack.c.bf16 %v1642, %v1638
    %v1969 = vpack.c.bf16 %v1644, %v1640
    %v1970 = vpack.c.bf16 %v1748, %v1744
    %v1971 = vpack.c.bf16 %v1750, %v1746
    %v1972 = vpack.c.bf16 %v1854, %v1850
    %v1973 = vpack.c.bf16 %v1856, %v1852
    %v1974 = vpack.c.bf16 %v1955, %v1952
    %v1975 = vpack.c.bf16 %v1546, %v1542
    %v1976 = vpack.c.bf16 %v1548, %v1544
    %v1977 = vpack.c.bf16 %v1652, %v1648
    %v1978 = vpack.c.bf16 %v1654, %v1650
    %v1979 = vpack.c.bf16 %v1758, %v1754
    %v1980 = vpack.c.bf16 %v1760, %v1756
    %v1981 = vpack.c.bf16 %v1864, %v1860
    %v1982 = vpack.c.bf16 %v1866, %v1862
    %v1983 = vpack.c.bf16 %v1963, %v1960
    %v1984 = vlaneseq
    %v1985 = vshrl.u32 %v1984, 7
    %v1986 = vadd.s32 %v1985, 8
    %v1987 = vlaneseq
    %v1988 = vand.u32 %v1987, 127
    %vm1989 = vcmp.ge.s32.totalorder %v1985, %v1988
    %vm1990 = vcmp.ge.s32.totalorder %v1986, %v1988
    %v1991 = vsel %vm1989, 0.0, -1e+30
    %v1992 = vsel %vm1990, 0.0, -1e+30
    %vm1993 = vcmask 523264
    %v1995 = vsel %vm1993, %v1966, 0
    %v1998 = vsel %vm1993, %v1969, 0
    %2000 = vmatprep.subr.bf16.mxu0 0
    %2001 = vmatpush1.bf16.xpose.msra.mxu0 %v1998
    %2002 = vmatprep.subr.bf16.mxu0 0
    %2003 = vmatpush1.bf16.xpose.msra.mxu0 0
    %2004 = vmatprep.subr.bf16.mxu0 0
    %2005 = vmatpush1.bf16.xpose.msra.mxu0 0
    %2006 = vmatprep.subr.bf16.mxu0 0
    %2007 = vmatpush1.bf16.xpose.msra.mxu0 0
    %2008 = vmatprep.subr.bf16.mxu0 0
    %2009 = vmatpush1.bf16.xpose.msra.mxu0 0
    %2010 = vmatprep.subr.bf16.mxu0 0
    %2011 = vmatpush1.bf16.xpose.msra.mxu0 0
    %2012 = vmatprep.subr.bf16.mxu0 0
    %2013 = vmatpush1.bf16.xpose.msra.mxu0 0
    %2014 = vmatprep.subr.bf16.mxu0 0
    %2015 = vmatpush1.bf16.xpose.msra.mxu0 0
    %2016 = vmatprep.subr.bf16.mxu0 0
    %2017 = vmatpush1.bf16.xpose.msra.mxu0 0
    %2018 = vmatprep.subr.bf16.mxu0 0
    %2019 = vmatpush1.bf16.xpose.msra.mxu0 0
    %2020 = vmatprep.subr.bf16.mxu0 0
    %2021 = vmatpush1.bf16.xpose.msra.mxu0 0
    %2022 = vmatprep.subr.bf16.mxu0 0
    %2023 = vmatpush1.bf16.xpose.msra.mxu0 0
    %2024 = vmatprep.subr.bf16.mxu0 0
    %2025 = vmatpush1.bf16.xpose.msra.mxu0 0
    %2026 = vmatprep.subr.bf16.mxu0 0
    %2027 = vmatpush1.bf16.xpose.msra.mxu0 0
    %2028 = vmatprep.subr.bf16.mxu0 0
    %2029 = vmatpush1.bf16.xpose.msra.mxu0 0
    %2030 = vmatprep.subr.bf16.mxu0 0
    %2031 = vmatpush1.bf16.xpose.msra.mxu0 0
    %2032 = vmatprep.mubr.bf16.mxu0 0
    %2033 = vmatmul.mubr.bf16.gmra.mrb[0].mxu0 %v1995
    %v2034 = vpop.f32.mrb[0].mxu0
    %v2035 = vadd.f32 %v1991, %v2034
    %v2036 = vpop.f32.mrb[0].mxu0
    %v2037 = vpop.f32.mrb[0].mxu0
    %v2038 = vadd.f32 %v1992, %v2037
    %v2039 = vpop.f32.mrb[0].mxu0
    %2040 = vdwg.mxu0
    %v2042 = vsel %vm1993, %v1975, 0
    %v2045 = vsel %vm1993, %v1978, 0
    %2047 = vmatprep.subr.bf16.mxu0 0
    %2048 = vmatpush1.bf16.xpose.msra.mxu0 %v2045
    %2049 = vmatprep.subr.bf16.mxu0 0
    %2050 = vmatpush1.bf16.xpose.msra.mxu0 0
    %2051 = vmatprep.subr.bf16.mxu0 0
    %2052 = vmatpush1.bf16.xpose.msra.mxu0 0
    %2053 = vmatprep.subr.bf16.mxu0 0
    %2054 = vmatpush1.bf16.xpose.msra.mxu0 0
    %2055 = vmatprep.subr.bf16.mxu0 0
    %2056 = vmatpush1.bf16.xpose.msra.mxu0 0
    %2057 = vmatprep.subr.bf16.mxu0 0
    %2058 = vmatpush1.bf16.xpose.msra.mxu0 0
    %2059 = vmatprep.subr.bf16.mxu0 0
    %2060 = vmatpush1.bf16.xpose.msra.mxu0 0
    %2061 = vmatprep.subr.bf16.mxu0 0
    %2062 = vmatpush1.bf16.xpose.msra.mxu0 0
    %2063 = vmatprep.subr.bf16.mxu0 0
    %2064 = vmatpush1.bf16.xpose.msra.mxu0 0
    %2065 = vmatprep.subr.bf16.mxu0 0
    %2066 = vmatpush1.bf16.xpose.msra.mxu0 0
    %2067 = vmatprep.subr.bf16.mxu0 0
    %2068 = vmatpush1.bf16.xpose.msra.mxu0 0
    %2069 = vmatprep.subr.bf16.mxu0 0
    %2070 = vmatpush1.bf16.xpose.msra.mxu0 0
    %2071 = vmatprep.subr.bf16.mxu0 0
    %2072 = vmatpush1.bf16.xpose.msra.mxu0 0
    %2073 = vmatprep.subr.bf16.mxu0 0
    %2074 = vmatpush1.bf16.xpose.msra.mxu0 0
    %2075 = vmatprep.subr.bf16.mxu0 0
    %2076 = vmatpush1.bf16.xpose.msra.mxu0 0
    %2077 = vmatprep.subr.bf16.mxu0 0
    %2078 = vmatpush1.bf16.xpose.msra.mxu0 0
    %2079 = vmatprep.mubr.bf16.mxu0 0
    %2080 = vmatmul.mubr.bf16.gmra.mrb[0].mxu0 %v2042
    %v2081 = vpop.f32.mrb[0].mxu0
    %v2082 = vadd.f32 %v1991, %v2081
    %v2083 = vpop.f32.mrb[0].mxu0
    %v2084 = vpop.f32.mrb[0].mxu0
    %v2085 = vadd.f32 %v1992, %v2084
    %v2086 = vpop.f32.mrb[0].mxu0
    %2087 = vdwg.mxu0
    %vm2088 = vcmask 130048
    %v2089 = vsel %vm2088, %v2035, -inf
    %2090 = vmax.xlane.f32.xlu0 %v2089
    %v2091 = vpop.xlane.xlu0 %2090
    %v2092 = vsel %vm2088, %v2038, -inf
    %2093 = vmax.xlane.f32.xlu0 %v2092
    %v2094 = vpop.xlane.xlu0 %2093
    %v2095 = vsel %vm2088, %v2082, -inf
    %2096 = vmax.xlane.f32.xlu0 %v2095
    %v2097 = vpop.xlane.xlu0 %2096
    %v2098 = vsel %vm2088, %v2085, -inf
    %2099 = vmax.xlane.f32.xlu0 %v2098
    %v2100 = vpop.xlane.xlu0 %2099
    %v2101 = vsub.f32 %v2035, %v2091
    %v2102 = vsub.f32 %v2038, %v2094
    %v2103 = vsub.f32 %v2082, %v2097
    %v2104 = vsub.f32 %v2085, %v2100
    %v2105 = vmul.f32 %v2101, 1.442695
    %v2106 = vpow.pop %v2105
    %v2107 = vmul.f32 %v2102, 1.442695
    %v2108 = vpow.pop %v2107
    %v2109 = vmul.f32 %v2103, 1.442695
    %v2110 = vpow.pop %v2109
    %v2111 = vmul.f32 %v2104, 1.442695
    %v2112 = vpow.pop %v2111
    %v2113 = vsel %vm2088, %v2106, 0.0
    %2114 = vadd.xlane.f32.xlu0 %v2113
    %v2115 = vpop.xlane.xlu0 %2114
    %v2116 = vsel %vm2088, %v2108, 0.0
    %2117 = vadd.xlane.f32.xlu0 %v2116
    %v2118 = vpop.xlane.xlu0 %2117
    %v2119 = vsel %vm2088, %v2110, 0.0
    %2120 = vadd.xlane.f32.xlu0 %v2119
    %v2121 = vpop.xlane.xlu0 %2120
    %v2122 = vsel %vm2088, %v2112, 0.0
    %2123 = vadd.xlane.f32.xlu0 %v2122
    %v2124 = vpop.xlane.xlu0 %2123
    %v2125 = vrcp.pop %v2115
    %v2126 = vrcp.pop %v2118
    %v2127 = vrcp.pop %v2121
    %v2128 = vrcp.pop %v2124
    %v2129 = vmul.f32 %v2106, %v2125
    %v2130 = vmul.f32 %v2108, %v2126
    %v2131 = vmul.f32 %v2110, %v2127
    %v2132 = vmul.f32 %v2112, %v2128
    %v2133 = vpack.c.bf16 %v2130, %v2129
    %v2134 = vpack.c.bf16 %v2132, %v2131
    %v2136 = vsel %vm2088, %v2133, 0
    %2138 = vmatprep.subr.bf16.mxu0 0
    %2139 = vmatpush1.bf16.msra.mxu0 %v1972
    %2140 = vmatprep.subr.bf16.mxu0 0
    %2141 = vmatpush1.bf16.msra.mxu0 0
    %2142 = vmatprep.subr.bf16.mxu0 0
    %2143 = vmatpush1.bf16.msra.mxu0 0
    %2144 = vmatprep.subr.bf16.mxu0 0
    %2145 = vmatpush1.bf16.msra.mxu0 0
    %2146 = vmatprep.subr.bf16.mxu0 0
    %2147 = vmatpush1.bf16.msra.mxu0 0
    %2148 = vmatprep.subr.bf16.mxu0 0
    %2149 = vmatpush1.bf16.msra.mxu0 0
    %2150 = vmatprep.subr.bf16.mxu0 0
    %2151 = vmatpush1.bf16.msra.mxu0 0
    %2152 = vmatprep.subr.bf16.mxu0 0
    %2153 = vmatpush1.bf16.msra.mxu0 0
    %2154 = vmatprep.subr.bf16.mxu0 0
    %2155 = vmatpush1.bf16.msra.mxu0 0
    %2156 = vmatprep.subr.bf16.mxu0 0
    %2157 = vmatpush1.bf16.msra.mxu0 0
    %2158 = vmatprep.subr.bf16.mxu0 0
    %2159 = vmatpush1.bf16.msra.mxu0 0
    %2160 = vmatprep.subr.bf16.mxu0 0
    %2161 = vmatpush1.bf16.msra.mxu0 0
    %2162 = vmatprep.subr.bf16.mxu0 0
    %2163 = vmatpush1.bf16.msra.mxu0 0
    %2164 = vmatprep.subr.bf16.mxu0 0
    %2165 = vmatpush1.bf16.msra.mxu0 0
    %2166 = vmatprep.subr.bf16.mxu0 0
    %2167 = vmatpush1.bf16.msra.mxu0 0
    %2168 = vmatprep.subr.bf16.mxu0 0
    %2169 = vmatpush1.bf16.msra.mxu0 0
    %2170 = vmatprep.mubr.bf16.mxu0 0
    %2171 = vmatmul.mubr.bf16.gmra.mrb[0].mxu0 %v2136
    %v2172 = vpop.f32.mrb[0].mxu0
    %v2173 = vadd.f32 0.0, %v2172
    %v2174 = vpop.f32.mrb[0].mxu0
    %v2175 = vpop.f32.mrb[0].mxu0
    %v2176 = vadd.f32 0.0, %v2175
    %v2177 = vpop.f32.mrb[0].mxu0
    %2178 = vdwg.mxu0
    %v2180 = vsel %vm2088, %v2134, 0
    %2182 = vmatprep.subr.bf16.mxu0 0
    %2183 = vmatpush1.bf16.msra.mxu0 %v1981
    %2184 = vmatprep.subr.bf16.mxu0 0
    %2185 = vmatpush1.bf16.msra.mxu0 0
    %2186 = vmatprep.subr.bf16.mxu0 0
    %2187 = vmatpush1.bf16.msra.mxu0 0
    %2188 = vmatprep.subr.bf16.mxu0 0
    %2189 = vmatpush1.bf16.msra.mxu0 0
    %2190 = vmatprep.subr.bf16.mxu0 0
    %2191 = vmatpush1.bf16.msra.mxu0 0
    %2192 = vmatprep.subr.bf16.mxu0 0
    %2193 = vmatpush1.bf16.msra.mxu0 0
    %2194 = vmatprep.subr.bf16.mxu0 0
    %2195 = vmatpush1.bf16.msra.mxu0 0
    %2196 = vmatprep.subr.bf16.mxu0 0
    %2197 = vmatpush1.bf16.msra.mxu0 0
    %2198 = vmatprep.subr.bf16.mxu0 0
    %2199 = vmatpush1.bf16.msra.mxu0 0
    %2200 = vmatprep.subr.bf16.mxu0 0
    %2201 = vmatpush1.bf16.msra.mxu0 0
    %2202 = vmatprep.subr.bf16.mxu0 0
    %2203 = vmatpush1.bf16.msra.mxu0 0
    %2204 = vmatprep.subr.bf16.mxu0 0
    %2205 = vmatpush1.bf16.msra.mxu0 0
    %2206 = vmatprep.subr.bf16.mxu0 0
    %2207 = vmatpush1.bf16.msra.mxu0 0
    %2208 = vmatprep.subr.bf16.mxu0 0
    %2209 = vmatpush1.bf16.msra.mxu0 0
    %2210 = vmatprep.subr.bf16.mxu0 0
    %2211 = vmatpush1.bf16.msra.mxu0 0
    %2212 = vmatprep.subr.bf16.mxu0 0
    %2213 = vmatpush1.bf16.msra.mxu0 0
    %2214 = vmatprep.mubr.bf16.mxu0 0
    %2215 = vmatmul.mubr.bf16.gmra.mrb[0].mxu0 %v2180
    %v2216 = vpop.f32.mrb[0].mxu0
    %v2217 = vadd.f32 0.0, %v2216
    %v2218 = vpop.f32.mrb[0].mxu0
    %v2219 = vpop.f32.mrb[0].mxu0
    %v2220 = vadd.f32 0.0, %v2219
    %v2221 = vpop.f32.mrb[0].mxu0
    %2222 = vdwg.mxu0
    %v2223 = vpack.c.bf16 %v2176, %v2173
    %v2224 = vpack.c.bf16 %v2220, %v2217
    %2226 = vrot.lane.b32.xlu0 %v1966, 64
    %v2227 = vpop.permute.xlu0 %2226
    %2229 = vrot.lane.b32.xlu0 %v1969, 64
    %v2230 = vpop.permute.xlu0 %2229
    %v2232 = vsel %vm1993, %v2227, 0
    %v2235 = vsel %vm1993, %v2230, 0
    %2237 = vmatprep.subr.bf16.mxu0 0
    %2238 = vmatpush1.bf16.xpose.msra.mxu0 %v2235
    %2239 = vmatprep.subr.bf16.mxu0 0
    %2240 = vmatpush1.bf16.xpose.msra.mxu0 0
    %2241 = vmatprep.subr.bf16.mxu0 0
    %2242 = vmatpush1.bf16.xpose.msra.mxu0 0
    %2243 = vmatprep.subr.bf16.mxu0 0
    %2244 = vmatpush1.bf16.xpose.msra.mxu0 0
    %2245 = vmatprep.subr.bf16.mxu0 0
    %2246 = vmatpush1.bf16.xpose.msra.mxu0 0
    %2247 = vmatprep.subr.bf16.mxu0 0
    %2248 = vmatpush1.bf16.xpose.msra.mxu0 0
    %2249 = vmatprep.subr.bf16.mxu0 0
    %2250 = vmatpush1.bf16.xpose.msra.mxu0 0
    %2251 = vmatprep.subr.bf16.mxu0 0
    %2252 = vmatpush1.bf16.xpose.msra.mxu0 0
    %2253 = vmatprep.subr.bf16.mxu0 0
    %2254 = vmatpush1.bf16.xpose.msra.mxu0 0
    %2255 = vmatprep.subr.bf16.mxu0 0
    %2256 = vmatpush1.bf16.xpose.msra.mxu0 0
    %2257 = vmatprep.subr.bf16.mxu0 0
    %2258 = vmatpush1.bf16.xpose.msra.mxu0 0
    %2259 = vmatprep.subr.bf16.mxu0 0
    %2260 = vmatpush1.bf16.xpose.msra.mxu0 0
    %2261 = vmatprep.subr.bf16.mxu0 0
    %2262 = vmatpush1.bf16.xpose.msra.mxu0 0
    %2263 = vmatprep.subr.bf16.mxu0 0
    %2264 = vmatpush1.bf16.xpose.msra.mxu0 0
    %2265 = vmatprep.subr.bf16.mxu0 0
    %2266 = vmatpush1.bf16.xpose.msra.mxu0 0
    %2267 = vmatprep.subr.bf16.mxu0 0
    %2268 = vmatpush1.bf16.xpose.msra.mxu0 0
    %2269 = vmatprep.mubr.bf16.mxu0 0
    %2270 = vmatmul.mubr.bf16.gmra.mrb[0].mxu0 %v2232
    %v2271 = vpop.f32.mrb[0].mxu0
    %v2272 = vadd.f32 %v1991, %v2271
    %v2273 = vpop.f32.mrb[0].mxu0
    %v2274 = vpop.f32.mrb[0].mxu0
    %v2275 = vadd.f32 %v1992, %v2274
    %v2276 = vpop.f32.mrb[0].mxu0
    %2277 = vdwg.mxu0
    %2279 = vrot.lane.b32.xlu0 %v1975, 64
    %v2280 = vpop.permute.xlu0 %2279
    %2282 = vrot.lane.b32.xlu0 %v1978, 64
    %v2283 = vpop.permute.xlu0 %2282
    %v2285 = vsel %vm1993, %v2280, 0
    %v2288 = vsel %vm1993, %v2283, 0
    %2290 = vmatprep.subr.bf16.mxu0 0
    %2291 = vmatpush1.bf16.xpose.msra.mxu0 %v2288
    %2292 = vmatprep.subr.bf16.mxu0 0
    %2293 = vmatpush1.bf16.xpose.msra.mxu0 0
    %2294 = vmatprep.subr.bf16.mxu0 0
    %2295 = vmatpush1.bf16.xpose.msra.mxu0 0
    %2296 = vmatprep.subr.bf16.mxu0 0
    %2297 = vmatpush1.bf16.xpose.msra.mxu0 0
    %2298 = vmatprep.subr.bf16.mxu0 0
    %2299 = vmatpush1.bf16.xpose.msra.mxu0 0
    %2300 = vmatprep.subr.bf16.mxu0 0
    %2301 = vmatpush1.bf16.xpose.msra.mxu0 0
    %2302 = vmatprep.subr.bf16.mxu0 0
    %2303 = vmatpush1.bf16.xpose.msra.mxu0 0
    %2304 = vmatprep.subr.bf16.mxu0 0
    %2305 = vmatpush1.bf16.xpose.msra.mxu0 0
    %2306 = vmatprep.subr.bf16.mxu0 0
    %2307 = vmatpush1.bf16.xpose.msra.mxu0 0
    %2308 = vmatprep.subr.bf16.mxu0 0
    %2309 = vmatpush1.bf16.xpose.msra.mxu0 0
    %2310 = vmatprep.subr.bf16.mxu0 0
    %2311 = vmatpush1.bf16.xpose.msra.mxu0 0
    %2312 = vmatprep.subr.bf16.mxu0 0
    %2313 = vmatpush1.bf16.xpose.msra.mxu0 0
    %2314 = vmatprep.subr.bf16.mxu0 0
    %2315 = vmatpush1.bf16.xpose.msra.mxu0 0
    %2316 = vmatprep.subr.bf16.mxu0 0
    %2317 = vmatpush1.bf16.xpose.msra.mxu0 0
    %2318 = vmatprep.subr.bf16.mxu0 0
    %2319 = vmatpush1.bf16.xpose.msra.mxu0 0
    %2320 = vmatprep.subr.bf16.mxu0 0
    %2321 = vmatpush1.bf16.xpose.msra.mxu0 0
    %2322 = vmatprep.mubr.bf16.mxu0 0
    %2323 = vmatmul.mubr.bf16.gmra.mrb[0].mxu0 %v2285
    %v2324 = vpop.f32.mrb[0].mxu0
    %v2325 = vadd.f32 %v1991, %v2324
    %v2326 = vpop.f32.mrb[0].mxu0
    %v2327 = vpop.f32.mrb[0].mxu0
    %v2328 = vadd.f32 %v1992, %v2327
    %v2329 = vpop.f32.mrb[0].mxu0
    %2330 = vdwg.mxu0
    %v2331 = vsel %vm2088, %v2272, -inf
    %2332 = vmax.xlane.f32.xlu0 %v2331
    %v2333 = vpop.xlane.xlu0 %2332
    %v2334 = vsel %vm2088, %v2275, -inf
    %2335 = vmax.xlane.f32.xlu0 %v2334
    %v2336 = vpop.xlane.xlu0 %2335
    %v2337 = vsel %vm2088, %v2325, -inf
    %2338 = vmax.xlane.f32.xlu0 %v2337
    %v2339 = vpop.xlane.xlu0 %2338
    %v2340 = vsel %vm2088, %v2328, -inf
    %2341 = vmax.xlane.f32.xlu0 %v2340
    %v2342 = vpop.xlane.xlu0 %2341
    %v2343 = vsub.f32 %v2272, %v2333
    %v2344 = vsub.f32 %v2275, %v2336
    %v2345 = vsub.f32 %v2325, %v2339
    %v2346 = vsub.f32 %v2328, %v2342
    %v2347 = vmul.f32 %v2343, 1.442695
    %v2348 = vpow.pop %v2347
    %v2349 = vmul.f32 %v2344, 1.442695
    %v2350 = vpow.pop %v2349
    %v2351 = vmul.f32 %v2345, 1.442695
    %v2352 = vpow.pop %v2351
    %v2353 = vmul.f32 %v2346, 1.442695
    %v2354 = vpow.pop %v2353
    %v2355 = vsel %vm2088, %v2348, 0.0
    %2356 = vadd.xlane.f32.xlu0 %v2355
    %v2357 = vpop.xlane.xlu0 %2356
    %v2358 = vsel %vm2088, %v2350, 0.0
    %2359 = vadd.xlane.f32.xlu0 %v2358
    %v2360 = vpop.xlane.xlu0 %2359
    %v2361 = vsel %vm2088, %v2352, 0.0
    %2362 = vadd.xlane.f32.xlu0 %v2361
    %v2363 = vpop.xlane.xlu0 %2362
    %v2364 = vsel %vm2088, %v2354, 0.0
    %2365 = vadd.xlane.f32.xlu0 %v2364
    %v2366 = vpop.xlane.xlu0 %2365
    %v2367 = vrcp.pop %v2357
    %v2368 = vrcp.pop %v2360
    %v2369 = vrcp.pop %v2363
    %v2370 = vrcp.pop %v2366
    %v2371 = vmul.f32 %v2348, %v2367
    %v2372 = vmul.f32 %v2350, %v2368
    %v2373 = vmul.f32 %v2352, %v2369
    %v2374 = vmul.f32 %v2354, %v2370
    %v2375 = vpack.c.bf16 %v2372, %v2371
    %v2376 = vpack.c.bf16 %v2374, %v2373
    %2378 = vrot.lane.b32.xlu0 %v1972, 64
    %v2379 = vpop.permute.xlu0 %2378
    %v2382 = vsel %vm2088, %v2375, 0
    %2384 = vmatprep.subr.bf16.mxu0 0
    %2385 = vmatpush1.bf16.msra.mxu0 %v2379
    %2386 = vmatprep.subr.bf16.mxu0 0
    %2387 = vmatpush1.bf16.msra.mxu0 0
    %2388 = vmatprep.subr.bf16.mxu0 0
    %2389 = vmatpush1.bf16.msra.mxu0 0
    %2390 = vmatprep.subr.bf16.mxu0 0
    %2391 = vmatpush1.bf16.msra.mxu0 0
    %2392 = vmatprep.subr.bf16.mxu0 0
    %2393 = vmatpush1.bf16.msra.mxu0 0
    %2394 = vmatprep.subr.bf16.mxu0 0
    %2395 = vmatpush1.bf16.msra.mxu0 0
    %2396 = vmatprep.subr.bf16.mxu0 0
    %2397 = vmatpush1.bf16.msra.mxu0 0
    %2398 = vmatprep.subr.bf16.mxu0 0
    %2399 = vmatpush1.bf16.msra.mxu0 0
    %2400 = vmatprep.subr.bf16.mxu0 0
    %2401 = vmatpush1.bf16.msra.mxu0 0
    %2402 = vmatprep.subr.bf16.mxu0 0
    %2403 = vmatpush1.bf16.msra.mxu0 0
    %2404 = vmatprep.subr.bf16.mxu0 0
    %2405 = vmatpush1.bf16.msra.mxu0 0
    %2406 = vmatprep.subr.bf16.mxu0 0
    %2407 = vmatpush1.bf16.msra.mxu0 0
    %2408 = vmatprep.subr.bf16.mxu0 0
    %2409 = vmatpush1.bf16.msra.mxu0 0
    %2410 = vmatprep.subr.bf16.mxu0 0
    %2411 = vmatpush1.bf16.msra.mxu0 0
    %2412 = vmatprep.subr.bf16.mxu0 0
    %2413 = vmatpush1.bf16.msra.mxu0 0
    %2414 = vmatprep.subr.bf16.mxu0 0
    %2415 = vmatpush1.bf16.msra.mxu0 0
    %2416 = vmatprep.mubr.bf16.mxu0 0
    %2417 = vmatmul.mubr.bf16.gmra.mrb[0].mxu0 %v2382
    %v2418 = vpop.f32.mrb[0].mxu0
    %v2419 = vadd.f32 0.0, %v2418
    %v2420 = vpop.f32.mrb[0].mxu0
    %v2421 = vpop.f32.mrb[0].mxu0
    %v2422 = vadd.f32 0.0, %v2421
    %v2423 = vpop.f32.mrb[0].mxu0
    %2424 = vdwg.mxu0
    %2426 = vrot.lane.b32.xlu0 %v1981, 64
    %v2427 = vpop.permute.xlu0 %2426
    %v2430 = vsel %vm2088, %v2376, 0
    %2432 = vmatprep.subr.bf16.mxu0 0
    %2433 = vmatpush1.bf16.msra.mxu0 %v2427
    %2434 = vmatprep.subr.bf16.mxu0 0
    %2435 = vmatpush1.bf16.msra.mxu0 0
    %2436 = vmatprep.subr.bf16.mxu0 0
    %2437 = vmatpush1.bf16.msra.mxu0 0
    %2438 = vmatprep.subr.bf16.mxu0 0
    %2439 = vmatpush1.bf16.msra.mxu0 0
    %2440 = vmatprep.subr.bf16.mxu0 0
    %2441 = vmatpush1.bf16.msra.mxu0 0
    %2442 = vmatprep.subr.bf16.mxu0 0
    %2443 = vmatpush1.bf16.msra.mxu0 0
    %2444 = vmatprep.subr.bf16.mxu0 0
    %2445 = vmatpush1.bf16.msra.mxu0 0
    %2446 = vmatprep.subr.bf16.mxu0 0
    %2447 = vmatpush1.bf16.msra.mxu0 0
    %2448 = vmatprep.subr.bf16.mxu0 0
    %2449 = vmatpush1.bf16.msra.mxu0 0
    %2450 = vmatprep.subr.bf16.mxu0 0
    %2451 = vmatpush1.bf16.msra.mxu0 0
    %2452 = vmatprep.subr.bf16.mxu0 0
    %2453 = vmatpush1.bf16.msra.mxu0 0
    %2454 = vmatprep.subr.bf16.mxu0 0
    %2455 = vmatpush1.bf16.msra.mxu0 0
    %2456 = vmatprep.subr.bf16.mxu0 0
    %2457 = vmatpush1.bf16.msra.mxu0 0
    %2458 = vmatprep.subr.bf16.mxu0 0
    %2459 = vmatpush1.bf16.msra.mxu0 0
    %2460 = vmatprep.subr.bf16.mxu0 0
    %2461 = vmatpush1.bf16.msra.mxu0 0
    %2462 = vmatprep.subr.bf16.mxu0 0
    %2463 = vmatpush1.bf16.msra.mxu0 0
    %2464 = vmatprep.mubr.bf16.mxu0 0
    %2465 = vmatmul.mubr.bf16.gmra.mrb[0].mxu0 %v2430
    %v2466 = vpop.f32.mrb[0].mxu0
    %v2467 = vadd.f32 0.0, %v2466
    %v2468 = vpop.f32.mrb[0].mxu0
    %v2469 = vpop.f32.mrb[0].mxu0
    %v2470 = vadd.f32 0.0, %v2469
    %v2471 = vpop.f32.mrb[0].mxu0
    %2472 = vdwg.mxu0
    %v2473 = vpack.c.bf16 %v2422, %v2419
    %v2474 = vpack.c.bf16 %v2470, %v2467
    %v2476 = vsel %vm1993, %v1967, 0
    %v2479 = vsel %vm1993, %v1970, 0
    %2481 = vmatprep.subr.bf16.mxu0 0
    %2482 = vmatpush1.bf16.xpose.msra.mxu0 %v2479
    %2483 = vmatprep.subr.bf16.mxu0 0
    %2484 = vmatpush1.bf16.xpose.msra.mxu0 0
    %2485 = vmatprep.subr.bf16.mxu0 0
    %2486 = vmatpush1.bf16.xpose.msra.mxu0 0
    %2487 = vmatprep.subr.bf16.mxu0 0
    %2488 = vmatpush1.bf16.xpose.msra.mxu0 0
    %2489 = vmatprep.subr.bf16.mxu0 0
    %2490 = vmatpush1.bf16.xpose.msra.mxu0 0
    %2491 = vmatprep.subr.bf16.mxu0 0
    %2492 = vmatpush1.bf16.xpose.msra.mxu0 0
    %2493 = vmatprep.subr.bf16.mxu0 0
    %2494 = vmatpush1.bf16.xpose.msra.mxu0 0
    %2495 = vmatprep.subr.bf16.mxu0 0
    %2496 = vmatpush1.bf16.xpose.msra.mxu0 0
    %2497 = vmatprep.subr.bf16.mxu0 0
    %2498 = vmatpush1.bf16.xpose.msra.mxu0 0
    %2499 = vmatprep.subr.bf16.mxu0 0
    %2500 = vmatpush1.bf16.xpose.msra.mxu0 0
    %2501 = vmatprep.subr.bf16.mxu0 0
    %2502 = vmatpush1.bf16.xpose.msra.mxu0 0
    %2503 = vmatprep.subr.bf16.mxu0 0
    %2504 = vmatpush1.bf16.xpose.msra.mxu0 0
    %2505 = vmatprep.subr.bf16.mxu0 0
    %2506 = vmatpush1.bf16.xpose.msra.mxu0 0
    %2507 = vmatprep.subr.bf16.mxu0 0
    %2508 = vmatpush1.bf16.xpose.msra.mxu0 0
    %2509 = vmatprep.subr.bf16.mxu0 0
    %2510 = vmatpush1.bf16.xpose.msra.mxu0 0
    %2511 = vmatprep.subr.bf16.mxu0 0
    %2512 = vmatpush1.bf16.xpose.msra.mxu0 0
    %2513 = vmatprep.mubr.bf16.mxu0 0
    %2514 = vmatmul.mubr.bf16.gmra.mrb[0].mxu0 %v2476
    %v2515 = vpop.f32.mrb[0].mxu0
    %v2516 = vadd.f32 %v1991, %v2515
    %v2517 = vpop.f32.mrb[0].mxu0
    %v2518 = vpop.f32.mrb[0].mxu0
    %v2519 = vadd.f32 %v1992, %v2518
    %v2520 = vpop.f32.mrb[0].mxu0
    %2521 = vdwg.mxu0
    %v2523 = vsel %vm1993, %v1976, 0
    %v2526 = vsel %vm1993, %v1979, 0
    %2528 = vmatprep.subr.bf16.mxu0 0
    %2529 = vmatpush1.bf16.xpose.msra.mxu0 %v2526
    %2530 = vmatprep.subr.bf16.mxu0 0
    %2531 = vmatpush1.bf16.xpose.msra.mxu0 0
    %2532 = vmatprep.subr.bf16.mxu0 0
    %2533 = vmatpush1.bf16.xpose.msra.mxu0 0
    %2534 = vmatprep.subr.bf16.mxu0 0
    %2535 = vmatpush1.bf16.xpose.msra.mxu0 0
    %2536 = vmatprep.subr.bf16.mxu0 0
    %2537 = vmatpush1.bf16.xpose.msra.mxu0 0
    %2538 = vmatprep.subr.bf16.mxu0 0
    %2539 = vmatpush1.bf16.xpose.msra.mxu0 0
    %2540 = vmatprep.subr.bf16.mxu0 0
    %2541 = vmatpush1.bf16.xpose.msra.mxu0 0
    %2542 = vmatprep.subr.bf16.mxu0 0
    %2543 = vmatpush1.bf16.xpose.msra.mxu0 0
    %2544 = vmatprep.subr.bf16.mxu0 0
    %2545 = vmatpush1.bf16.xpose.msra.mxu0 0
    %2546 = vmatprep.subr.bf16.mxu0 0
    %2547 = vmatpush1.bf16.xpose.msra.mxu0 0
    %2548 = vmatprep.subr.bf16.mxu0 0
    %2549 = vmatpush1.bf16.xpose.msra.mxu0 0
    %2550 = vmatprep.subr.bf16.mxu0 0
    %2551 = vmatpush1.bf16.xpose.msra.mxu0 0
    %2552 = vmatprep.subr.bf16.mxu0 0
    %2553 = vmatpush1.bf16.xpose.msra.mxu0 0
    %2554 = vmatprep.subr.bf16.mxu0 0
    %2555 = vmatpush1.bf16.xpose.msra.mxu0 0
    %2556 = vmatprep.subr.bf16.mxu0 0
    %2557 = vmatpush1.bf16.xpose.msra.mxu0 0
    %2558 = vmatprep.subr.bf16.mxu0 0
    %2559 = vmatpush1.bf16.xpose.msra.mxu0 0
    %2560 = vmatprep.mubr.bf16.mxu0 0
    %2561 = vmatmul.mubr.bf16.gmra.mrb[0].mxu0 %v2523
    %v2562 = vpop.f32.mrb[0].mxu0
    %v2563 = vadd.f32 %v1991, %v2562
    %v2564 = vpop.f32.mrb[0].mxu0
    %v2565 = vpop.f32.mrb[0].mxu0
    %v2566 = vadd.f32 %v1992, %v2565
    %v2567 = vpop.f32.mrb[0].mxu0
    %2568 = vdwg.mxu0
    %v2569 = vsel %vm2088, %v2516, -inf
    %2570 = vmax.xlane.f32.xlu0 %v2569
    %v2571 = vpop.xlane.xlu0 %2570
    %v2572 = vsel %vm2088, %v2519, -inf
    %2573 = vmax.xlane.f32.xlu0 %v2572
    %v2574 = vpop.xlane.xlu0 %2573
    %v2575 = vsel %vm2088, %v2563, -inf
    %2576 = vmax.xlane.f32.xlu0 %v2575
    %v2577 = vpop.xlane.xlu0 %2576
    %v2578 = vsel %vm2088, %v2566, -inf
    %2579 = vmax.xlane.f32.xlu0 %v2578
    %v2580 = vpop.xlane.xlu0 %2579
    %v2581 = vsub.f32 %v2516, %v2571
    %v2582 = vsub.f32 %v2519, %v2574
    %v2583 = vsub.f32 %v2563, %v2577
    %v2584 = vsub.f32 %v2566, %v2580
    %v2585 = vmul.f32 %v2581, 1.442695
    %v2586 = vpow.pop %v2585
    %v2587 = vmul.f32 %v2582, 1.442695
    %v2588 = vpow.pop %v2587
    %v2589 = vmul.f32 %v2583, 1.442695
    %v2590 = vpow.pop %v2589
    %v2591 = vmul.f32 %v2584, 1.442695
    %v2592 = vpow.pop %v2591
    %v2593 = vsel %vm2088, %v2586, 0.0
    %2594 = vadd.xlane.f32.xlu0 %v2593
    %v2595 = vpop.xlane.xlu0 %2594
    %v2596 = vsel %vm2088, %v2588, 0.0
    %2597 = vadd.xlane.f32.xlu0 %v2596
    %v2598 = vpop.xlane.xlu0 %2597
    %v2599 = vsel %vm2088, %v2590, 0.0
    %2600 = vadd.xlane.f32.xlu0 %v2599
    %v2601 = vpop.xlane.xlu0 %2600
    %v2602 = vsel %vm2088, %v2592, 0.0
    %2603 = vadd.xlane.f32.xlu0 %v2602
    %v2604 = vpop.xlane.xlu0 %2603
    %v2605 = vrcp.pop %v2595
    %v2606 = vrcp.pop %v2598
    %v2607 = vrcp.pop %v2601
    %v2608 = vrcp.pop %v2604
    %v2609 = vmul.f32 %v2586, %v2605
    %v2610 = vmul.f32 %v2588, %v2606
    %v2611 = vmul.f32 %v2590, %v2607
    %v2612 = vmul.f32 %v2592, %v2608
    %v2613 = vpack.c.bf16 %v2610, %v2609
    %v2614 = vpack.c.bf16 %v2612, %v2611
    %v2616 = vsel %vm2088, %v2613, 0
    %2618 = vmatprep.subr.bf16.mxu0 0
    %2619 = vmatpush1.bf16.msra.mxu0 %v1973
    %2620 = vmatprep.subr.bf16.mxu0 0
    %2621 = vmatpush1.bf16.msra.mxu0 0
    %2622 = vmatprep.subr.bf16.mxu0 0
    %2623 = vmatpush1.bf16.msra.mxu0 0
    %2624 = vmatprep.subr.bf16.mxu0 0
    %2625 = vmatpush1.bf16.msra.mxu0 0
    %2626 = vmatprep.subr.bf16.mxu0 0
    %2627 = vmatpush1.bf16.msra.mxu0 0
    %2628 = vmatprep.subr.bf16.mxu0 0
    %2629 = vmatpush1.bf16.msra.mxu0 0
    %2630 = vmatprep.subr.bf16.mxu0 0
    %2631 = vmatpush1.bf16.msra.mxu0 0
    %2632 = vmatprep.subr.bf16.mxu0 0
    %2633 = vmatpush1.bf16.msra.mxu0 0
    %2634 = vmatprep.subr.bf16.mxu0 0
    %2635 = vmatpush1.bf16.msra.mxu0 0
    %2636 = vmatprep.subr.bf16.mxu0 0
    %2637 = vmatpush1.bf16.msra.mxu0 0
    %2638 = vmatprep.subr.bf16.mxu0 0
    %2639 = vmatpush1.bf16.msra.mxu0 0
    %2640 = vmatprep.subr.bf16.mxu0 0
    %2641 = vmatpush1.bf16.msra.mxu0 0
    %2642 = vmatprep.subr.bf16.mxu0 0
    %2643 = vmatpush1.bf16.msra.mxu0 0
    %2644 = vmatprep.subr.bf16.mxu0 0
    %2645 = vmatpush1.bf16.msra.mxu0 0
    %2646 = vmatprep.subr.bf16.mxu0 0
    %2647 = vmatpush1.bf16.msra.mxu0 0
    %2648 = vmatprep.subr.bf16.mxu0 0
    %2649 = vmatpush1.bf16.msra.mxu0 0
    %2650 = vmatprep.mubr.bf16.mxu0 0
    %2651 = vmatmul.mubr.bf16.gmra.mrb[0].mxu0 %v2616
    %v2652 = vpop.f32.mrb[0].mxu0
    %v2653 = vadd.f32 0.0, %v2652
    %v2654 = vpop.f32.mrb[0].mxu0
    %v2655 = vpop.f32.mrb[0].mxu0
    %v2656 = vadd.f32 0.0, %v2655
    %v2657 = vpop.f32.mrb[0].mxu0
    %2658 = vdwg.mxu0
    %v2660 = vsel %vm2088, %v2614, 0
    %2662 = vmatprep.subr.bf16.mxu0 0
    %2663 = vmatpush1.bf16.msra.mxu0 %v1982
    %2664 = vmatprep.subr.bf16.mxu0 0
    %2665 = vmatpush1.bf16.msra.mxu0 0
    %2666 = vmatprep.subr.bf16.mxu0 0
    %2667 = vmatpush1.bf16.msra.mxu0 0
    %2668 = vmatprep.subr.bf16.mxu0 0
    %2669 = vmatpush1.bf16.msra.mxu0 0
    %2670 = vmatprep.subr.bf16.mxu0 0
    %2671 = vmatpush1.bf16.msra.mxu0 0
    %2672 = vmatprep.subr.bf16.mxu0 0
    %2673 = vmatpush1.bf16.msra.mxu0 0
    %2674 = vmatprep.subr.bf16.mxu0 0
    %2675 = vmatpush1.bf16.msra.mxu0 0
    %2676 = vmatprep.subr.bf16.mxu0 0
    %2677 = vmatpush1.bf16.msra.mxu0 0
    %2678 = vmatprep.subr.bf16.mxu0 0
    %2679 = vmatpush1.bf16.msra.mxu0 0
    %2680 = vmatprep.subr.bf16.mxu0 0
    %2681 = vmatpush1.bf16.msra.mxu0 0
    %2682 = vmatprep.subr.bf16.mxu0 0
    %2683 = vmatpush1.bf16.msra.mxu0 0
    %2684 = vmatprep.subr.bf16.mxu0 0
    %2685 = vmatpush1.bf16.msra.mxu0 0
    %2686 = vmatprep.subr.bf16.mxu0 0
    %2687 = vmatpush1.bf16.msra.mxu0 0
    %2688 = vmatprep.subr.bf16.mxu0 0
    %2689 = vmatpush1.bf16.msra.mxu0 0
    %2690 = vmatprep.subr.bf16.mxu0 0
    %2691 = vmatpush1.bf16.msra.mxu0 0
    %2692 = vmatprep.subr.bf16.mxu0 0
    %2693 = vmatpush1.bf16.msra.mxu0 0
    %2694 = vmatprep.mubr.bf16.mxu0 0
    %2695 = vmatmul.mubr.bf16.gmra.mrb[0].mxu0 %v2660
    %v2696 = vpop.f32.mrb[0].mxu0
    %v2697 = vadd.f32 0.0, %v2696
    %v2698 = vpop.f32.mrb[0].mxu0
    %v2699 = vpop.f32.mrb[0].mxu0
    %v2700 = vadd.f32 0.0, %v2699
    %v2701 = vpop.f32.mrb[0].mxu0
    %2702 = vdwg.mxu0
    %v2703 = vpack.c.bf16 %v2656, %v2653
    %v2704 = vpack.c.bf16 %v2700, %v2697
    %2706 = vrot.lane.b32.xlu0 %v1967, 64
    %v2707 = vpop.permute.xlu0 %2706
    %2709 = vrot.lane.b32.xlu0 %v1970, 64
    %v2710 = vpop.permute.xlu0 %2709
    %v2712 = vsel %vm1993, %v2707, 0
    %v2715 = vsel %vm1993, %v2710, 0
    %2717 = vmatprep.subr.bf16.mxu0 0
    %2718 = vmatpush1.bf16.xpose.msra.mxu0 %v2715
    %2719 = vmatprep.subr.bf16.mxu0 0
    %2720 = vmatpush1.bf16.xpose.msra.mxu0 0
    %2721 = vmatprep.subr.bf16.mxu0 0
    %2722 = vmatpush1.bf16.xpose.msra.mxu0 0
    %2723 = vmatprep.subr.bf16.mxu0 0
    %2724 = vmatpush1.bf16.xpose.msra.mxu0 0
    %2725 = vmatprep.subr.bf16.mxu0 0
    %2726 = vmatpush1.bf16.xpose.msra.mxu0 0
    %2727 = vmatprep.subr.bf16.mxu0 0
    %2728 = vmatpush1.bf16.xpose.msra.mxu0 0
    %2729 = vmatprep.subr.bf16.mxu0 0
    %2730 = vmatpush1.bf16.xpose.msra.mxu0 0
    %2731 = vmatprep.subr.bf16.mxu0 0
    %2732 = vmatpush1.bf16.xpose.msra.mxu0 0
    %2733 = vmatprep.subr.bf16.mxu0 0
    %2734 = vmatpush1.bf16.xpose.msra.mxu0 0
    %2735 = vmatprep.subr.bf16.mxu0 0
    %2736 = vmatpush1.bf16.xpose.msra.mxu0 0
    %2737 = vmatprep.subr.bf16.mxu0 0
    %2738 = vmatpush1.bf16.xpose.msra.mxu0 0
    %2739 = vmatprep.subr.bf16.mxu0 0
    %2740 = vmatpush1.bf16.xpose.msra.mxu0 0
    %2741 = vmatprep.subr.bf16.mxu0 0
    %2742 = vmatpush1.bf16.xpose.msra.mxu0 0
    %2743 = vmatprep.subr.bf16.mxu0 0
    %2744 = vmatpush1.bf16.xpose.msra.mxu0 0
    %2745 = vmatprep.subr.bf16.mxu0 0
    %2746 = vmatpush1.bf16.xpose.msra.mxu0 0
    %2747 = vmatprep.subr.bf16.mxu0 0
    %2748 = vmatpush1.bf16.xpose.msra.mxu0 0
    %2749 = vmatprep.mubr.bf16.mxu0 0
    %2750 = vmatmul.mubr.bf16.gmra.mrb[0].mxu0 %v2712
    %v2751 = vpop.f32.mrb[0].mxu0
    %v2752 = vadd.f32 %v1991, %v2751
    %v2753 = vpop.f32.mrb[0].mxu0
    %v2754 = vpop.f32.mrb[0].mxu0
    %v2755 = vadd.f32 %v1992, %v2754
    %v2756 = vpop.f32.mrb[0].mxu0
    %2757 = vdwg.mxu0
    %2759 = vrot.lane.b32.xlu0 %v1976, 64
    %v2760 = vpop.permute.xlu0 %2759
    %2762 = vrot.lane.b32.xlu0 %v1979, 64
    %v2763 = vpop.permute.xlu0 %2762
    %v2765 = vsel %vm1993, %v2760, 0
    %v2768 = vsel %vm1993, %v2763, 0
    %2770 = vmatprep.subr.bf16.mxu0 0
    %2771 = vmatpush1.bf16.xpose.msra.mxu0 %v2768
    %2772 = vmatprep.subr.bf16.mxu0 0
    %2773 = vmatpush1.bf16.xpose.msra.mxu0 0
    %2774 = vmatprep.subr.bf16.mxu0 0
    %2775 = vmatpush1.bf16.xpose.msra.mxu0 0
    %2776 = vmatprep.subr.bf16.mxu0 0
    %2777 = vmatpush1.bf16.xpose.msra.mxu0 0
    %2778 = vmatprep.subr.bf16.mxu0 0
    %2779 = vmatpush1.bf16.xpose.msra.mxu0 0
    %2780 = vmatprep.subr.bf16.mxu0 0
    %2781 = vmatpush1.bf16.xpose.msra.mxu0 0
    %2782 = vmatprep.subr.bf16.mxu0 0
    %2783 = vmatpush1.bf16.xpose.msra.mxu0 0
    %2784 = vmatprep.subr.bf16.mxu0 0
    %2785 = vmatpush1.bf16.xpose.msra.mxu0 0
    %2786 = vmatprep.subr.bf16.mxu0 0
    %2787 = vmatpush1.bf16.xpose.msra.mxu0 0
    %2788 = vmatprep.subr.bf16.mxu0 0
    %2789 = vmatpush1.bf16.xpose.msra.mxu0 0
    %2790 = vmatprep.subr.bf16.mxu0 0
    %2791 = vmatpush1.bf16.xpose.msra.mxu0 0
    %2792 = vmatprep.subr.bf16.mxu0 0
    %2793 = vmatpush1.bf16.xpose.msra.mxu0 0
    %2794 = vmatprep.subr.bf16.mxu0 0
    %2795 = vmatpush1.bf16.xpose.msra.mxu0 0
    %2796 = vmatprep.subr.bf16.mxu0 0
    %2797 = vmatpush1.bf16.xpose.msra.mxu0 0
    %2798 = vmatprep.subr.bf16.mxu0 0
    %2799 = vmatpush1.bf16.xpose.msra.mxu0 0
    %2800 = vmatprep.subr.bf16.mxu0 0
    %2801 = vmatpush1.bf16.xpose.msra.mxu0 0
    %2802 = vmatprep.mubr.bf16.mxu0 0
    %2803 = vmatmul.mubr.bf16.gmra.mrb[0].mxu0 %v2765
    %v2804 = vpop.f32.mrb[0].mxu0
    %v2805 = vadd.f32 %v1991, %v2804
    %v2806 = vpop.f32.mrb[0].mxu0
    %v2807 = vpop.f32.mrb[0].mxu0
    %v2808 = vadd.f32 %v1992, %v2807
    %v2809 = vpop.f32.mrb[0].mxu0
    %2810 = vdwg.mxu0
    %v2811 = vsel %vm2088, %v2752, -inf
    %2812 = vmax.xlane.f32.xlu0 %v2811
    %v2813 = vpop.xlane.xlu0 %2812
    %v2814 = vsel %vm2088, %v2755, -inf
    %2815 = vmax.xlane.f32.xlu0 %v2814
    %v2816 = vpop.xlane.xlu0 %2815
    %v2817 = vsel %vm2088, %v2805, -inf
    %2818 = vmax.xlane.f32.xlu0 %v2817
    %v2819 = vpop.xlane.xlu0 %2818
    %v2820 = vsel %vm2088, %v2808, -inf
    %2821 = vmax.xlane.f32.xlu0 %v2820
    %v2822 = vpop.xlane.xlu0 %2821
    %v2823 = vsub.f32 %v2752, %v2813
    %v2824 = vsub.f32 %v2755, %v2816
    %v2825 = vsub.f32 %v2805, %v2819
    %v2826 = vsub.f32 %v2808, %v2822
    %v2827 = vmul.f32 %v2823, 1.442695
    %v2828 = vpow.pop %v2827
    %v2829 = vmul.f32 %v2824, 1.442695
    %v2830 = vpow.pop %v2829
    %v2831 = vmul.f32 %v2825, 1.442695
    %v2832 = vpow.pop %v2831
    %v2833 = vmul.f32 %v2826, 1.442695
    %v2834 = vpow.pop %v2833
    %v2835 = vsel %vm2088, %v2828, 0.0
    %2836 = vadd.xlane.f32.xlu0 %v2835
    %v2837 = vpop.xlane.xlu0 %2836
    %v2838 = vsel %vm2088, %v2830, 0.0
    %2839 = vadd.xlane.f32.xlu0 %v2838
    %v2840 = vpop.xlane.xlu0 %2839
    %v2841 = vsel %vm2088, %v2832, 0.0
    %2842 = vadd.xlane.f32.xlu0 %v2841
    %v2843 = vpop.xlane.xlu0 %2842
    %v2844 = vsel %vm2088, %v2834, 0.0
    %2845 = vadd.xlane.f32.xlu0 %v2844
    %v2846 = vpop.xlane.xlu0 %2845
    %v2847 = vrcp.pop %v2837
    %v2848 = vrcp.pop %v2840
    %v2849 = vrcp.pop %v2843
    %v2850 = vrcp.pop %v2846
    %v2851 = vmul.f32 %v2828, %v2847
    %v2852 = vmul.f32 %v2830, %v2848
    %v2853 = vmul.f32 %v2832, %v2849
    %v2854 = vmul.f32 %v2834, %v2850
    %v2855 = vpack.c.bf16 %v2852, %v2851
    %v2856 = vpack.c.bf16 %v2854, %v2853
    %2858 = vrot.lane.b32.xlu0 %v1973, 64
    %v2859 = vpop.permute.xlu0 %2858
    %v2862 = vsel %vm2088, %v2855, 0
    %2864 = vmatprep.subr.bf16.mxu0 0
    %2865 = vmatpush1.bf16.msra.mxu0 %v2859
    %2866 = vmatprep.subr.bf16.mxu0 0
    %2867 = vmatpush1.bf16.msra.mxu0 0
    %2868 = vmatprep.subr.bf16.mxu0 0
    %2869 = vmatpush1.bf16.msra.mxu0 0
    %2870 = vmatprep.subr.bf16.mxu0 0
    %2871 = vmatpush1.bf16.msra.mxu0 0
    %2872 = vmatprep.subr.bf16.mxu0 0
    %2873 = vmatpush1.bf16.msra.mxu0 0
    %2874 = vmatprep.subr.bf16.mxu0 0
    %2875 = vmatpush1.bf16.msra.mxu0 0
    %2876 = vmatprep.subr.bf16.mxu0 0
    %2877 = vmatpush1.bf16.msra.mxu0 0
    %2878 = vmatprep.subr.bf16.mxu0 0
    %2879 = vmatpush1.bf16.msra.mxu0 0
    %2880 = vmatprep.subr.bf16.mxu0 0
    %2881 = vmatpush1.bf16.msra.mxu0 0
    %2882 = vmatprep.subr.bf16.mxu0 0
    %2883 = vmatpush1.bf16.msra.mxu0 0
    %2884 = vmatprep.subr.bf16.mxu0 0
    %2885 = vmatpush1.bf16.msra.mxu0 0
    %2886 = vmatprep.subr.bf16.mxu0 0
    %2887 = vmatpush1.bf16.msra.mxu0 0
    %2888 = vmatprep.subr.bf16.mxu0 0
    %2889 = vmatpush1.bf16.msra.mxu0 0
    %2890 = vmatprep.subr.bf16.mxu0 0
    %2891 = vmatpush1.bf16.msra.mxu0 0
    %2892 = vmatprep.subr.bf16.mxu0 0
    %2893 = vmatpush1.bf16.msra.mxu0 0
    %2894 = vmatprep.subr.bf16.mxu0 0
    %2895 = vmatpush1.bf16.msra.mxu0 0
    %2896 = vmatprep.mubr.bf16.mxu0 0
    %2897 = vmatmul.mubr.bf16.gmra.mrb[0].mxu0 %v2862
    %v2898 = vpop.f32.mrb[0].mxu0
    %v2899 = vadd.f32 0.0, %v2898
    %v2900 = vpop.f32.mrb[0].mxu0
    %v2901 = vpop.f32.mrb[0].mxu0
    %v2902 = vadd.f32 0.0, %v2901
    %v2903 = vpop.f32.mrb[0].mxu0
    %2904 = vdwg.mxu0
    %2906 = vrot.lane.b32.xlu0 %v1982, 64
    %v2907 = vpop.permute.xlu0 %2906
    %v2910 = vsel %vm2088, %v2856, 0
    %2912 = vmatprep.subr.bf16.mxu0 0
    %2913 = vmatpush1.bf16.msra.mxu0 %v2907
    %2914 = vmatprep.subr.bf16.mxu0 0
    %2915 = vmatpush1.bf16.msra.mxu0 0
    %2916 = vmatprep.subr.bf16.mxu0 0
    %2917 = vmatpush1.bf16.msra.mxu0 0
    %2918 = vmatprep.subr.bf16.mxu0 0
    %2919 = vmatpush1.bf16.msra.mxu0 0
    %2920 = vmatprep.subr.bf16.mxu0 0
    %2921 = vmatpush1.bf16.msra.mxu0 0
    %2922 = vmatprep.subr.bf16.mxu0 0
    %2923 = vmatpush1.bf16.msra.mxu0 0
    %2924 = vmatprep.subr.bf16.mxu0 0
    %2925 = vmatpush1.bf16.msra.mxu0 0
    %2926 = vmatprep.subr.bf16.mxu0 0
    %2927 = vmatpush1.bf16.msra.mxu0 0
    %2928 = vmatprep.subr.bf16.mxu0 0
    %2929 = vmatpush1.bf16.msra.mxu0 0
    %2930 = vmatprep.subr.bf16.mxu0 0
    %2931 = vmatpush1.bf16.msra.mxu0 0
    %2932 = vmatprep.subr.bf16.mxu0 0
    %2933 = vmatpush1.bf16.msra.mxu0 0
    %2934 = vmatprep.subr.bf16.mxu0 0
    %2935 = vmatpush1.bf16.msra.mxu0 0
    %2936 = vmatprep.subr.bf16.mxu0 0
    %2937 = vmatpush1.bf16.msra.mxu0 0
    %2938 = vmatprep.subr.bf16.mxu0 0
    %2939 = vmatpush1.bf16.msra.mxu0 0
    %2940 = vmatprep.subr.bf16.mxu0 0
    %2941 = vmatpush1.bf16.msra.mxu0 0
    %2942 = vmatprep.subr.bf16.mxu0 0
    %2943 = vmatpush1.bf16.msra.mxu0 0
    %2944 = vmatprep.mubr.bf16.mxu0 0
    %2945 = vmatmul.mubr.bf16.gmra.mrb[0].mxu0 %v2910
    %v2946 = vpop.f32.mrb[0].mxu0
    %v2947 = vadd.f32 0.0, %v2946
    %v2948 = vpop.f32.mrb[0].mxu0
    %v2949 = vpop.f32.mrb[0].mxu0
    %v2950 = vadd.f32 0.0, %v2949
    %v2951 = vpop.f32.mrb[0].mxu0
    %2952 = vdwg.mxu0
    %v2953 = vpack.c.bf16 %v2902, %v2899
    %v2954 = vpack.c.bf16 %v2950, %v2947
    %v2956 = vsel %vm1993, %v1968, 0
    %v2959 = vsel %vm1993, %v1971, 0
    %2961 = vmatprep.subr.bf16.mxu0 0
    %2962 = vmatpush1.bf16.xpose.msra.mxu0 %v2959
    %2963 = vmatprep.subr.bf16.mxu0 0
    %2964 = vmatpush1.bf16.xpose.msra.mxu0 0
    %2965 = vmatprep.subr.bf16.mxu0 0
    %2966 = vmatpush1.bf16.xpose.msra.mxu0 0
    %2967 = vmatprep.subr.bf16.mxu0 0
    %2968 = vmatpush1.bf16.xpose.msra.mxu0 0
    %2969 = vmatprep.subr.bf16.mxu0 0
    %2970 = vmatpush1.bf16.xpose.msra.mxu0 0
    %2971 = vmatprep.subr.bf16.mxu0 0
    %2972 = vmatpush1.bf16.xpose.msra.mxu0 0
    %2973 = vmatprep.subr.bf16.mxu0 0
    %2974 = vmatpush1.bf16.xpose.msra.mxu0 0
    %2975 = vmatprep.subr.bf16.mxu0 0
    %2976 = vmatpush1.bf16.xpose.msra.mxu0 0
    %2977 = vmatprep.subr.bf16.mxu0 0
    %2978 = vmatpush1.bf16.xpose.msra.mxu0 0
    %2979 = vmatprep.subr.bf16.mxu0 0
    %2980 = vmatpush1.bf16.xpose.msra.mxu0 0
    %2981 = vmatprep.subr.bf16.mxu0 0
    %2982 = vmatpush1.bf16.xpose.msra.mxu0 0
    %2983 = vmatprep.subr.bf16.mxu0 0
    %2984 = vmatpush1.bf16.xpose.msra.mxu0 0
    %2985 = vmatprep.subr.bf16.mxu0 0
    %2986 = vmatpush1.bf16.xpose.msra.mxu0 0
    %2987 = vmatprep.subr.bf16.mxu0 0
    %2988 = vmatpush1.bf16.xpose.msra.mxu0 0
    %2989 = vmatprep.subr.bf16.mxu0 0
    %2990 = vmatpush1.bf16.xpose.msra.mxu0 0
    %2991 = vmatprep.subr.bf16.mxu0 0
    %2992 = vmatpush1.bf16.xpose.msra.mxu0 0
    %2993 = vmatprep.mubr.bf16.mxu0 0
    %2994 = vmatmul.mubr.bf16.gmra.mrb[0].mxu0 %v2956
    %v2995 = vpop.f32.mrb[0].mxu0
    %v2996 = vadd.f32 %v1991, %v2995
    %v2997 = vpop.f32.mrb[0].mxu0
    %v2998 = vpop.f32.mrb[0].mxu0
    %v2999 = vadd.f32 %v1992, %v2998
    %v3000 = vpop.f32.mrb[0].mxu0
    %3001 = vdwg.mxu0
    %v3003 = vsel %vm1993, %v1977, 0
    %v3006 = vsel %vm1993, %v1980, 0
    %3008 = vmatprep.subr.bf16.mxu0 0
    %3009 = vmatpush1.bf16.xpose.msra.mxu0 %v3006
    %3010 = vmatprep.subr.bf16.mxu0 0
    %3011 = vmatpush1.bf16.xpose.msra.mxu0 0
    %3012 = vmatprep.subr.bf16.mxu0 0
    %3013 = vmatpush1.bf16.xpose.msra.mxu0 0
    %3014 = vmatprep.subr.bf16.mxu0 0
    %3015 = vmatpush1.bf16.xpose.msra.mxu0 0
    %3016 = vmatprep.subr.bf16.mxu0 0
    %3017 = vmatpush1.bf16.xpose.msra.mxu0 0
    %3018 = vmatprep.subr.bf16.mxu0 0
    %3019 = vmatpush1.bf16.xpose.msra.mxu0 0
    %3020 = vmatprep.subr.bf16.mxu0 0
    %3021 = vmatpush1.bf16.xpose.msra.mxu0 0
    %3022 = vmatprep.subr.bf16.mxu0 0
    %3023 = vmatpush1.bf16.xpose.msra.mxu0 0
    %3024 = vmatprep.subr.bf16.mxu0 0
    %3025 = vmatpush1.bf16.xpose.msra.mxu0 0
    %3026 = vmatprep.subr.bf16.mxu0 0
    %3027 = vmatpush1.bf16.xpose.msra.mxu0 0
    %3028 = vmatprep.subr.bf16.mxu0 0
    %3029 = vmatpush1.bf16.xpose.msra.mxu0 0
    %3030 = vmatprep.subr.bf16.mxu0 0
    %3031 = vmatpush1.bf16.xpose.msra.mxu0 0
    %3032 = vmatprep.subr.bf16.mxu0 0
    %3033 = vmatpush1.bf16.xpose.msra.mxu0 0
    %3034 = vmatprep.subr.bf16.mxu0 0
    %3035 = vmatpush1.bf16.xpose.msra.mxu0 0
    %3036 = vmatprep.subr.bf16.mxu0 0
    %3037 = vmatpush1.bf16.xpose.msra.mxu0 0
    %3038 = vmatprep.subr.bf16.mxu0 0
    %3039 = vmatpush1.bf16.xpose.msra.mxu0 0
    %3040 = vmatprep.mubr.bf16.mxu0 0
    %3041 = vmatmul.mubr.bf16.gmra.mrb[0].mxu0 %v3003
    %v3042 = vpop.f32.mrb[0].mxu0
    %v3043 = vadd.f32 %v1991, %v3042
    %v3044 = vpop.f32.mrb[0].mxu0
    %v3045 = vpop.f32.mrb[0].mxu0
    %v3046 = vadd.f32 %v1992, %v3045
    %v3047 = vpop.f32.mrb[0].mxu0
    %3048 = vdwg.mxu0
    %v3049 = vsel %vm2088, %v2996, -inf
    %3050 = vmax.xlane.f32.xlu0 %v3049
    %v3051 = vpop.xlane.xlu0 %3050
    %v3052 = vsel %vm2088, %v2999, -inf
    %3053 = vmax.xlane.f32.xlu0 %v3052
    %v3054 = vpop.xlane.xlu0 %3053
    %v3055 = vsel %vm2088, %v3043, -inf
    %3056 = vmax.xlane.f32.xlu0 %v3055
    %v3057 = vpop.xlane.xlu0 %3056
    %v3058 = vsel %vm2088, %v3046, -inf
    %3059 = vmax.xlane.f32.xlu0 %v3058
    %v3060 = vpop.xlane.xlu0 %3059
    %v3061 = vsub.f32 %v2996, %v3051
    %v3062 = vsub.f32 %v2999, %v3054
    %v3063 = vsub.f32 %v3043, %v3057
    %v3064 = vsub.f32 %v3046, %v3060
    %v3065 = vmul.f32 %v3061, 1.442695
    %v3066 = vpow.pop %v3065
    %v3067 = vmul.f32 %v3062, 1.442695
    %v3068 = vpow.pop %v3067
    %v3069 = vmul.f32 %v3063, 1.442695
    %v3070 = vpow.pop %v3069
    %v3071 = vmul.f32 %v3064, 1.442695
    %v3072 = vpow.pop %v3071
    %v3073 = vsel %vm2088, %v3066, 0.0
    %3074 = vadd.xlane.f32.xlu0 %v3073
    %v3075 = vpop.xlane.xlu0 %3074
    %v3076 = vsel %vm2088, %v3068, 0.0
    %3077 = vadd.xlane.f32.xlu0 %v3076
    %v3078 = vpop.xlane.xlu0 %3077
    %v3079 = vsel %vm2088, %v3070, 0.0
    %3080 = vadd.xlane.f32.xlu0 %v3079
    %v3081 = vpop.xlane.xlu0 %3080
    %v3082 = vsel %vm2088, %v3072, 0.0
    %3083 = vadd.xlane.f32.xlu0 %v3082
    %v3084 = vpop.xlane.xlu0 %3083
    %v3085 = vrcp.pop %v3075
    %v3086 = vrcp.pop %v3078
    %v3087 = vrcp.pop %v3081
    %v3088 = vrcp.pop %v3084
    %v3089 = vmul.f32 %v3066, %v3085
    %v3090 = vmul.f32 %v3068, %v3086
    %v3091 = vmul.f32 %v3070, %v3087
    %v3092 = vmul.f32 %v3072, %v3088
    %v3093 = vpack.c.bf16 %v3090, %v3089
    %v3094 = vpack.c.bf16 %v3092, %v3091
    %v3096 = vsel %vm2088, %v3093, 0
    %3098 = vmatprep.subr.bf16.mxu0 0
    %3099 = vmatpush1.bf16.msra.mxu0 %v1974
    %3100 = vmatprep.subr.bf16.mxu0 0
    %3101 = vmatpush1.bf16.msra.mxu0 0
    %3102 = vmatprep.subr.bf16.mxu0 0
    %3103 = vmatpush1.bf16.msra.mxu0 0
    %3104 = vmatprep.subr.bf16.mxu0 0
    %3105 = vmatpush1.bf16.msra.mxu0 0
    %3106 = vmatprep.subr.bf16.mxu0 0
    %3107 = vmatpush1.bf16.msra.mxu0 0
    %3108 = vmatprep.subr.bf16.mxu0 0
    %3109 = vmatpush1.bf16.msra.mxu0 0
    %3110 = vmatprep.subr.bf16.mxu0 0
    %3111 = vmatpush1.bf16.msra.mxu0 0
    %3112 = vmatprep.subr.bf16.mxu0 0
    %3113 = vmatpush1.bf16.msra.mxu0 0
    %3114 = vmatprep.subr.bf16.mxu0 0
    %3115 = vmatpush1.bf16.msra.mxu0 0
    %3116 = vmatprep.subr.bf16.mxu0 0
    %3117 = vmatpush1.bf16.msra.mxu0 0
    %3118 = vmatprep.subr.bf16.mxu0 0
    %3119 = vmatpush1.bf16.msra.mxu0 0
    %3120 = vmatprep.subr.bf16.mxu0 0
    %3121 = vmatpush1.bf16.msra.mxu0 0
    %3122 = vmatprep.subr.bf16.mxu0 0
    %3123 = vmatpush1.bf16.msra.mxu0 0
    %3124 = vmatprep.subr.bf16.mxu0 0
    %3125 = vmatpush1.bf16.msra.mxu0 0
    %3126 = vmatprep.subr.bf16.mxu0 0
    %3127 = vmatpush1.bf16.msra.mxu0 0
    %3128 = vmatprep.subr.bf16.mxu0 0
    %3129 = vmatpush1.bf16.msra.mxu0 0
    %3130 = vmatprep.mubr.bf16.mxu0 0
    %3131 = vmatmul.mubr.bf16.gmra.mrb[0].mxu0 %v3096
    %v3132 = vpop.f32.mrb[0].mxu0
    %v3133 = vadd.f32 0.0, %v3132
    %v3134 = vpop.f32.mrb[0].mxu0
    %v3135 = vpop.f32.mrb[0].mxu0
    %v3136 = vadd.f32 0.0, %v3135
    %v3137 = vpop.f32.mrb[0].mxu0
    %3138 = vdwg.mxu0
    %v3140 = vsel %vm2088, %v3094, 0
    %3142 = vmatprep.subr.bf16.mxu0 0
    %3143 = vmatpush1.bf16.msra.mxu0 %v1983
    %3144 = vmatprep.subr.bf16.mxu0 0
    %3145 = vmatpush1.bf16.msra.mxu0 0
    %3146 = vmatprep.subr.bf16.mxu0 0
    %3147 = vmatpush1.bf16.msra.mxu0 0
    %3148 = vmatprep.subr.bf16.mxu0 0
    %3149 = vmatpush1.bf16.msra.mxu0 0
    %3150 = vmatprep.subr.bf16.mxu0 0
    %3151 = vmatpush1.bf16.msra.mxu0 0
    %3152 = vmatprep.subr.bf16.mxu0 0
    %3153 = vmatpush1.bf16.msra.mxu0 0
    %3154 = vmatprep.subr.bf16.mxu0 0
    %3155 = vmatpush1.bf16.msra.mxu0 0
    %3156 = vmatprep.subr.bf16.mxu0 0
    %3157 = vmatpush1.bf16.msra.mxu0 0
    %3158 = vmatprep.subr.bf16.mxu0 0
    %3159 = vmatpush1.bf16.msra.mxu0 0
    %3160 = vmatprep.subr.bf16.mxu0 0
    %3161 = vmatpush1.bf16.msra.mxu0 0
    %3162 = vmatprep.subr.bf16.mxu0 0
    %3163 = vmatpush1.bf16.msra.mxu0 0
    %3164 = vmatprep.subr.bf16.mxu0 0
    %3165 = vmatpush1.bf16.msra.mxu0 0
    %3166 = vmatprep.subr.bf16.mxu0 0
    %3167 = vmatpush1.bf16.msra.mxu0 0
    %3168 = vmatprep.subr.bf16.mxu0 0
    %3169 = vmatpush1.bf16.msra.mxu0 0
    %3170 = vmatprep.subr.bf16.mxu0 0
    %3171 = vmatpush1.bf16.msra.mxu0 0
    %3172 = vmatprep.subr.bf16.mxu0 0
    %3173 = vmatpush1.bf16.msra.mxu0 0
    %3174 = vmatprep.mubr.bf16.mxu0 0
    %3175 = vmatmul.mubr.bf16.gmra.mrb[0].mxu0 %v3140
    %v3176 = vpop.f32.mrb[0].mxu0
    %v3177 = vadd.f32 0.0, %v3176
    %v3178 = vpop.f32.mrb[0].mxu0
    %v3179 = vpop.f32.mrb[0].mxu0
    %v3180 = vadd.f32 0.0, %v3179
    %v3181 = vpop.f32.mrb[0].mxu0
    %3182 = vdwg.mxu0
    %v3183 = vpack.c.bf16 %v3136, %v3133
    %v3184 = vpack.c.bf16 %v3180, %v3177
    %3186 = vrot.lane.b32.xlu0 %v1968, 64
    %v3187 = vpop.permute.xlu0 %3186
    %3189 = vrot.lane.b32.xlu0 %v1971, 64
    %v3190 = vpop.permute.xlu0 %3189
    %v3192 = vsel %vm1993, %v3187, 0
    %v3195 = vsel %vm1993, %v3190, 0
    %3197 = vmatprep.subr.bf16.mxu0 0
    %3198 = vmatpush1.bf16.xpose.msra.mxu0 %v3195
    %3199 = vmatprep.subr.bf16.mxu0 0
    %3200 = vmatpush1.bf16.xpose.msra.mxu0 0
    %3201 = vmatprep.subr.bf16.mxu0 0
    %3202 = vmatpush1.bf16.xpose.msra.mxu0 0
    %3203 = vmatprep.subr.bf16.mxu0 0
    %3204 = vmatpush1.bf16.xpose.msra.mxu0 0
    %3205 = vmatprep.subr.bf16.mxu0 0
    %3206 = vmatpush1.bf16.xpose.msra.mxu0 0
    %3207 = vmatprep.subr.bf16.mxu0 0
    %3208 = vmatpush1.bf16.xpose.msra.mxu0 0
    %3209 = vmatprep.subr.bf16.mxu0 0
    %3210 = vmatpush1.bf16.xpose.msra.mxu0 0
    %3211 = vmatprep.subr.bf16.mxu0 0
    %3212 = vmatpush1.bf16.xpose.msra.mxu0 0
    %3213 = vmatprep.subr.bf16.mxu0 0
    %3214 = vmatpush1.bf16.xpose.msra.mxu0 0
    %3215 = vmatprep.subr.bf16.mxu0 0
    %3216 = vmatpush1.bf16.xpose.msra.mxu0 0
    %3217 = vmatprep.subr.bf16.mxu0 0
    %3218 = vmatpush1.bf16.xpose.msra.mxu0 0
    %3219 = vmatprep.subr.bf16.mxu0 0
    %3220 = vmatpush1.bf16.xpose.msra.mxu0 0
    %3221 = vmatprep.subr.bf16.mxu0 0
    %3222 = vmatpush1.bf16.xpose.msra.mxu0 0
    %3223 = vmatprep.subr.bf16.mxu0 0
    %3224 = vmatpush1.bf16.xpose.msra.mxu0 0
    %3225 = vmatprep.subr.bf16.mxu0 0
    %3226 = vmatpush1.bf16.xpose.msra.mxu0 0
    %3227 = vmatprep.subr.bf16.mxu0 0
    %3228 = vmatpush1.bf16.xpose.msra.mxu0 0
    %3229 = vmatprep.mubr.bf16.mxu0 0
    %3230 = vmatmul.mubr.bf16.gmra.mrb[0].mxu0 %v3192
    %v3231 = vpop.f32.mrb[0].mxu0
    %v3232 = vadd.f32 %v1991, %v3231
    %v3233 = vpop.f32.mrb[0].mxu0
    %v3234 = vpop.f32.mrb[0].mxu0
    %v3235 = vadd.f32 %v1992, %v3234
    %v3236 = vpop.f32.mrb[0].mxu0
    %3237 = vdwg.mxu0
    %3239 = vrot.lane.b32.xlu0 %v1977, 64
    %v3240 = vpop.permute.xlu0 %3239
    %3242 = vrot.lane.b32.xlu0 %v1980, 64
    %v3243 = vpop.permute.xlu0 %3242
    %v3245 = vsel %vm1993, %v3240, 0
    %v3248 = vsel %vm1993, %v3243, 0
    %3250 = vmatprep.subr.bf16.mxu0 0
    %3251 = vmatpush1.bf16.xpose.msra.mxu0 %v3248
    %3252 = vmatprep.subr.bf16.mxu0 0
    %3253 = vmatpush1.bf16.xpose.msra.mxu0 0
    %3254 = vmatprep.subr.bf16.mxu0 0
    %3255 = vmatpush1.bf16.xpose.msra.mxu0 0
    %3256 = vmatprep.subr.bf16.mxu0 0
    %3257 = vmatpush1.bf16.xpose.msra.mxu0 0
    %3258 = vmatprep.subr.bf16.mxu0 0
    %3259 = vmatpush1.bf16.xpose.msra.mxu0 0
    %3260 = vmatprep.subr.bf16.mxu0 0
    %3261 = vmatpush1.bf16.xpose.msra.mxu0 0
    %3262 = vmatprep.subr.bf16.mxu0 0
    %3263 = vmatpush1.bf16.xpose.msra.mxu0 0
    %3264 = vmatprep.subr.bf16.mxu0 0
    %3265 = vmatpush1.bf16.xpose.msra.mxu0 0
    %3266 = vmatprep.subr.bf16.mxu0 0
    %3267 = vmatpush1.bf16.xpose.msra.mxu0 0
    %3268 = vmatprep.subr.bf16.mxu0 0
    %3269 = vmatpush1.bf16.xpose.msra.mxu0 0
    %3270 = vmatprep.subr.bf16.mxu0 0
    %3271 = vmatpush1.bf16.xpose.msra.mxu0 0
    %3272 = vmatprep.subr.bf16.mxu0 0
    %3273 = vmatpush1.bf16.xpose.msra.mxu0 0
    %3274 = vmatprep.subr.bf16.mxu0 0
    %3275 = vmatpush1.bf16.xpose.msra.mxu0 0
    %3276 = vmatprep.subr.bf16.mxu0 0
    %3277 = vmatpush1.bf16.xpose.msra.mxu0 0
    %3278 = vmatprep.subr.bf16.mxu0 0
    %3279 = vmatpush1.bf16.xpose.msra.mxu0 0
    %3280 = vmatprep.subr.bf16.mxu0 0
    %3281 = vmatpush1.bf16.xpose.msra.mxu0 0
    %3282 = vmatprep.mubr.bf16.mxu0 0
    %3283 = vmatmul.mubr.bf16.gmra.mrb[0].mxu0 %v3245
    %v3284 = vpop.f32.mrb[0].mxu0
    %v3285 = vadd.f32 %v1991, %v3284
    %v3286 = vpop.f32.mrb[0].mxu0
    %v3287 = vpop.f32.mrb[0].mxu0
    %v3288 = vadd.f32 %v1992, %v3287
    %v3289 = vpop.f32.mrb[0].mxu0
    %3290 = vdwg.mxu0
    %v3291 = vsel %vm2088, %v3232, -inf
    %3292 = vmax.xlane.f32.xlu0 %v3291
    %v3293 = vpop.xlane.xlu0 %3292
    %v3294 = vsel %vm2088, %v3235, -inf
    %3295 = vmax.xlane.f32.xlu0 %v3294
    %v3296 = vpop.xlane.xlu0 %3295
    %v3297 = vsel %vm2088, %v3285, -inf
    %3298 = vmax.xlane.f32.xlu0 %v3297
    %v3299 = vpop.xlane.xlu0 %3298
    %v3300 = vsel %vm2088, %v3288, -inf
    %3301 = vmax.xlane.f32.xlu0 %v3300
    %v3302 = vpop.xlane.xlu0 %3301
    %v3303 = vsub.f32 %v3232, %v3293
    %v3304 = vsub.f32 %v3235, %v3296
    %v3305 = vsub.f32 %v3285, %v3299
    %v3306 = vsub.f32 %v3288, %v3302
    %v3307 = vmul.f32 %v3303, 1.442695
    %v3308 = vpow.pop %v3307
    %v3309 = vmul.f32 %v3304, 1.442695
    %v3310 = vpow.pop %v3309
    %v3311 = vmul.f32 %v3305, 1.442695
    %v3312 = vpow.pop %v3311
    %v3313 = vmul.f32 %v3306, 1.442695
    %v3314 = vpow.pop %v3313
    %v3315 = vsel %vm2088, %v3308, 0.0
    %3316 = vadd.xlane.f32.xlu0 %v3315
    %v3317 = vpop.xlane.xlu0 %3316
    %v3318 = vsel %vm2088, %v3310, 0.0
    %3319 = vadd.xlane.f32.xlu0 %v3318
    %v3320 = vpop.xlane.xlu0 %3319
    %v3321 = vsel %vm2088, %v3312, 0.0
    %3322 = vadd.xlane.f32.xlu0 %v3321
    %v3323 = vpop.xlane.xlu0 %3322
    %v3324 = vsel %vm2088, %v3314, 0.0
    %3325 = vadd.xlane.f32.xlu0 %v3324
    %v3326 = vpop.xlane.xlu0 %3325
    %v3327 = vrcp.pop %v3317
    %v3328 = vrcp.pop %v3320
    %v3329 = vrcp.pop %v3323
    %v3330 = vrcp.pop %v3326
    %v3331 = vmul.f32 %v3308, %v3327
    %v3332 = vmul.f32 %v3310, %v3328
    %v3333 = vmul.f32 %v3312, %v3329
    %v3334 = vmul.f32 %v3314, %v3330
    %v3335 = vpack.c.bf16 %v3332, %v3331
    %v3336 = vpack.c.bf16 %v3334, %v3333
    %3338 = vrot.lane.b32.xlu0 %v1974, 64
    %v3339 = vpop.permute.xlu0 %3338
    %v3342 = vsel %vm2088, %v3335, 0
    %3344 = vmatprep.subr.bf16.mxu0 0
    %3345 = vmatpush1.bf16.msra.mxu0 %v3339
    %3346 = vmatprep.subr.bf16.mxu0 0
    %3347 = vmatpush1.bf16.msra.mxu0 0
    %3348 = vmatprep.subr.bf16.mxu0 0
    %3349 = vmatpush1.bf16.msra.mxu0 0
    %3350 = vmatprep.subr.bf16.mxu0 0
    %3351 = vmatpush1.bf16.msra.mxu0 0
    %3352 = vmatprep.subr.bf16.mxu0 0
    %3353 = vmatpush1.bf16.msra.mxu0 0
    %3354 = vmatprep.subr.bf16.mxu0 0
    %3355 = vmatpush1.bf16.msra.mxu0 0
    %3356 = vmatprep.subr.bf16.mxu0 0
    %3357 = vmatpush1.bf16.msra.mxu0 0
    %3358 = vmatprep.subr.bf16.mxu0 0
    %3359 = vmatpush1.bf16.msra.mxu0 0
    %3360 = vmatprep.subr.bf16.mxu0 0
    %3361 = vmatpush1.bf16.msra.mxu0 0
    %3362 = vmatprep.subr.bf16.mxu0 0
    %3363 = vmatpush1.bf16.msra.mxu0 0
    %3364 = vmatprep.subr.bf16.mxu0 0
    %3365 = vmatpush1.bf16.msra.mxu0 0
    %3366 = vmatprep.subr.bf16.mxu0 0
    %3367 = vmatpush1.bf16.msra.mxu0 0
    %3368 = vmatprep.subr.bf16.mxu0 0
    %3369 = vmatpush1.bf16.msra.mxu0 0
    %3370 = vmatprep.subr.bf16.mxu0 0
    %3371 = vmatpush1.bf16.msra.mxu0 0
    %3372 = vmatprep.subr.bf16.mxu0 0
    %3373 = vmatpush1.bf16.msra.mxu0 0
    %3374 = vmatprep.subr.bf16.mxu0 0
    %3375 = vmatpush1.bf16.msra.mxu0 0
    %3376 = vmatprep.mubr.bf16.mxu0 0
    %3377 = vmatmul.mubr.bf16.gmra.mrb[0].mxu0 %v3342
    %v3378 = vpop.f32.mrb[0].mxu0
    %v3379 = vadd.f32 0.0, %v3378
    %v3380 = vpop.f32.mrb[0].mxu0
    %v3381 = vpop.f32.mrb[0].mxu0
    %v3382 = vadd.f32 0.0, %v3381
    %v3383 = vpop.f32.mrb[0].mxu0
    %3384 = vdwg.mxu0
    %3386 = vrot.lane.b32.xlu0 %v1983, 64
    %v3387 = vpop.permute.xlu0 %3386
    %v3390 = vsel %vm2088, %v3336, 0
    %3392 = vmatprep.subr.bf16.mxu0 0
    %3393 = vmatpush1.bf16.msra.mxu0 %v3387
    %3394 = vmatprep.subr.bf16.mxu0 0
    %3395 = vmatpush1.bf16.msra.mxu0 0
    %3396 = vmatprep.subr.bf16.mxu0 0
    %3397 = vmatpush1.bf16.msra.mxu0 0
    %3398 = vmatprep.subr.bf16.mxu0 0
    %3399 = vmatpush1.bf16.msra.mxu0 0
    %3400 = vmatprep.subr.bf16.mxu0 0
    %3401 = vmatpush1.bf16.msra.mxu0 0
    %3402 = vmatprep.subr.bf16.mxu0 0
    %3403 = vmatpush1.bf16.msra.mxu0 0
    %3404 = vmatprep.subr.bf16.mxu0 0
    %3405 = vmatpush1.bf16.msra.mxu0 0
    %3406 = vmatprep.subr.bf16.mxu0 0
    %3407 = vmatpush1.bf16.msra.mxu0 0
    %3408 = vmatprep.subr.bf16.mxu0 0
    %3409 = vmatpush1.bf16.msra.mxu0 0
    %3410 = vmatprep.subr.bf16.mxu0 0
    %3411 = vmatpush1.bf16.msra.mxu0 0
    %3412 = vmatprep.subr.bf16.mxu0 0
    %3413 = vmatpush1.bf16.msra.mxu0 0
    %3414 = vmatprep.subr.bf16.mxu0 0
    %3415 = vmatpush1.bf16.msra.mxu0 0
    %3416 = vmatprep.subr.bf16.mxu0 0
    %3417 = vmatpush1.bf16.msra.mxu0 0
    %3418 = vmatprep.subr.bf16.mxu0 0
    %3419 = vmatpush1.bf16.msra.mxu0 0
    %3420 = vmatprep.subr.bf16.mxu0 0
    %3421 = vmatpush1.bf16.msra.mxu0 0
    %3422 = vmatprep.subr.bf16.mxu0 0
    %3423 = vmatpush1.bf16.msra.mxu0 0
    %3424 = vmatprep.mubr.bf16.mxu0 0
    %3425 = vmatmul.mubr.bf16.gmra.mrb[0].mxu0 %v3390
    %v3426 = vpop.f32.mrb[0].mxu0
    %v3427 = vadd.f32 0.0, %v3426
    %v3428 = vpop.f32.mrb[0].mxu0
    %v3429 = vpop.f32.mrb[0].mxu0
    %v3430 = vadd.f32 0.0, %v3429
    %v3431 = vpop.f32.mrb[0].mxu0
    %3432 = vdwg.mxu0
    %v3433 = vpack.c.bf16 %v3382, %v3379
    %v3434 = vpack.c.bf16 %v3430, %v3427
    %3437 = vrot.lane.b32.xlu0 %v2473, 64
    %v3438 = vpop.permute.xlu0 %3437
    %3439 = vrot.lane.b32.xlu0 %v2474, 64
    %v3440 = vpop.permute.xlu0 %3439
    %3443 = vrot.lane.b32.xlu0 %v2953, 64
    %v3444 = vpop.permute.xlu0 %3443
    %3445 = vrot.lane.b32.xlu0 %v2954, 64
    %v3446 = vpop.permute.xlu0 %3445
    %3449 = vrot.lane.b32.xlu0 %v3433, 64
    %v3450 = vpop.permute.xlu0 %3449
    %3451 = vrot.lane.b32.xlu0 %v3434, 64
    %v3452 = vpop.permute.xlu0 %3451
    %v3455 = vsel %vm1993, %v2223, %v3438
    %v3459 = vsel %vm1993, %v2224, %v3440
    %v3463 = vsel %vm1993, %v2703, %v3444
    %v3467 = vsel %vm1993, %v2704, %v3446
    %v3471 = vsel %vm1993, %v3183, %v3450
    %v3475 = vsel %vm1993, %v3184, %v3452
    %v3477 = vld [vmem:[#allocation7] sm:$0xff]
    %v3478 = vld [vmem:[#allocation7 + $0x8] sm:$0xf]
    %v3479 = vld [vmem:[#allocation7 + $0xc] sm:$0xff]
    %v3480 = vld [vmem:[#allocation7 + $0x14] sm:$0xf]
    %v3481 = vld [vmem:[#allocation7 + $0x18] sm:$0xff]
    %v3482 = vld [vmem:[#allocation7 + $0x20] sm:$0xf]
    %v3483 = vld [vmem:[#allocation7 + $0x24] sm:$0xff]
    %v3484 = vld [vmem:[#allocation7 + $0x2c] sm:$0xf]
    %v3485 = vld [vmem:[#allocation7 + $0x30] sm:$0xff]
    %v3486 = vld [vmem:[#allocation7 + $0x38] sm:$0xf]
    %v3487 = vld [vmem:[#allocation7 + $0x3c] sm:$0xff]
    %v3488 = vld [vmem:[#allocation7 + $0x44] sm:$0xf]
    %v3489 = vld [vmem:[#allocation7 + $0x48] sm:$0xff]
    %v3490 = vld [vmem:[#allocation7 + $0x50] sm:$0xf]
    %v3491 = vld [vmem:[#allocation7 + $0x54] sm:$0xff]
    %v3492 = vld [vmem:[#allocation7 + $0x5c] sm:$0xf]
    %v3493 = vld [vmem:[#allocation7 + $0x60] sm:$0xff]
    %v3494 = vld [vmem:[#allocation7 + $0x68] sm:$0xf]
    %v3495 = vld [vmem:[#allocation7 + $0x6c] sm:$0xff]
    %v3496 = vld [vmem:[#allocation7 + $0x74] sm:$0xf]
    %v3497 = vld [vmem:[#allocation7 + $0x78] sm:$0xff]
    %v3498 = vld [vmem:[#allocation7 + $0x80] sm:$0xf]
    %v3499 = vld [vmem:[#allocation7 + $0x84] sm:$0xff]
    %v3500 = vld [vmem:[#allocation7 + $0x8c] sm:$0xf]
    %v3501 = vld [vmem:[#allocation7 + $0x90] sm:$0xff]
    %v3502 = vld [vmem:[#allocation7 + $0x98] sm:$0xf]
    %v3503 = vld [vmem:[#allocation7 + $0x9c] sm:$0xff]
    %v3504 = vld [vmem:[#allocation7 + $0xa4] sm:$0xf]
    %v3505 = vld [vmem:[#allocation7 + $0xa8] sm:$0xff]
    %v3506 = vld [vmem:[#allocation7 + $0xb0] sm:$0xf]
    %v3507 = vld [vmem:[#allocation7 + $0xb4] sm:$0xff]
    %v3508 = vld [vmem:[#allocation7 + $0xbc] sm:$0xf]
    %v3509 = vld [vmem:[#allocation7 + $0xc0] sm:$0xff]
    %v3510 = vld [vmem:[#allocation7 + $0xc8] sm:$0xf]
    %v3511 = vld [vmem:[#allocation7 + $0xcc] sm:$0xff]
    %v3512 = vld [vmem:[#allocation7 + $0xd4] sm:$0xf]
    %v3513 = vld [vmem:[#allocation7 + $0xd8] sm:$0xff]
    %v3514 = vld [vmem:[#allocation7 + $0xe0] sm:$0xf]
    %v3515 = vld [vmem:[#allocation7 + $0xe4] sm:$0xff]
    %v3516 = vld [vmem:[#allocation7 + $0xec] sm:$0xf]
    %v3517 = vld [vmem:[#allocation7 + $0xf0] sm:$0xff]
    %v3518 = vld [vmem:[#allocation7 + $0xf8] sm:$0xf]
    %v3519 = vld [vmem:[#allocation7 + $0xfc] sm:$0xff]
    %v3520 = vld [vmem:[#allocation7 + $0x104] sm:$0xf]
    %v3521 = vld [vmem:[#allocation7 + $0x108] sm:$0xff]
    %v3522 = vld [vmem:[#allocation7 + $0x110] sm:$0xf]
    %v3523 = vld [vmem:[#allocation7 + $0x114] sm:$0xff]
    %v3524 = vld [vmem:[#allocation7 + $0x11c] sm:$0xf]
    %v3525 = vld [vmem:[#allocation7 + $0x120] sm:$0xff]
    %v3526 = vld [vmem:[#allocation7 + $0x128] sm:$0xf]
    %v3527 = vld [vmem:[#allocation7 + $0x12c] sm:$0xff]
    %v3528 = vld [vmem:[#allocation7 + $0x134] sm:$0xf]
    %v3529 = vld [vmem:[#allocation7 + $0x138] sm:$0xff]
    %v3530 = vld [vmem:[#allocation7 + $0x140] sm:$0xf]
    %v3531 = vld [vmem:[#allocation7 + $0x144] sm:$0xff]
    %v3532 = vld [vmem:[#allocation7 + $0x14c] sm:$0xf]
    %v3533 = vld [vmem:[#allocation7 + $0x150] sm:$0xff]
    %v3534 = vld [vmem:[#allocation7 + $0x158] sm:$0xf]
    %v3535 = vld [vmem:[#allocation7 + $0x15c] sm:$0xff]
    %v3536 = vld [vmem:[#allocation7 + $0x164] sm:$0xf]
    %v3537 = vld [vmem:[#allocation7 + $0x168] sm:$0xff]
    %v3538 = vld [vmem:[#allocation7 + $0x170] sm:$0xf]
    %v3539 = vld [vmem:[#allocation7 + $0x174] sm:$0xff]
    %v3540 = vld [vmem:[#allocation7 + $0x17c] sm:$0xf]
    %v3541 = vld [vmem:[#allocation7 + $0x180] sm:$0xff]
    %v3542 = vld [vmem:[#allocation7 + $0x188] sm:$0xf]
    %v3543 = vld [vmem:[#allocation7 + $0x18c] sm:$0xff]
    %v3544 = vld [vmem:[#allocation7 + $0x194] sm:$0xf]
    %v3545 = vld [vmem:[#allocation7 + $0x198] sm:$0xff]
    %v3546 = vld [vmem:[#allocation7 + $0x1a0] sm:$0xf]
    %v3547 = vld [vmem:[#allocation7 + $0x1a4] sm:$0xff]
    %v3548 = vld [vmem:[#allocation7 + $0x1ac] sm:$0xf]
    %v3549 = vld [vmem:[#allocation7 + $0x1b0] sm:$0xff]
    %v3550 = vld [vmem:[#allocation7 + $0x1b8] sm:$0xf]
    %v3551 = vld [vmem:[#allocation7 + $0x1bc] sm:$0xff]
    %v3552 = vld [vmem:[#allocation7 + $0x1c4] sm:$0xf]
    %v3553 = vld [vmem:[#allocation7 + $0x1c8] sm:$0xff]
    %v3554 = vld [vmem:[#allocation7 + $0x1d0] sm:$0xf]
    %v3555 = vld [vmem:[#allocation7 + $0x1d4] sm:$0xff]
    %v3556 = vld [vmem:[#allocation7 + $0x1dc] sm:$0xf]
    %v3557 = vld [vmem:[#allocation7 + $0x1e0] sm:$0xff]
    %v3558 = vld [vmem:[#allocation7 + $0x1e8] sm:$0xf]
    %v3559 = vld [vmem:[#allocation7 + $0x1ec] sm:$0xff]
    %v3560 = vld [vmem:[#allocation7 + $0x1f4] sm:$0xf]
    %v3561 = vld [vmem:[#allocation7 + $0x1f8] sm:$0xff]
    %v3562 = vld [vmem:[#allocation7 + $0x200] sm:$0xf]
    %v3563 = vld [vmem:[#allocation7 + $0x204] sm:$0xff]
    %v3564 = vld [vmem:[#allocation7 + $0x20c] sm:$0xf]
    %v3565 = vld [vmem:[#allocation7 + $0x210] sm:$0xff]
    %v3566 = vld [vmem:[#allocation7 + $0x218] sm:$0xf]
    %v3567 = vld [vmem:[#allocation7 + $0x21c] sm:$0xff]
    %v3568 = vld [vmem:[#allocation7 + $0x224] sm:$0xf]
    %v3569 = vld [vmem:[#allocation7 + $0x228] sm:$0xff]
    %v3570 = vld [vmem:[#allocation7 + $0x230] sm:$0xf]
    %v3571 = vld [vmem:[#allocation7 + $0x234] sm:$0xff]
    %v3572 = vld [vmem:[#allocation7 + $0x23c] sm:$0xf]
    %v3573 = vld [vmem:[%s3] sm:$0x7]
    %v3575 = vlaneseq
    %v3576 = vshrl.u32 %v3575, 7
    %v3577 = vsub.s32 0, %v3576
    %v3578 = vrot.slane %v3573, %v3577
    %v3579 = vlaneseq
    %v3580 = vshrl.u32 %v3579, 7
    %v3581 = vsub.s32 1, %v3580
    %v3582 = vrot.slane %v3573, %v3581
    %v3583 = vlaneseq
    %v3584 = vshrl.u32 %v3583, 7
    %v3585 = vsub.s32 2, %v3584
    %v3586 = vrot.slane %v3573, %v3585
    %v3686 = vunpack.c.l.b16 %v3477
    %v3687 = vunpack.c.h.b16 %v3477
    %v3688 = vunpack.c.l.b16 %v3478
    %v3689 = vunpack.c.l.b16 %v3479
    %v3690 = vunpack.c.h.b16 %v3479
    %v3691 = vunpack.c.l.b16 %v3480
    %v3692 = vunpack.c.l.b16 %v3481
    %v3693 = vunpack.c.h.b16 %v3481
    %v3694 = vunpack.c.l.b16 %v3482
    %v3695 = vunpack.c.l.b16 %v3483
    %v3696 = vunpack.c.h.b16 %v3483
    %v3697 = vunpack.c.l.b16 %v3484
    %v3698 = vunpack.c.l.b16 %v3485
    %v3699 = vunpack.c.h.b16 %v3485
    %v3700 = vunpack.c.l.b16 %v3486
    %v3701 = vunpack.c.l.b16 %v3487
    %v3702 = vunpack.c.h.b16 %v3487
    %v3703 = vunpack.c.l.b16 %v3488
    %v3704 = vunpack.c.l.b16 %v3489
    %v3705 = vunpack.c.h.b16 %v3489
    %v3706 = vunpack.c.l.b16 %v3490
    %v3707 = vunpack.c.l.b16 %v3491
    %v3708 = vunpack.c.h.b16 %v3491
    %v3709 = vunpack.c.l.b16 %v3492
    %v3710 = vunpack.c.l.b16 %v3493
    %v3711 = vunpack.c.h.b16 %v3493
    %v3712 = vunpack.c.l.b16 %v3494
    %v3713 = vunpack.c.l.b16 %v3495
    %v3714 = vunpack.c.h.b16 %v3495
    %v3715 = vunpack.c.l.b16 %v3496
    %v3716 = vunpack.c.l.b16 %v3497
    %v3717 = vunpack.c.h.b16 %v3497
    %v3718 = vunpack.c.l.b16 %v3498
    %v3719 = vunpack.c.l.b16 %v3499
    %v3720 = vunpack.c.h.b16 %v3499
    %v3721 = vunpack.c.l.b16 %v3500
    %v3722 = vunpack.c.l.b16 %v3501
    %v3723 = vunpack.c.h.b16 %v3501
    %v3724 = vunpack.c.l.b16 %v3502
    %v3725 = vunpack.c.l.b16 %v3503
    %v3726 = vunpack.c.h.b16 %v3503
    %v3727 = vunpack.c.l.b16 %v3504
    %v3728 = vunpack.c.l.b16 %v3505
    %v3729 = vunpack.c.h.b16 %v3505
    %v3730 = vunpack.c.l.b16 %v3506
    %v3731 = vunpack.c.l.b16 %v3507
    %v3732 = vunpack.c.h.b16 %v3507
    %v3733 = vunpack.c.l.b16 %v3508
    %v3734 = vunpack.c.l.b16 %v3509
    %v3735 = vunpack.c.h.b16 %v3509
    %v3736 = vunpack.c.l.b16 %v3510
    %v3737 = vunpack.c.l.b16 %v3511
    %v3738 = vunpack.c.h.b16 %v3511
    %v3739 = vunpack.c.l.b16 %v3512
    %v3740 = vunpack.c.l.b16 %v3513
    %v3741 = vunpack.c.h.b16 %v3513
    %v3742 = vunpack.c.l.b16 %v3514
    %v3743 = vunpack.c.l.b16 %v3515
    %v3744 = vunpack.c.h.b16 %v3515
    %v3745 = vunpack.c.l.b16 %v3516
    %v3746 = vunpack.c.l.b16 %v3517
    %v3747 = vunpack.c.h.b16 %v3517
    %v3748 = vunpack.c.l.b16 %v3518
    %v3749 = vunpack.c.l.b16 %v3519
    %v3750 = vunpack.c.h.b16 %v3519
    %v3751 = vunpack.c.l.b16 %v3520
    %v3752 = vunpack.c.l.b16 %v3521
    %v3753 = vunpack.c.h.b16 %v3521
    %v3754 = vunpack.c.l.b16 %v3522
    %v3755 = vunpack.c.l.b16 %v3523
    %v3756 = vunpack.c.h.b16 %v3523
    %v3757 = vunpack.c.l.b16 %v3524
    %v3758 = vunpack.c.l.b16 %v3525
    %v3759 = vunpack.c.h.b16 %v3525
    %v3760 = vunpack.c.l.b16 %v3526
    %v3761 = vunpack.c.l.b16 %v3527
    %v3762 = vunpack.c.h.b16 %v3527
    %v3763 = vunpack.c.l.b16 %v3528
    %v3764 = vunpack.c.l.b16 %v3529
    %v3765 = vunpack.c.h.b16 %v3529
    %v3766 = vunpack.c.l.b16 %v3530
    %v3767 = vunpack.c.l.b16 %v3531
    %v3768 = vunpack.c.h.b16 %v3531
    %v3769 = vunpack.c.l.b16 %v3532
    %v3770 = vunpack.c.l.b16 %v3533
    %v3771 = vunpack.c.h.b16 %v3533
    %v3772 = vunpack.c.l.b16 %v3534
    %v3773 = vunpack.c.l.b16 %v3535
    %v3774 = vunpack.c.h.b16 %v3535
    %v3775 = vunpack.c.l.b16 %v3536
    %v3776 = vunpack.c.l.b16 %v3537
    %v3777 = vunpack.c.h.b16 %v3537
    %v3778 = vunpack.c.l.b16 %v3538
    %v3779 = vunpack.c.l.b16 %v3539
    %v3780 = vunpack.c.h.b16 %v3539
    %v3781 = vunpack.c.l.b16 %v3540
    %v3782 = vunpack.c.l.b16 %v3541
    %v3783 = vunpack.c.h.b16 %v3541
    %v3784 = vunpack.c.l.b16 %v3542
    %v3785 = vunpack.c.l.b16 %v3543
    %v3786 = vunpack.c.h.b16 %v3543
    %v3787 = vunpack.c.l.b16 %v3544
    %v3788 = vunpack.c.l.b16 %v3545
    %v3789 = vunpack.c.h.b16 %v3545
    %v3790 = vunpack.c.l.b16 %v3546
    %v3791 = vunpack.c.l.b16 %v3547
    %v3792 = vunpack.c.h.b16 %v3547
    %v3793 = vunpack.c.l.b16 %v3548
    %v3794 = vunpack.c.l.b16 %v3549
    %v3795 = vunpack.c.h.b16 %v3549
    %v3796 = vunpack.c.l.b16 %v3550
    %v3797 = vunpack.c.l.b16 %v3551
    %v3798 = vunpack.c.h.b16 %v3551
    %v3799 = vunpack.c.l.b16 %v3552
    %v3800 = vunpack.c.l.b16 %v3553
    %v3801 = vunpack.c.h.b16 %v3553
    %v3802 = vunpack.c.l.b16 %v3554
    %v3803 = vunpack.c.l.b16 %v3555
    %v3804 = vunpack.c.h.b16 %v3555
    %v3805 = vunpack.c.l.b16 %v3556
    %v3806 = vunpack.c.l.b16 %v3557
    %v3807 = vunpack.c.h.b16 %v3557
    %v3808 = vunpack.c.l.b16 %v3558
    %v3809 = vunpack.c.l.b16 %v3559
    %v3810 = vunpack.c.h.b16 %v3559
    %v3811 = vunpack.c.l.b16 %v3560
    %v3812 = vunpack.c.l.b16 %v3561
    %v3813 = vunpack.c.h.b16 %v3561
    %v3814 = vunpack.c.l.b16 %v3562
    %v3815 = vunpack.c.l.b16 %v3563
    %v3816 = vunpack.c.h.b16 %v3563
    %v3817 = vunpack.c.l.b16 %v3564
    %v3818 = vunpack.c.l.b16 %v3565
    %v3819 = vunpack.c.h.b16 %v3565
    %v3820 = vunpack.c.l.b16 %v3566
    %v3821 = vunpack.c.l.b16 %v3567
    %v3822 = vunpack.c.h.b16 %v3567
    %v3823 = vunpack.c.l.b16 %v3568
    %v3824 = vunpack.c.l.b16 %v3569
    %v3825 = vunpack.c.h.b16 %v3569
    %v3826 = vunpack.c.l.b16 %v3570
    %v3827 = vunpack.c.l.b16 %v3571
    %v3828 = vunpack.c.h.b16 %v3571
    %v3829 = vunpack.c.l.b16 %v3572
    %v3830 = vpack.c.b16 %v3689, %v3686
    %v3831 = vpack.c.b16 %v3690, %v3687
    %v3832 = vpack.c.b16 %v3691, %v3688
    %v3833 = vpack.c.b16 %v3695, %v3692
    %v3834 = vpack.c.b16 %v3696, %v3693
    %v3835 = vpack.c.b16 %v3697, %v3694
    %v3836 = vpack.c.b16 %v3701, %v3698
    %v3837 = vpack.c.b16 %v3702, %v3699
    %v3838 = vpack.c.b16 %v3703, %v3700
    %v3839 = vpack.c.b16 %v3707, %v3704
    %v3840 = vpack.c.b16 %v3708, %v3705
    %v3841 = vpack.c.b16 %v3709, %v3706
    %v3842 = vpack.c.b16 %v3713, %v3710
    %v3843 = vpack.c.b16 %v3714, %v3711
    %v3844 = vpack.c.b16 %v3715, %v3712
    %v3845 = vpack.c.b16 %v3719, %v3716
    %v3846 = vpack.c.b16 %v3720, %v3717
    %v3847 = vpack.c.b16 %v3721, %v3718
    %v3848 = vpack.c.b16 %v3725, %v3722
    %v3849 = vpack.c.b16 %v3726, %v3723
    %v3850 = vpack.c.b16 %v3727, %v3724
    %v3851 = vpack.c.b16 %v3731, %v3728
    %v3852 = vpack.c.b16 %v3732, %v3729
    %v3853 = vpack.c.b16 %v3733, %v3730
    %v3854 = vpack.c.b16 %v3737, %v3734
    %v3855 = vpack.c.b16 %v3738, %v3735
    %v3856 = vpack.c.b16 %v3739, %v3736
    %v3857 = vpack.c.b16 %v3743, %v3740
    %v3858 = vpack.c.b16 %v3744, %v3741
    %v3859 = vpack.c.b16 %v3745, %v3742
    %v3860 = vpack.c.b16 %v3749, %v3746
    %v3861 = vpack.c.b16 %v3750, %v3747
    %v3862 = vpack.c.b16 %v3751, %v3748
    %v3863 = vpack.c.b16 %v3755, %v3752
    %v3864 = vpack.c.b16 %v3756, %v3753
    %v3865 = vpack.c.b16 %v3757, %v3754
    %v3866 = vpack.c.b16 %v3761, %v3758
    %v3867 = vpack.c.b16 %v3762, %v3759
    %v3868 = vpack.c.b16 %v3763, %v3760
    %v3869 = vpack.c.b16 %v3767, %v3764
    %v3870 = vpack.c.b16 %v3768, %v3765
    %v3871 = vpack.c.b16 %v3769, %v3766
    %v3872 = vpack.c.b16 %v3773, %v3770
    %v3873 = vpack.c.b16 %v3774, %v3771
    %v3874 = vpack.c.b16 %v3775, %v3772
    %v3875 = vpack.c.b16 %v3779, %v3776
    %v3876 = vpack.c.b16 %v3780, %v3777
    %v3877 = vpack.c.b16 %v3781, %v3778
    %v3878 = vpack.c.b16 %v3785, %v3782
    %v3879 = vpack.c.b16 %v3786, %v3783
    %v3880 = vpack.c.b16 %v3787, %v3784
    %v3881 = vpack.c.b16 %v3791, %v3788
    %v3882 = vpack.c.b16 %v3792, %v3789
    %v3883 = vpack.c.b16 %v3793, %v3790
    %v3884 = vpack.c.b16 %v3797, %v3794
    %v3885 = vpack.c.b16 %v3798, %v3795
    %v3886 = vpack.c.b16 %v3799, %v3796
    %v3887 = vpack.c.b16 %v3803, %v3800
    %v3888 = vpack.c.b16 %v3804, %v3801
    %v3889 = vpack.c.b16 %v3805, %v3802
    %v3890 = vpack.c.b16 %v3809, %v3806
    %v3891 = vpack.c.b16 %v3810, %v3807
    %v3892 = vpack.c.b16 %v3811, %v3808
    %v3893 = vpack.c.b16 %v3815, %v3812
    %v3894 = vpack.c.b16 %v3816, %v3813
    %v3895 = vpack.c.b16 %v3817, %v3814
    %v3896 = vpack.c.b16 %v3821, %v3818
    %v3897 = vpack.c.b16 %v3822, %v3819
    %v3898 = vpack.c.b16 %v3823, %v3820
    %v3899 = vpack.c.b16 %v3827, %v3824
    %v3900 = vpack.c.b16 %v3828, %v3825
    %v3901 = vpack.c.b16 %v3829, %v3826
    %3974 = vmatprep.subr.bf16.mxu0 %v3831
    %3975 = vmatpush1.bf16.msra.mxu0 %v3830
    %3976 = vmatprep.subr.bf16.mxu0 %v3834
    %3977 = vmatpush1.bf16.msra.mxu0 %v3833
    %3978 = vmatprep.subr.bf16.mxu0 %v3837
    %3979 = vmatpush1.bf16.msra.mxu0 %v3836
    %3980 = vmatprep.subr.bf16.mxu0 %v3840
    %3981 = vmatpush1.bf16.msra.mxu0 %v3839
    %3982 = vmatprep.subr.bf16.mxu0 %v3843
    %3983 = vmatpush1.bf16.msra.mxu0 %v3842
    %3984 = vmatprep.subr.bf16.mxu0 %v3846
    %3985 = vmatpush1.bf16.msra.mxu0 %v3845
    %3986 = vmatprep.subr.bf16.mxu0 %v3849
    %3987 = vmatpush1.bf16.msra.mxu0 %v3848
    %3988 = vmatprep.subr.bf16.mxu0 %v3852
    %3989 = vmatpush1.bf16.msra.mxu0 %v3851
    %3990 = vmatprep.subr.bf16.mxu0 %v3855
    %3991 = vmatpush1.bf16.msra.mxu0 %v3854
    %3992 = vmatprep.subr.bf16.mxu0 %v3858
    %3993 = vmatpush1.bf16.msra.mxu0 %v3857
    %3994 = vmatprep.subr.bf16.mxu0 %v3861
    %3995 = vmatpush1.bf16.msra.mxu0 %v3860
    %3996 = vmatprep.subr.bf16.mxu0 %v3864
    %3997 = vmatpush1.bf16.msra.mxu0 %v3863
    %3998 = vmatprep.subr.bf16.mxu0 %v3867
    %3999 = vmatpush1.bf16.msra.mxu0 %v3866
    %4000 = vmatprep.subr.bf16.mxu0 %v3870
    %4001 = vmatpush1.bf16.msra.mxu0 %v3869
    %4002 = vmatprep.subr.bf16.mxu0 %v3873
    %4003 = vmatpush1.bf16.msra.mxu0 %v3872
    %4004 = vmatprep.subr.bf16.mxu0 %v3876
    %4005 = vmatpush1.bf16.msra.mxu0 %v3875
    %4006 = vmatprep.mubr.bf16.mxu0 %v3463
    %4007 = vmatmul.mubr.bf16.gmra.mrb[0].mxu0 %v3455
    %v4008 = vpop.f32.mrb[0].mxu0
    %v4009 = vadd.f32 %v3578, %v4008
    %v4010 = vpop.f32.mrb[0].mxu0
    %v4011 = vadd.f32 %v3582, %v4010
    %v4012 = vpop.f32.mrb[0].mxu0
    %v4013 = vadd.f32 %v3578, %v4012
    %v4014 = vpop.f32.mrb[0].mxu0
    %v4015 = vadd.f32 %v3582, %v4014
    %4016 = vmatprep.mubr.bf16.mxu0 %v3467
    %4017 = vmatmul.mubr.bf16.gmra.mrb[0].mxu0 %v3459
    %v4018 = vpop.f32.mrb[0].mxu0
    %v4019 = vadd.f32 %v3578, %v4018
    %v4020 = vpop.f32.mrb[0].mxu0
    %v4021 = vadd.f32 %v3582, %v4020
    %v4022 = vpop.f32.mrb[0].mxu0
    %v4023 = vadd.f32 %v3578, %v4022
    %v4024 = vpop.f32.mrb[0].mxu0
    %v4025 = vadd.f32 %v3582, %v4024
    %4026 = vdwg.mxu0
    %4027 = vmatprep.subr.bf16.mxu0 %v3879
    %4028 = vmatpush1.bf16.msra.mxu0 %v3878
    %4029 = vmatprep.subr.bf16.mxu0 %v3882
    %4030 = vmatpush1.bf16.msra.mxu0 %v3881
    %4031 = vmatprep.subr.bf16.mxu0 %v3885
    %4032 = vmatpush1.bf16.msra.mxu0 %v3884
    %4033 = vmatprep.subr.bf16.mxu0 %v3888
    %4034 = vmatpush1.bf16.msra.mxu0 %v3887
    %4035 = vmatprep.subr.bf16.mxu0 %v3891
    %4036 = vmatpush1.bf16.msra.mxu0 %v3890
    %4037 = vmatprep.subr.bf16.mxu0 %v3894
    %4038 = vmatpush1.bf16.msra.mxu0 %v3893
    %4039 = vmatprep.subr.bf16.mxu0 %v3897
    %4040 = vmatpush1.bf16.msra.mxu0 %v3896
    %4041 = vmatprep.subr.bf16.mxu0 %v3900
    %4042 = vmatpush1.bf16.msra.mxu0 %v3899
    %4043 = vmatprep.subr.bf16.mxu0 0
    %4044 = vmatpush1.bf16.msra.mxu0 0
    %4045 = vmatprep.subr.bf16.mxu0 0
    %4046 = vmatpush1.bf16.msra.mxu0 0
    %4047 = vmatprep.subr.bf16.mxu0 0
    %4048 = vmatpush1.bf16.msra.mxu0 0
    %4049 = vmatprep.subr.bf16.mxu0 0
    %4050 = vmatpush1.bf16.msra.mxu0 0
    %4051 = vmatprep.subr.bf16.mxu0 0
    %4052 = vmatpush1.bf16.msra.mxu0 0
    %4053 = vmatprep.subr.bf16.mxu0 0
    %4054 = vmatpush1.bf16.msra.mxu0 0
    %4055 = vmatprep.subr.bf16.mxu0 0
    %4056 = vmatpush1.bf16.msra.mxu0 0
    %4057 = vmatprep.subr.bf16.mxu0 0
    %4058 = vmatpush1.bf16.msra.mxu0 0
    %4059 = vmatprep.mubr.bf16.mxu0 0
    %4060 = vmatmul.mubr.bf16.gmra.mrb[0].mxu0 %v3471
    %v4061 = vpop.f32.mrb[0].mxu0
    %v4062 = vadd.f32 %v4009, %v4061
    %v4063 = vpop.f32.mrb[0].mxu0
    %v4064 = vadd.f32 %v4011, %v4063
    %v4065 = vpop.f32.mrb[0].mxu0
    %v4066 = vadd.f32 %v4013, %v4065
    %v4067 = vpop.f32.mrb[0].mxu0
    %v4068 = vadd.f32 %v4015, %v4067
    %4069 = vmatprep.mubr.bf16.mxu0 0
    %4070 = vmatmul.mubr.bf16.gmra.mrb[0].mxu0 %v3475
    %v4071 = vpop.f32.mrb[0].mxu0
    %v4072 = vadd.f32 %v4019, %v4071
    %v4073 = vpop.f32.mrb[0].mxu0
    %v4074 = vadd.f32 %v4021, %v4073
    %v4075 = vpop.f32.mrb[0].mxu0
    %v4076 = vadd.f32 %v4023, %v4075
    %v4077 = vpop.f32.mrb[0].mxu0
    %v4078 = vadd.f32 %v4025, %v4077
    %4079 = vdwg.mxu0
    %4080 = vmatprep.subr.bf16.mxu0 0
    %4081 = vmatpush1.bf16.msra.mxu0 %v3832
    %4082 = vmatprep.subr.bf16.mxu0 0
    %4083 = vmatpush1.bf16.msra.mxu0 %v3835
    %4084 = vmatprep.subr.bf16.mxu0 0
    %4085 = vmatpush1.bf16.msra.mxu0 %v3838
    %4086 = vmatprep.subr.bf16.mxu0 0
    %4087 = vmatpush1.bf16.msra.mxu0 %v3841
    %4088 = vmatprep.subr.bf16.mxu0 0
    %4089 = vmatpush1.bf16.msra.mxu0 %v3844
    %4090 = vmatprep.subr.bf16.mxu0 0
    %4091 = vmatpush1.bf16.msra.mxu0 %v3847
    %4092 = vmatprep.subr.bf16.mxu0 0
    %4093 = vmatpush1.bf16.msra.mxu0 %v3850
    %4094 = vmatprep.subr.bf16.mxu0 0
    %4095 = vmatpush1.bf16.msra.mxu0 %v3853
    %4096 = vmatprep.subr.bf16.mxu0 0
    %4097 = vmatpush1.bf16.msra.mxu0 %v3856
    %4098 = vmatprep.subr.bf16.mxu0 0
    %4099 = vmatpush1.bf16.msra.mxu0 %v3859
    %4100 = vmatprep.subr.bf16.mxu0 0
    %4101 = vmatpush1.bf16.msra.mxu0 %v3862
    %4102 = vmatprep.subr.bf16.mxu0 0
    %4103 = vmatpush1.bf16.msra.mxu0 %v3865
    %4104 = vmatprep.subr.bf16.mxu0 0
    %4105 = vmatpush1.bf16.msra.mxu0 %v3868
    %4106 = vmatprep.subr.bf16.mxu0 0
    %4107 = vmatpush1.bf16.msra.mxu0 %v3871
    %4108 = vmatprep.subr.bf16.mxu0 0
    %4109 = vmatpush1.bf16.msra.mxu0 %v3874
    %4110 = vmatprep.subr.bf16.mxu0 0
    %4111 = vmatpush1.bf16.msra.mxu0 %v3877
    %4112 = vmatprep.mubr.bf16.mxu0 %v3463
    %4113 = vmatmul.mubr.bf16.gmra.mrb[0].mxu0 %v3455
    %v4114 = vpop.f32.mrb[0].mxu0
    %v4115 = vadd.f32 %v3586, %v4114
    %v4116 = vpop.f32.mrb[0].mxu0
    %v4117 = vpop.f32.mrb[0].mxu0
    %v4118 = vadd.f32 %v3586, %v4117
    %v4119 = vpop.f32.mrb[0].mxu0
    %4120 = vmatprep.mubr.bf16.mxu0 %v3467
    %4121 = vmatmul.mubr.bf16.gmra.mrb[0].mxu0 %v3459
    %v4122 = vpop.f32.mrb[0].mxu0
    %v4123 = vadd.f32 %v3586, %v4122
    %v4124 = vpop.f32.mrb[0].mxu0
    %v4125 = vpop.f32.mrb[0].mxu0
    %v4126 = vadd.f32 %v3586, %v4125
    %v4127 = vpop.f32.mrb[0].mxu0
    %4128 = vdwg.mxu0
    %4129 = vmatprep.subr.bf16.mxu0 0
    %4130 = vmatpush1.bf16.msra.mxu0 %v3880
    %4131 = vmatprep.subr.bf16.mxu0 0
    %4132 = vmatpush1.bf16.msra.mxu0 %v3883
    %4133 = vmatprep.subr.bf16.mxu0 0
    %4134 = vmatpush1.bf16.msra.mxu0 %v3886
    %4135 = vmatprep.subr.bf16.mxu0 0
    %4136 = vmatpush1.bf16.msra.mxu0 %v3889
    %4137 = vmatprep.subr.bf16.mxu0 0
    %4138 = vmatpush1.bf16.msra.mxu0 %v3892
    %4139 = vmatprep.subr.bf16.mxu0 0
    %4140 = vmatpush1.bf16.msra.mxu0 %v3895
    %4141 = vmatprep.subr.bf16.mxu0 0
    %4142 = vmatpush1.bf16.msra.mxu0 %v3898
    %4143 = vmatprep.subr.bf16.mxu0 0
    %4144 = vmatpush1.bf16.msra.mxu0 %v3901
    %4145 = vmatprep.subr.bf16.mxu0 0
    %4146 = vmatpush1.bf16.msra.mxu0 0
    %4147 = vmatprep.subr.bf16.mxu0 0
    %4148 = vmatpush1.bf16.msra.mxu0 0
    %4149 = vmatprep.subr.bf16.mxu0 0
    %4150 = vmatpush1.bf16.msra.mxu0 0
    %4151 = vmatprep.subr.bf16.mxu0 0
    %4152 = vmatpush1.bf16.msra.mxu0 0
    %4153 = vmatprep.subr.bf16.mxu0 0
    %4154 = vmatpush1.bf16.msra.mxu0 0
    %4155 = vmatprep.subr.bf16.mxu0 0
    %4156 = vmatpush1.bf16.msra.mxu0 0
    %4157 = vmatprep.subr.bf16.mxu0 0
    %4158 = vmatpush1.bf16.msra.mxu0 0
    %4159 = vmatprep.subr.bf16.mxu0 0
    %4160 = vmatpush1.bf16.msra.mxu0 0
    %4161 = vmatprep.mubr.bf16.mxu0 0
    %4162 = vmatmul.mubr.bf16.gmra.mrb[0].mxu0 %v3471
    %v4163 = vpop.f32.mrb[0].mxu0
    %v4164 = vadd.f32 %v4115, %v4163
    %v4165 = vpop.f32.mrb[0].mxu0
    %v4166 = vpop.f32.mrb[0].mxu0
    %v4167 = vadd.f32 %v4118, %v4166
    %v4168 = vpop.f32.mrb[0].mxu0
    %4169 = vmatprep.mubr.bf16.mxu0 0
    %4170 = vmatmul.mubr.bf16.gmra.mrb[0].mxu0 %v3475
    %v4171 = vpop.f32.mrb[0].mxu0
    %v4172 = vadd.f32 %v4123, %v4171
    %v4173 = vpop.f32.mrb[0].mxu0
    %v4174 = vpop.f32.mrb[0].mxu0
    %v4175 = vadd.f32 %v4126, %v4174
    %v4176 = vpop.f32.mrb[0].mxu0
    %4177 = vdwg.mxu0
    %v4178 = vpack.c.bf16 %v4066, %v4062
    %v4179 = vpack.c.bf16 %v4068, %v4064
    %v4180 = vpack.c.bf16 %v4167, %v4164
    %v4181 = vpack.c.bf16 %v4076, %v4072
    %v4182 = vpack.c.bf16 %v4078, %v4074
    %v4183 = vpack.c.bf16 %v4175, %v4172
    %v4190 = vunpack.c.l.b16 %v4178
    %v4191 = vunpack.c.l.b16 %v4179
    %v4192 = vunpack.c.l.b16 %v4180
    %v4193 = vunpack.c.h.b16 %v4178
    %v4194 = vunpack.c.h.b16 %v4179
    %v4195 = vunpack.c.h.b16 %v4180
    %v4196 = vunpack.c.l.b16 %v4181
    %v4197 = vunpack.c.l.b16 %v4182
    %v4198 = vunpack.c.l.b16 %v4183
    %v4199 = vunpack.c.h.b16 %v4181
    %v4200 = vunpack.c.h.b16 %v4182
    %v4201 = vunpack.c.h.b16 %v4183
    %v4202 = vpack.c.b16 %v4191, %v4190
    %v4203 = vpack.c.b16 %v4192, %v4192
    %v4204 = vpack.c.b16 %v4194, %v4193
    %v4205 = vpack.c.b16 %v4195, %v4195
    %v4206 = vpack.c.b16 %v4197, %v4196
    %v4207 = vpack.c.b16 %v4198, %v4198
    %v4208 = vpack.c.b16 %v4200, %v4199
    %v4209 = vpack.c.b16 %v4201, %v4201
    %4218 = vst [vmem:[#allocation8] sm:$0xff] %v4202
    %4219 = vst [vmem:[#allocation8 + $0x8] sm:$0xf] %v4203
    %4220 = vst [vmem:[#allocation8 + $0xc] sm:$0xff] %v4204
    %4221 = vst [vmem:[#allocation8 + $0x14] sm:$0xf] %v4205
    %4222 = vst [vmem:[#allocation8 + $0x18] sm:$0xff] %v4206
    %4223 = vst [vmem:[#allocation8 + $0x20] sm:$0xf] %v4207
    %4224 = vst [vmem:[#allocation8 + $0x24] sm:$0xff] %v4208
    %4225 = vst [vmem:[#allocation8 + $0x2c] sm:$0xf] %v4209
    // Predicated region
    $region30: #{tpu_custom_call.1} parent=1 // pred_check
      _
    $region31: #{tpu_custom_call.1} parent=1 // pred_check_branch
      %4227 = sbr.rel (0) target = $region33
    $region32: #{tpu_custom_call.1} parent=1 // pred_region
      %s4229 = ssub.s32 768, 768
      %4230 = vsyncadd [#allocation4], %s4229
      %s4231 = sshll.u32 [#allocation8], 4
      %s4232 = int_to_ptr.vmem [resolvable:$true] %s4231
      %4237 = dma.vmem_to_hbm [thread:$0]  %s4232, 768, %s4, [#allocation4], 192, 192, 12
    $region33: #{tpu_custom_call.1} parent=1 // pred_fallthru
      _
    // Predicated region
    $region34: #{tpu_custom_call.1} parent=1 // pred_check
      _
    $region35: #{tpu_custom_call.1} parent=1 // pred_check_branch
      %4239 = sbr.rel (0) target = $region37
    $region36: #{tpu_custom_call.1} parent=1 // pred_region
      %4240 = dma.done [#allocation4], 768
    $region37: #{tpu_custom_call.1} parent=1 // pred_fallthru
      _
    %4241 = vsyncpa [#allocation3], 1
    %4242 = vsyncpa [#allocation6], 1
    %4243 = vsyncpa [#allocation4], 1

</llo_original>
